<compile_context>
chip_gen: v7x
topology: tpu7x:2x2x1
jax: 0.10.0
libtpu: 0.0.40
codegen_flags: <defaults>
</compile_context>

<pallas_src>
import functools
import numpy as np

import jax
import jax.numpy as jnp
from jax.experimental import pallas as pl
from jax.experimental.pallas import tpu as pltpu


# ----------------------------------------------------------------------------
# Generation-aware knobs + small helpers
# ----------------------------------------------------------------------------

def _device_kind():
    try:
        return jax.devices()[0].device_kind.lower()
    except Exception:
        return ""


_KIND = _device_kind()
_IS_V7 = "v7" in _KIND
# v7x: 64 MiB physical VMEM -> stay at 48 MiB scoped.  v5e/v6e: 128 MiB -> 100 MiB.
_VMEM_LIMIT = (48 if _IS_V7 else 100) * 1024 * 1024
_ROW_CAP = 512 if _IS_V7 else 1024


def _cparams(sem):
    return pltpu.CompilerParams(
        dimension_semantics=tuple(sem),
        vmem_limit_bytes=_VMEM_LIMIT,
    )


def _row_tile(M, cap=None):
    """Row tile: multiple of 8 dividing M, <= cap, preferring >= 2 grid steps (2 TCs)."""
    cap = cap or _ROW_CAP
    if M <= 8:
        return M
    candidates = [t for t in range(8, min(M, cap) + 1, 8) if M % t == 0]
    if not candidates:
        return M
    multi = [t for t in candidates if M // t >= 2]
    return max(multi) if multi else max(candidates)


def _col_tile(Vp, cap=2048):
    """Vocab tile: multiple of 128 dividing Vp (Vp is already padded to 128)."""
    best = 128
    for t in range(128, min(Vp, cap) + 1, 128):
        if Vp % t == 0:
            best = t
    return best


# ----------------------------------------------------------------------------
# Pallas kernels
# ----------------------------------------------------------------------------

def _mha_ln_kernel(xq_ref, xkv_ref, seqk_ref,
                   wq_ref, wk_ref, wv_ref, bq_ref, bk_ref, bv_ref,
                   wo_ref, bo_ref, g_ref, beta_ref,
                   out_ref, attn_ref,
                   bias_ref, acc_ref, *, causal):
    """Per-(batch, head) fused attention sub-layer.

    Grid = (B, H); H is the last ("arbitrary") axis.  The output projection is
    accumulated over heads in a VMEM f32 scratch; residual + LayerNorm happen at
    the last head.  All matmuls are plain 2-D (weights pre-split per head), so
    there is no lane-axis slicing, concatenation or in-kernel reshape.
    """
    h = pl.program_id(1)
    last_h = pl.num_programs(1) - 1
    Lq = xq_ref.shape[1]
    Lk = xkv_ref.shape[1]

    x_q = xq_ref[0]                                           # (Lq, D) f32 residual

    @pl.when(h == 0)
    def _init():
        # Additive attention bias built in-kernel: key padding (token id == 0)
        # plus (optionally) the causal mask.  No HBM mask tensor.
        pad = seqk_ref[0] == 0                                # (1, Lk) bool
        bias = jnp.where(pad, -1e9, 0.0).astype(jnp.float32)  # (1, Lk)
        bias = jnp.broadcast_to(bias, (Lq, Lk))
        if causal:
            row = jax.lax.broadcasted_iota(jnp.int32, (Lq, Lk), 0)
            col = jax.lax.broadcasted_iota(jnp.int32, (Lq, Lk), 1)
            bias = jnp.where(col > row, -1e9, bias)
        bias_ref[...] = bias
        acc_ref[...] = jnp.zeros_like(acc_ref)

    # Per-head projections; MXU bf16 path with f32 accumulation.  The 1/sqrt(dh)
    # softmax scale is folded into wq/bq at init time.
    xq_b = x_q.astype(jnp.bfloat16)
    xkv_b = xkv_ref[0].astype(jnp.bfloat16)
    q = jnp.dot(xq_b, wq_ref[0], preferred_element_type=jnp.float32) + bq_ref[0]
    k = jnp.dot(xkv_b, wk_ref[0], preferred_element_type=jnp.float32) + bk_ref[0]
    v = jnp.dot(xkv_b, wv_ref[0], preferred_element_type=jnp.float32) + bv_ref[0]

    # Scores = Q @ K^T : contract last axes (no K transpose materialized).
    s = jax.lax.dot_general(q.astype(jnp.bfloat16), k.astype(jnp.bfloat16),
                            (((1,), (1,)), ((), ())),
                            preferred_element_type=jnp.float32)
    s = s + bias_ref[...]

    m = jnp.max(s, axis=-1, keepdims=True)
    p = jnp.exp(s - m)
    attn = p * pl.reciprocal(jnp.sum(p, axis=-1, keepdims=True), approx=True)
    attn_b = attn.astype(jnp.bfloat16)
    attn_ref[0, 0] = attn_b                                   # bf16 attention writeback

    ctx = jnp.dot(attn_b, v.astype(jnp.bfloat16), preferred_element_type=jnp.float32)
    # Accumulate this head's share of the output projection.
    acc_ref[...] += jnp.dot(ctx.astype(jnp.bfloat16), wo_ref[0],
                            preferred_element_type=jnp.float32)

    @pl.when(h == last_h)
    def _finalize():
        y = acc_ref[...] + bo_ref[...] + x_q                  # residual add
        mean = jnp.mean(y, axis=-1, keepdims=True)
        var = jnp.mean((y - mean) ** 2, axis=-1, keepdims=True)
        out_ref[0] = (y - mean) * jax.lax.rsqrt(var + 1e-5) * g_ref[...] + beta_ref[...]


def _ffn_ln_kernel(x_ref, w1_ref, b1_ref, w2_ref, b2_ref, g_ref, beta_ref, o_ref):
    """Fused: linear -> ReLU -> linear -> residual + LayerNorm."""
    x = x_ref[...]                                            # (tm, D) f32
    h = jnp.dot(x.astype(jnp.bfloat16), w1_ref[...],
                preferred_element_type=jnp.float32) + b1_ref[...]
    h = jnp.maximum(h, 0.0)
    y = jnp.dot(h.astype(jnp.bfloat16), w2_ref[...],
                preferred_element_type=jnp.float32) + b2_ref[...]
    y = y + x
    mean = jnp.mean(y, axis=-1, keepdims=True)
    var = jnp.mean((y - mean) ** 2, axis=-1, keepdims=True)
    o_ref[...] = (y - mean) * jax.lax.rsqrt(var + 1e-5) * g_ref[...] + beta_ref[...]


def _vocab_stats_kernel(x_ref, w_ref, m_ref, l_ref, m_sc, l_sc, *, valid_cols):
    """Pass 1: online row-max / row-sum over vocab tiles (weight streamed by tile)."""
    j = pl.program_id(1)
    tv = w_ref.shape[-1]

    @pl.when(j == 0)
    def _():
        m_sc[...] = jnp.full_like(m_sc, -1e30)
        l_sc[...] = jnp.zeros_like(l_sc)

    logits = jnp.dot(x_ref[...].astype(jnp.bfloat16), w_ref[...],
                     preferred_element_type=jnp.float32)
    col = j * tv + jax.lax.broadcasted_iota(jnp.int32, logits.shape, 1)
    logits = jnp.where(col < valid_cols, logits, -1e30)

    m_new = jnp.maximum(m_sc[...], jnp.max(logits, axis=-1, keepdims=True))
    l_sc[...] = (l_sc[...] * jnp.exp(m_sc[...] - m_new)
                 + jnp.sum(jnp.exp(logits - m_new), axis=-1, keepdims=True))
    m_sc[...] = m_new

    @pl.when(j == pl.num_programs(1) - 1)
    def _():
        m_ref[...] = m_sc[...]
        l_ref[...] = l_sc[...]


def _vocab_norm_kernel(x_ref, w_ref, m_ref, l_ref, o_ref, *, valid_cols):
    """Pass 2: recompute logits tile and write exactly-normalized probabilities."""
    j = pl.program_id(1)
    tv = w_ref.shape[-1]
    logits = jnp.dot(x_ref[...].astype(jnp.bfloat16), w_ref[...],
                     preferred_element_type=jnp.float32)
    col = j * tv + jax.lax.broadcasted_iota(jnp.int32, logits.shape, 1)
    logits = jnp.where(col < valid_cols, logits, -1e30)
    # Exact division for the final output softmax (rows sum to 1 within f32 rounding).
    o_ref[...] = jnp.exp(logits - m_ref[...]) / l_ref[...]


# ----------------------------------------------------------------------------
# Pallas wrappers
# ----------------------------------------------------------------------------

def mha_ln(p, query, kv, seq_k, causal, num_heads):
    """query: (B, Lq, D), kv: (B, Lk, D), seq_k: (B, Lk) int token ids (0 = pad)."""
    B, Lq, D = query.shape
    Lk = kv.shape[1]
    dh = D // num_heads
    seq_k3 = seq_k[:, None, :].astype(jnp.int32)              # (B, 1, Lk)
    kernel = functools.partial(_mha_ln_kernel, causal=causal)
    out, attn = pl.pallas_call(
        kernel,
        out_shape=(
            jax.ShapeDtypeStruct((B, Lq, D), jnp.float32),
            jax.ShapeDtypeStruct((B, num_heads, Lq, Lk), jnp.bfloat16),
        ),
        grid=(B, num_heads),
        in_specs=[
            pl.BlockSpec((1, Lq, D), lambda b, h: (b, 0, 0)),   # query / residual
            pl.BlockSpec((1, Lk, D), lambda b, h: (b, 0, 0)),   # key/value source
            pl.BlockSpec((1, 1, Lk), lambda b, h: (b, 0, 0)),   # key token ids
            pl.BlockSpec((1, D, dh), lambda b, h: (h, 0, 0)),   # wq_h (scale folded)
            pl.BlockSpec((1, D, dh), lambda b, h: (h, 0, 0)),   # wk_h
            pl.BlockSpec((1, D, dh), lambda b, h: (h, 0, 0)),   # wv_h
            pl.BlockSpec((1, 1, dh), lambda b, h: (h, 0, 0)),   # bq_h
            pl.BlockSpec((1, 1, dh), lambda b, h: (h, 0, 0)),   # bk_h
            pl.BlockSpec((1, 1, dh), lambda b, h: (h, 0, 0)),   # bv_h
            pl.BlockSpec((1, dh, D), lambda b, h: (h, 0, 0)),   # wo_h
            pl.BlockSpec((1, D), lambda b, h: (0, 0)),          # bo
            pl.BlockSpec((1, D), lambda b, h: (0, 0)),          # ln gamma
            pl.BlockSpec((1, D), lambda b, h: (0, 0)),          # ln beta
        ],
        out_specs=(
            pl.BlockSpec((1, Lq, D), lambda b, h: (b, 0, 0)),
            pl.BlockSpec((1, 1, Lq, Lk), lambda b, h: (b, h, 0, 0)),
        ),
        scratch_shapes=[
            pltpu.VMEM((Lq, Lk), jnp.float32),   # additive mask bias (built at h == 0)
            pltpu.VMEM((Lq, D), jnp.float32),    # output-projection accumulator
        ],
        compiler_params=_cparams(("parallel", "arbitrary")),
    )(query, kv, seq_k3, p["wq"], p["wk"], p["wv"], p["bq"], p["bk"], p["bv"],
      p["wo"], p["bo"], p["ln_g"], p["ln_b"])
    return out, attn


def ffn_ln(p, x):
    """Position-wise FFN + residual + LayerNorm.  x: (B, L, D)."""
    B, L, D = x.shape
    M = B * L
    F = p["w1"].shape[1]
    x2 = x.reshape(M, D)
    tm = _row_tile(M)
    out = pl.pallas_call(
        _ffn_ln_kernel,
        out_shape=jax.ShapeDtypeStruct((M, D), jnp.float32),
        grid=(M // tm,),
        in_specs=[
            pl.BlockSpec((tm, D), lambda i: (i, 0)),
            pl.BlockSpec((D, F), lambda i: (0, 0)),
            pl.BlockSpec((1, F), lambda i: (0, 0)),
            pl.BlockSpec((F, D), lambda i: (0, 0)),
            pl.BlockSpec((1, D), lambda i: (0, 0)),
            pl.BlockSpec((1, D), lambda i: (0, 0)),
            pl.BlockSpec((1, D), lambda i: (0, 0)),
        ],
        out_specs=pl.BlockSpec((tm, D), lambda i: (i, 0)),
        compiler_params=_cparams(("parallel",)),
    )(x2, p["w1"], p["b1"], p["w2"], p["b2"], p["ln_g"], p["ln_b"])
    return out.reshape(B, L, D)


def project_softmax(x2, w_pad, valid_cols):
    """softmax(x2 @ W) over the first `valid_cols` columns, vocab axis tiled.

    x2: (M, D) f32, w_pad: (D, Vp) bf16 with Vp a multiple of 128.
    """
    M, D = x2.shape
    Vp = w_pad.shape[1]
    tm = _row_tile(M, cap=256)
    tv = _col_tile(Vp)
    grid = (M // tm, Vp // tv)

    x_spec = pl.BlockSpec((tm, D), lambda i, j: (i, 0))
    w_spec = pl.BlockSpec((D, tv), lambda i, j: (0, j))
    stat_spec = pl.BlockSpec((tm, 1), lambda i, j: (i, 0))

    m, l = pl.pallas_call(
        functools.partial(_vocab_stats_kernel, valid_cols=valid_cols),
        out_shape=(jax.ShapeDtypeStruct((M, 1), jnp.float32),
                   jax.ShapeDtypeStruct((M, 1), jnp.float32)),
        grid=grid,
        in_specs=[x_spec, w_spec],
        out_specs=(stat_spec, stat_spec),
        scratch_shapes=[pltpu.VMEM((tm, 1), jnp.float32),
                        pltpu.VMEM((tm, 1), jnp.float32)],
        compiler_params=_cparams(("parallel", "arbitrary")),
    )(x2, w_pad)

    probs = pl.pallas_call(
        functools.partial(_vocab_norm_kernel, valid_cols=valid_cols),
        out_shape=jax.ShapeDtypeStruct((M, Vp), jnp.float32),
        grid=grid,
        in_specs=[x_spec, w_spec, stat_spec, stat_spec],
        out_specs=pl.BlockSpec((tm, tv), lambda i, j: (i, j)),
        compiler_params=_cparams(("parallel", "parallel")),
    )(x2, w_pad, m, l)
    return probs[:, :valid_cols]


# ----------------------------------------------------------------------------
# Model-level glue (embeddings, layer composition)
# ----------------------------------------------------------------------------

def sinusoid_position_table(max_len, d_model):
    pos = np.arange(max_len)[:, None].astype(np.float64)
    j = np.arange(d_model)[None, :]
    angle = pos / np.power(10000.0, 2.0 * (j // 2) / d_model)
    table = np.zeros((max_len, d_model))
    table[:, 0::2] = np.sin(angle[:, 0::2])
    table[:, 1::2] = np.cos(angle[:, 1::2])
    pad = np.zeros((1, d_model))
    return jnp.asarray(np.concatenate([pad, table], axis=0), jnp.float32)


def positional_embedding(lengths, seq_len, table):
    idx = jnp.arange(seq_len)[None, :]
    pos = jnp.where(idx < lengths[:, None], idx + 1, 0)       # position 0 is the pad row
    return table[pos]


@functools.partial(jax.jit, static_argnames=("num_heads", "tgt_vocab"))
def transformer_forward(params, src_seq, src_len, tgt_seq, tgt_len, num_heads, tgt_vocab):
    B, Ls = src_seq.shape
    Lt = tgt_seq.shape[1]

    # ---- Encoder ----
    enc_out = params["src_embed"][src_seq] + positional_embedding(
        src_len, Ls, params["src_pos"])
    enc_self_attns = []
    for lp in params["enc_layers"]:
        enc_out, attn = mha_ln(lp["attn"], enc_out, enc_out, src_seq, False, num_heads)
        enc_out = ffn_ln(lp["ffn"], enc_out)
        enc_self_attns.append(attn.reshape(B * num_heads, Ls, Ls))

    # ---- Decoder ----
    dec_out = params["tgt_embed"][tgt_seq] + positional_embedding(
        tgt_len, Lt, params["tgt_pos"])
    dec_self_attns, ctx_attns = [], []
    for lp in params["dec_layers"]:
        dec_out, sa = mha_ln(lp["self_attn"], dec_out, dec_out, tgt_seq, True, num_heads)
        dec_out, ca = mha_ln(lp["cross_attn"], dec_out, enc_out, src_seq, False, num_heads)
        dec_out = ffn_ln(lp["ffn"], dec_out)
        dec_self_attns.append(sa.reshape(B * num_heads, Lt, Lt))
        ctx_attns.append(ca.reshape(B * num_heads, Lt, Ls))

    # ---- Final projection + softmax(dim=2) + view(-1, vocab) ----
    out = project_softmax(dec_out.reshape(B * Lt, -1), params["w_out"], tgt_vocab)
    return out, enc_self_attns, dec_self_attns, ctx_attns


# ----------------------------------------------------------------------------
# Deterministic parameter init
# ----------------------------------------------------------------------------

def init_params(key, src_vocab, src_max_len, tgt_vocab, tgt_max_len,
                num_layers, model_dim, ffn_dim, num_heads):
    keys = iter(jax.random.split(key, 4096))

    def xavier(shape):
        fan_in, fan_out = shape
        std = (2.0 / (fan_in + fan_out)) ** 0.5
        return jax.random.normal(next(keys), shape, jnp.float32) * std

    def embedding(vocab, dim):
        e = jax.random.normal(next(keys), (vocab, dim), jnp.float32) * 0.1
        return e.at[0].set(0.0)  # padding_idx=0

    def attn_params(dim, heads):
        dh = dim // heads
        scale = float(dh) ** -0.5

        def per_head_in(w):     # (D, D) -> (H, D, dh)
            return jnp.transpose(w.reshape(dim, heads, dh), (1, 0, 2))

        wq = per_head_in(xavier((dim, dim))) * scale          # fold softmax scale into Wq
        wk = per_head_in(xavier((dim, dim)))
        wv = per_head_in(xavier((dim, dim)))
        wo = xavier((dim, dim)).reshape(heads, dh, dim)
        return dict(
            wq=wq.astype(jnp.bfloat16), wk=wk.astype(jnp.bfloat16), wv=wv.astype(jnp.bfloat16),
            bq=jnp.zeros((heads, 1, dh), jnp.float32),        # (scale-folded; zero-init)
            bk=jnp.zeros((heads, 1, dh), jnp.float32),
            bv=jnp.zeros((heads, 1, dh), jnp.float32),
            wo=wo.astype(jnp.bfloat16), bo=jnp.zeros((1, dim), jnp.float32),
            ln_g=jnp.ones((1, dim), jnp.float32), ln_b=jnp.zeros((1, dim), jnp.float32),
        )

    def ffn_params(dim, hidden):
        return dict(
            w1=xavier((dim, hidden)).astype(jnp.bfloat16),
            b1=jnp.zeros((1, hidden), jnp.float32),
            w2=xavier((hidden, dim)).astype(jnp.bfloat16),
            b2=jnp.zeros((1, dim), jnp.float32),
            ln_g=jnp.ones((1, dim), jnp.float32), ln_b=jnp.zeros((1, dim), jnp.float32),
        )

    # Output projection (bias=False in the reference), padded to a lane-dense
    # multiple of 128 on the vocab axis.
    v_pad = max(128, ((tgt_vocab + 127) // 128) * 128)
    w_out = xavier((model_dim, tgt_vocab))                    # transposed vs nn.Linear.weight
    w_out = jnp.pad(w_out, ((0, 0), (0, v_pad - tgt_vocab))).astype(jnp.bfloat16)

    params = dict(
        src_embed=embedding(src_vocab, model_dim),
        tgt_embed=embedding(tgt_vocab, model_dim),
        src_pos=sinusoid_position_table(src_max_len, model_dim),
        tgt_pos=sinusoid_position_table(tgt_max_len, model_dim),
        enc_layers=[dict(attn=attn_params(model_dim, num_heads),
                         ffn=ffn_params(model_dim, ffn_dim))
                    for _ in range(num_layers)],
        dec_layers=[dict(self_attn=attn_params(model_dim, num_heads),
                         cross_attn=attn_params(model_dim, num_heads),
                         ffn=ffn_params(model_dim, ffn_dim))
                    for _ in range(num_layers)],
        w_out=w_out,
    )
    return params


# ----------------------------------------------------------------------------
# Main
# ----------------------------------------------------------------------------

if __name__ == "__main__":
    B = 2
    SRC_LEN = 8
    TGT_LEN = 8
    MODEL_DIM = 32
    NUM_HEADS = 4
    FFN_DIM = 64
    NUM_LAYERS = 2
    SRC_VOCAB = 16
    TGT_VOCAB = 16

    root = jax.random.PRNGKey(0)
    k_params, k_src, k_tgt = jax.random.split(root, 3)

    params = init_params(k_params, SRC_VOCAB, SRC_LEN, TGT_VOCAB, TGT_LEN,
                         NUM_LAYERS, MODEL_DIM, FFN_DIM, NUM_HEADS)

    src_len = jnp.array([SRC_LEN, 5], jnp.int32)
    tgt_len = jnp.array([TGT_LEN, 6], jnp.int32)
    src_tok = jax.random.randint(k_src, (B, SRC_LEN), 1, SRC_VOCAB)
    tgt_tok = jax.random.randint(k_tgt, (B, TGT_LEN), 1, TGT_VOCAB)
    src_seq = jnp.where(jnp.arange(SRC_LEN)[None, :] < src_len[:, None], src_tok, 0)
    tgt_seq = jnp.where(jnp.arange(TGT_LEN)[None, :] < tgt_len[:, None], tgt_tok, 0)

    out, enc_attn, dec_attn, ctx_attn = transformer_forward(
        params, src_seq, src_len, tgt_seq, tgt_len,
        num_heads=NUM_HEADS, tgt_vocab=TGT_VOCAB)
    out = jax.block_until_ready(out)

    assert out.shape == (B * TGT_LEN, TGT_VOCAB)
    assert bool(jnp.all(jnp.isfinite(out)))
    row_sums = jnp.sum(out, axis=-1)
    assert bool(jnp.allclose(row_sums, 1.0, atol=1e-3))       # exact final normalization
    assert len(enc_attn) == NUM_LAYERS and enc_attn[0].shape == (B * NUM_HEADS, SRC_LEN, SRC_LEN)
    assert len(dec_attn) == NUM_LAYERS and dec_attn[0].shape == (B * NUM_HEADS, TGT_LEN, TGT_LEN)
    assert len(ctx_attn) == NUM_LAYERS and ctx_attn[0].shape == (B * NUM_HEADS, TGT_LEN, SRC_LEN)

    print("KERNEL_OK")
</pallas_src>

<mosaic_0001>
module attributes {stable_mosaic.version = 11 : i64} {
  func.func @_mha_ln_kernel(%arg0: i32, %arg1: i32, %arg2: memref<1x8x32xf32, #tpu.memory_space<vmem>>, %arg3: memref<1x8x32xf32, #tpu.memory_space<vmem>>, %arg4: memref<1x1x8xi32, #tpu.memory_space<vmem>>, %arg5: memref<1x32x8xbf16, #tpu.memory_space<vmem>>, %arg6: memref<1x32x8xbf16, #tpu.memory_space<vmem>>, %arg7: memref<1x32x8xbf16, #tpu.memory_space<vmem>>, %arg8: memref<1x1x8xf32, #tpu.memory_space<vmem>>, %arg9: memref<1x1x8xf32, #tpu.memory_space<vmem>>, %arg10: memref<1x1x8xf32, #tpu.memory_space<vmem>>, %arg11: memref<1x8x32xbf16, #tpu.memory_space<vmem>>, %arg12: memref<1x32xf32, #tpu.memory_space<vmem>>, %arg13: memref<1x32xf32, #tpu.memory_space<vmem>>, %arg14: memref<1x32xf32, #tpu.memory_space<vmem>>, %arg15: memref<1x8x32xf32, #tpu.memory_space<vmem>>, %arg16: memref<1x1x8x8xbf16, #tpu.memory_space<vmem>>, %arg17: memref<8x8xf32, #tpu.memory_space<vmem>>, %arg18: memref<8x32xf32, #tpu.memory_space<vmem>>) attributes {dimension_semantics = [#tpu.dimension_semantics<parallel>, #tpu.dimension_semantics<arbitrary>], iteration_bounds = array<i64: 2, 4>, scalar_prefetch = 0 : i64, scratch_operands = 2 : i64, tpu.core_type = #tpu.core_type<tc>, window_params = [{transform_indices = @transform_0, window_bounds = array<i64: 1, 8, 32>}, {transform_indices = @transform_1, window_bounds = array<i64: 1, 8, 32>}, {transform_indices = @transform_2, window_bounds = array<i64: 1, 1, 8>}, {transform_indices = @transform_3, window_bounds = array<i64: 1, 32, 8>}, {transform_indices = @transform_4, window_bounds = array<i64: 1, 32, 8>}, {transform_indices = @transform_5, window_bounds = array<i64: 1, 32, 8>}, {transform_indices = @transform_6, window_bounds = array<i64: 1, 1, 8>}, {transform_indices = @transform_7, window_bounds = array<i64: 1, 1, 8>}, {transform_indices = @transform_8, window_bounds = array<i64: 1, 1, 8>}, {transform_indices = @transform_9, window_bounds = array<i64: 1, 8, 32>}, {pipeline_mode = #tpu.pipeline_mode<synchronous>, transform_indices = @transform_10, window_bounds = array<i64: 1, 32>}, {pipeline_mode = #tpu.pipeline_mode<synchronous>, transform_indices = @transform_11, window_bounds = array<i64: 1, 32>}, {pipeline_mode = #tpu.pipeline_mode<synchronous>, transform_indices = @transform_12, window_bounds = array<i64: 1, 32>}, {transform_indices = @transform_13, window_bounds = array<i64: 1, 8, 32>}, {transform_indices = @transform_14, window_bounds = array<i64: 1, 1, 8, 8>}]} {
    %c0 = arith.constant 0 : index
    %c0_0 = arith.constant 0 : index
    %c0_1 = arith.constant 0 : index
    %0 = vector.load %arg2[%c0, %c0_0, %c0_1] : memref<1x8x32xf32, #tpu.memory_space<vmem>>, vector<1x8x32xf32>
    %1 = vector.shape_cast %0 : vector<1x8x32xf32> to vector<8x32xf32>
    %c0_i32 = arith.constant 0 : i32
    %2 = arith.cmpi eq, %arg1, %c0_i32 : i32
    %3 = arith.extui %2 : i1 to i32
    %c0_i32_2 = arith.constant 0 : i32
    %4 = arith.cmpi ne, %3, %c0_i32_2 : i32
    scf.if %4 {
      %c0_45 = arith.constant 0 : index
      %c0_46 = arith.constant 0 : index
      %c0_47 = arith.constant 0 : index
      %61 = vector.load %arg4[%c0_45, %c0_46, %c0_47] : memref<1x1x8xi32, #tpu.memory_space<vmem>>, vector<1x1x8xi32>
      %62 = vector.shape_cast %61 : vector<1x1x8xi32> to vector<1x8xi32>
      %c0_i32_48 = arith.constant 0 : i32
      %63 = vector.broadcast %c0_i32_48 : i32 to vector<1x8xi32>
      %64 = arith.cmpi eq, %62, %63 : vector<1x8xi32>
      %cst_49 = arith.constant -1.000000e+09 : f32
      %cst_50 = arith.constant 0.000000e+00 : f32
      %65 = vector.broadcast %cst_49 : f32 to vector<1x8xf32>
      %66 = vector.broadcast %cst_50 : f32 to vector<1x8xf32>
      %67 = arith.select %64, %65, %66 : vector<1x8xi1>, vector<1x8xf32>
      %68 = vector.shape_cast %67 : vector<1x8xf32> to vector<1x8xf32>
      %69 = vector.broadcast %68 : vector<1x8xf32> to vector<8x8xf32>
      %c0_51 = arith.constant 0 : index
      %c0_52 = arith.constant 0 : index
      %70 = vector.load %arg17[%c0_51, %c0_52] : memref<8x8xf32, #tpu.memory_space<vmem>>, vector<8x8xf32>
      tpu.vector_store %arg17[%c0_51, %c0_52], %69 {strides = array<i32>} : memref<8x8xf32, #tpu.memory_space<vmem>>, vector<8x8xf32>,
      %cst_53 = arith.constant 0.000000e+00 : f32
      %71 = vector.broadcast %cst_53 : f32 to vector<8x32xf32>
      %c0_54 = arith.constant 0 : index
      %c0_55 = arith.constant 0 : index
      %72 = vector.load %arg18[%c0_54, %c0_55] : memref<8x32xf32, #tpu.memory_space<vmem>>, vector<8x32xf32>
      tpu.vector_store %arg18[%c0_54, %c0_55], %71 {strides = array<i32>} : memref<8x32xf32, #tpu.memory_space<vmem>>, vector<8x32xf32>,
    } else {
    }
    %5 = arith.truncf %1 : vector<8x32xf32> to vector<8x32xbf16>
    %c0_3 = arith.constant 0 : index
    %c0_4 = arith.constant 0 : index
    %c0_5 = arith.constant 0 : index
    %6 = vector.load %arg3[%c0_3, %c0_4, %c0_5] : memref<1x8x32xf32, #tpu.memory_space<vmem>>, vector<1x8x32xf32>
    %7 = vector.shape_cast %6 : vector<1x8x32xf32> to vector<8x32xf32>
    %8 = arith.truncf %7 : vector<8x32xf32> to vector<8x32xbf16>
    %c0_6 = arith.constant 0 : index
    %c0_7 = arith.constant 0 : index
    %c0_8 = arith.constant 0 : index
    %9 = vector.load %arg5[%c0_6, %c0_7, %c0_8] : memref<1x32x8xbf16, #tpu.memory_space<vmem>>, vector<1x32x8xbf16>
    %10 = vector.shape_cast %9 : vector<1x32x8xbf16> to vector<32x8xbf16>
    %cst = arith.constant dense<0.000000e+00> : vector<8x8xf32>
    %11 = tpu.matmul %5, %10, %cst {dimension_numbers = #tpu.dot_dimension_numbers<[1], [0], [0], [1], [0, 0, 1, 1], [], []>} : vector<8x32xbf16>, vector<32x8xbf16>, vector<8x8xf32> -> vector<8x8xf32>
    %c0_9 = arith.constant 0 : index
    %c0_10 = arith.constant 0 : index
    %c0_11 = arith.constant 0 : index
    %12 = vector.load %arg8[%c0_9, %c0_10, %c0_11] : memref<1x1x8xf32, #tpu.memory_space<vmem>>, vector<1x1x8xf32>
    %13 = vector.shape_cast %12 : vector<1x1x8xf32> to vector<1x8xf32>
    %14 = vector.broadcast %13 : vector<1x8xf32> to vector<8x8xf32>
    %15 = arith.addf %11, %14 : vector<8x8xf32>
    %c0_12 = arith.constant 0 : index
    %c0_13 = arith.constant 0 : index
    %c0_14 = arith.constant 0 : index
    %16 = vector.load %arg6[%c0_12, %c0_13, %c0_14] : memref<1x32x8xbf16, #tpu.memory_space<vmem>>, vector<1x32x8xbf16>
    %17 = vector.shape_cast %16 : vector<1x32x8xbf16> to vector<32x8xbf16>
    %cst_15 = arith.constant dense<0.000000e+00> : vector<8x8xf32>
    %18 = tpu.matmul %8, %17, %cst_15 {dimension_numbers = #tpu.dot_dimension_numbers<[1], [0], [0], [1], [0, 0, 1, 1], [], []>} : vector<8x32xbf16>, vector<32x8xbf16>, vector<8x8xf32> -> vector<8x8xf32>
    %c0_16 = arith.constant 0 : index
    %c0_17 = arith.constant 0 : index
    %c0_18 = arith.constant 0 : index
    %19 = vector.load %arg9[%c0_16, %c0_17, %c0_18] : memref<1x1x8xf32, #tpu.memory_space<vmem>>, vector<1x1x8xf32>
    %20 = vector.shape_cast %19 : vector<1x1x8xf32> to vector<1x8xf32>
    %21 = vector.broadcast %20 : vector<1x8xf32> to vector<8x8xf32>
    %22 = arith.addf %18, %21 : vector<8x8xf32>
    %c0_19 = arith.constant 0 : index
    %c0_20 = arith.constant 0 : index
    %c0_21 = arith.constant 0 : index
    %23 = vector.load %arg7[%c0_19, %c0_20, %c0_21] : memref<1x32x8xbf16, #tpu.memory_space<vmem>>, vector<1x32x8xbf16>
    %24 = vector.shape_cast %23 : vector<1x32x8xbf16> to vector<32x8xbf16>
    %cst_22 = arith.constant dense<0.000000e+00> : vector<8x8xf32>
    %25 = tpu.matmul %8, %24, %cst_22 {dimension_numbers = #tpu.dot_dimension_numbers<[1], [0], [0], [1], [0, 0, 1, 1], [], []>} : vector<8x32xbf16>, vector<32x8xbf16>, vector<8x8xf32> -> vector<8x8xf32>
    %c0_23 = arith.constant 0 : index
    %c0_24 = arith.constant 0 : index
    %c0_25 = arith.constant 0 : index
    %26 = vector.load %arg10[%c0_23, %c0_24, %c0_25] : memref<1x1x8xf32, #tpu.memory_space<vmem>>, vector<1x1x8xf32>
    %27 = vector.shape_cast %26 : vector<1x1x8xf32> to vector<1x8xf32>
    %28 = vector.broadcast %27 : vector<1x8xf32> to vector<8x8xf32>
    %29 = arith.addf %25, %28 : vector<8x8xf32>
    %30 = arith.truncf %15 : vector<8x8xf32> to vector<8x8xbf16>
    %31 = arith.truncf %22 : vector<8x8xf32> to vector<8x8xbf16>
    %cst_26 = arith.constant dense<0.000000e+00> : vector<8x8xf32>
    %32 = tpu.matmul %30, %31, %cst_26 {dimension_numbers = #tpu.dot_dimension_numbers<[1], [1], [0], [0], [0, 0, 1, 0], [], []>} : vector<8x8xbf16>, vector<8x8xbf16>, vector<8x8xf32> -> vector<8x8xf32>
    %c0_27 = arith.constant 0 : index
    %c0_28 = arith.constant 0 : index
    %33 = vector.load %arg17[%c0_27, %c0_28] : memref<8x8xf32, #tpu.memory_space<vmem>>, vector<8x8xf32>
    %34 = arith.addf %32, %33 : vector<8x8xf32>
    %cst_29 = arith.constant dense<0xFF800000> : vector<8xf32>
    %35 = vector.multi_reduction <maximumf>, %34, %cst_29 [1] : vector<8x8xf32> to vector<8xf32>
    %36 = vector.shape_cast %35 : vector<8xf32> to vector<8x1xf32>
    %37 = vector.broadcast %36 : vector<8x1xf32> to vector<8x8xf32>
    %38 = arith.subf %34, %37 : vector<8x8xf32>
    %39 = math.exp %38 : vector<8x8xf32>
    %cst_30 = arith.constant dense<0.000000e+00> : vector<8xf32>
    %40 = vector.multi_reduction <add>, %39, %cst_30 [1] : vector<8x8xf32> to vector<8xf32>
    %41 = vector.shape_cast %40 : vector<8xf32> to vector<8x1xf32>
    %42 = tpu.reciprocal %41 {approx = true} : vector<8x1xf32> -> vector<8x1xf32>
    %43 = vector.broadcast %42 : vector<8x1xf32> to vector<8x8xf32>
    %44 = arith.mulf %39, %43 : vector<8x8xf32>
    %45 = arith.truncf %44 : vector<8x8xf32> to vector<8x8xbf16>
    %c0_31 = arith.constant 0 : index
    %c0_32 = arith.constant 0 : index
    %c0_33 = arith.constant 0 : index
    %c0_34 = arith.constant 0 : index
    %46 = vector.load %arg16[%c0_31, %c0_32, %c0_33, %c0_34] : memref<1x1x8x8xbf16, #tpu.memory_space<vmem>>, vector<1x1x8x8xbf16>
    %47 = vector.shape_cast %46 : vector<1x1x8x8xbf16> to vector<8x8xbf16>
    %48 = vector.shape_cast %45 : vector<8x8xbf16> to vector<1x1x8x8xbf16>
    tpu.vector_store %arg16[%c0_31, %c0_32, %c0_33, %c0_34], %48 {strides = array<i32>} : memref<1x1x8x8xbf16, #tpu.memory_space<vmem>>, vector<1x1x8x8xbf16>,
    %49 = arith.truncf %29 : vector<8x8xf32> to vector<8x8xbf16>
    %cst_35 = arith.constant dense<0.000000e+00> : vector<8x8xf32>
    %50 = tpu.matmul %45, %49, %cst_35 {dimension_numbers = #tpu.dot_dimension_numbers<[1], [0], [0], [1], [0, 0, 1, 1], [], []>} : vector<8x8xbf16>, vector<8x8xbf16>, vector<8x8xf32> -> vector<8x8xf32>
    %c0_36 = arith.constant 0 : index
    %c0_37 = arith.constant 0 : index
    %51 = vector.load %arg18[%c0_36, %c0_37] : memref<8x32xf32, #tpu.memory_space<vmem>>, vector<8x32xf32>
    %52 = arith.truncf %50 : vector<8x8xf32> to vector<8x8xbf16>
    %c0_38 = arith.constant 0 : index
    %c0_39 = arith.constant 0 : index
    %c0_40 = arith.constant 0 : index
    %53 = vector.load %arg11[%c0_38, %c0_39, %c0_40] : memref<1x8x32xbf16, #tpu.memory_space<vmem>>, vector<1x8x32xbf16>
    %54 = vector.shape_cast %53 : vector<1x8x32xbf16> to vector<8x32xbf16>
    %cst_41 = arith.constant dense<0.000000e+00> : vector<8x32xf32>
    %55 = tpu.matmul %52, %54, %cst_41 {dimension_numbers = #tpu.dot_dimension_numbers<[1], [0], [0], [1], [0, 0, 1, 1], [], []>} : vector<8x8xbf16>, vector<8x32xbf16>, vector<8x32xf32> -> vector<8x32xf32>
    %56 = arith.addf %51, %55 : vector<8x32xf32>
    %c0_42 = arith.constant 0 : index
    %c0_43 = arith.constant 0 : index
    %57 = vector.load %arg18[%c0_42, %c0_43] : memref<8x32xf32, #tpu.memory_space<vmem>>, vector<8x32xf32>
    tpu.vector_store %arg18[%c0_42, %c0_43], %56 {strides = array<i32>} : memref<8x32xf32, #tpu.memory_space<vmem>>, vector<8x32xf32>,
    %c3_i32 = arith.constant 3 : i32
    %58 = arith.cmpi eq, %arg1, %c3_i32 : i32
    %59 = arith.extui %58 : i1 to i32
    %c0_i32_44 = arith.constant 0 : i32
    %60 = arith.cmpi ne, %59, %c0_i32_44 : i32
    scf.if %60 {
      %c0_45 = arith.constant 0 : index
      %c0_46 = arith.constant 0 : index
      %61 = vector.load %arg18[%c0_45, %c0_46] : memref<8x32xf32, #tpu.memory_space<vmem>>, vector<8x32xf32>
      %c0_47 = arith.constant 0 : index
      %c0_48 = arith.constant 0 : index
      %62 = vector.load %arg12[%c0_47, %c0_48] : memref<1x32xf32, #tpu.memory_space<vmem>>, vector<1x32xf32>
      %63 = vector.broadcast %62 : vector<1x32xf32> to vector<8x32xf32>
      %64 = arith.addf %61, %63 : vector<8x32xf32>
      %65 = arith.addf %64, %1 : vector<8x32xf32>
      %cst_49 = arith.constant dense<0.000000e+00> : vector<8xf32>
      %66 = vector.multi_reduction <add>, %65, %cst_49 [1] : vector<8x32xf32> to vector<8xf32>
      %67 = vector.shape_cast %66 : vector<8xf32> to vector<8x1xf32>
      %cst_50 = arith.constant 3.200000e+01 : f32
      %68 = vector.broadcast %cst_50 : f32 to vector<8x1xf32>
      %69 = arith.divf %67, %68 : vector<8x1xf32>
      %70 = vector.broadcast %69 : vector<8x1xf32> to vector<8x32xf32>
      %71 = arith.subf %65, %70 : vector<8x32xf32>
      %72 = arith.mulf %71, %71 : vector<8x32xf32>
      %cst_51 = arith.constant dense<0.000000e+00> : vector<8xf32>
      %73 = vector.multi_reduction <add>, %72, %cst_51 [1] : vector<8x32xf32> to vector<8xf32>
      %74 = vector.shape_cast %73 : vector<8xf32> to vector<8x1xf32>
      %cst_52 = arith.constant 3.200000e+01 : f32
      %75 = vector.broadcast %cst_52 : f32 to vector<8x1xf32>
      %76 = arith.divf %74, %75 : vector<8x1xf32>
      %77 = vector.broadcast %69 : vector<8x1xf32> to vector<8x32xf32>
      %78 = arith.subf %65, %77 : vector<8x32xf32>
      %cst_53 = arith.constant 9.99999974E-6 : f32
      %79 = vector.broadcast %cst_53 : f32 to vector<8x1xf32>
      %80 = arith.addf %76, %79 : vector<8x1xf32>
      %81 = math.rsqrt %80 : vector<8x1xf32>
      %82 = vector.broadcast %81 : vector<8x1xf32> to vector<8x32xf32>
      %83 = arith.mulf %78, %82 : vector<8x32xf32>
      %c0_54 = arith.constant 0 : index
      %c0_55 = arith.constant 0 : index
      %84 = vector.load %arg13[%c0_54, %c0_55] : memref<1x32xf32, #tpu.memory_space<vmem>>, vector<1x32xf32>
      %85 = vector.broadcast %84 : vector<1x32xf32> to vector<8x32xf32>
      %86 = arith.mulf %83, %85 : vector<8x32xf32>
      %c0_56 = arith.constant 0 : index
      %c0_57 = arith.constant 0 : index
      %87 = vector.load %arg14[%c0_56, %c0_57] : memref<1x32xf32, #tpu.memory_space<vmem>>, vector<1x32xf32>
      %88 = vector.broadcast %87 : vector<1x32xf32> to vector<8x32xf32>
      %89 = arith.addf %86, %88 : vector<8x32xf32>
      %c0_58 = arith.constant 0 : index
      %c0_59 = arith.constant 0 : index
      %c0_60 = arith.constant 0 : index
      %90 = vector.load %arg15[%c0_58, %c0_59, %c0_60] : memref<1x8x32xf32, #tpu.memory_space<vmem>>, vector<1x8x32xf32>
      %91 = vector.shape_cast %90 : vector<1x8x32xf32> to vector<8x32xf32>
      %92 = vector.shape_cast %89 : vector<8x32xf32> to vector<1x8x32xf32>
      tpu.vector_store %arg15[%c0_58, %c0_59, %c0_60], %92 {strides = array<i32>} : memref<1x8x32xf32, #tpu.memory_space<vmem>>, vector<1x8x32xf32>,
    } else {
    }
    return
  }
  func.func @transform_0(%arg0: i32, %arg1: i32) -> (i32, i32, i32) {
    %c0_i32 = arith.constant 0 : i32
    %c0_i32_0 = arith.constant 0 : i32
    %c0_i32_1 = arith.constant 0 : i32
    return %arg0, %c0_i32, %c0_i32_0 : i32, i32, i32
  }
  func.func @transform_1(%arg0: i32, %arg1: i32) -> (i32, i32, i32) {
    %c0_i32 = arith.constant 0 : i32
    %c0_i32_0 = arith.constant 0 : i32
    %c0_i32_1 = arith.constant 0 : i32
    return %arg0, %c0_i32, %c0_i32_0 : i32, i32, i32
  }
  func.func @transform_2(%arg0: i32, %arg1: i32) -> (i32, i32, i32) {
    %c0_i32 = arith.constant 0 : i32
    %c0_i32_0 = arith.constant 0 : i32
    %c0_i32_1 = arith.constant 0 : i32
    return %arg0, %c0_i32, %c0_i32_0 : i32, i32, i32
  }
  func.func @transform_3(%arg0: i32, %arg1: i32) -> (i32, i32, i32) {
    %c0_i32 = arith.constant 0 : i32
    %c0_i32_0 = arith.constant 0 : i32
    %c0_i32_1 = arith.constant 0 : i32
    return %arg1, %c0_i32, %c0_i32_0 : i32, i32, i32
  }
  func.func @transform_4(%arg0: i32, %arg1: i32) -> (i32, i32, i32) {
    %c0_i32 = arith.constant 0 : i32
    %c0_i32_0 = arith.constant 0 : i32
    %c0_i32_1 = arith.constant 0 : i32
    return %arg1, %c0_i32, %c0_i32_0 : i32, i32, i32
  }
  func.func @transform_5(%arg0: i32, %arg1: i32) -> (i32, i32, i32) {
    %c0_i32 = arith.constant 0 : i32
    %c0_i32_0 = arith.constant 0 : i32
    %c0_i32_1 = arith.constant 0 : i32
    return %arg1, %c0_i32, %c0_i32_0 : i32, i32, i32
  }
  func.func @transform_6(%arg0: i32, %arg1: i32) -> (i32, i32, i32) {
    %c0_i32 = arith.constant 0 : i32
    %c0_i32_0 = arith.constant 0 : i32
    %c0_i32_1 = arith.constant 0 : i32
    return %arg1, %c0_i32, %c0_i32_0 : i32, i32, i32
  }
  func.func @transform_7(%arg0: i32, %arg1: i32) -> (i32, i32, i32) {
    %c0_i32 = arith.constant 0 : i32
    %c0_i32_0 = arith.constant 0 : i32
    %c0_i32_1 = arith.constant 0 : i32
    return %arg1, %c0_i32, %c0_i32_0 : i32, i32, i32
  }
  func.func @transform_8(%arg0: i32, %arg1: i32) -> (i32, i32, i32) {
    %c0_i32 = arith.constant 0 : i32
    %c0_i32_0 = arith.constant 0 : i32
    %c0_i32_1 = arith.constant 0 : i32
    return %arg1, %c0_i32, %c0_i32_0 : i32, i32, i32
  }
  func.func @transform_9(%arg0: i32, %arg1: i32) -> (i32, i32, i32) {
    %c0_i32 = arith.constant 0 : i32
    %c0_i32_0 = arith.constant 0 : i32
    %c0_i32_1 = arith.constant 0 : i32
    return %arg1, %c0_i32, %c0_i32_0 : i32, i32, i32
  }
  func.func @transform_10(%arg0: i32, %arg1: i32) -> (i32, i32) {
    %c0_i32 = arith.constant 0 : i32
    %c0_i32_0 = arith.constant 0 : i32
    %c0_i32_1 = arith.constant 0 : i32
    return %c0_i32, %c0_i32_0 : i32, i32
  }
  func.func @transform_11(%arg0: i32, %arg1: i32) -> (i32, i32) {
    %c0_i32 = arith.constant 0 : i32
    %c0_i32_0 = arith.constant 0 : i32
    %c0_i32_1 = arith.constant 0 : i32
    return %c0_i32, %c0_i32_0 : i32, i32
  }
  func.func @transform_12(%arg0: i32, %arg1: i32) -> (i32, i32) {
    %c0_i32 = arith.constant 0 : i32
    %c0_i32_0 = arith.constant 0 : i32
    %c0_i32_1 = arith.constant 0 : i32
    return %c0_i32, %c0_i32_0 : i32, i32
  }
  func.func @transform_13(%arg0: i32, %arg1: i32) -> (i32, i32, i32) {
    %c0_i32 = arith.constant 0 : i32
    %c0_i32_0 = arith.constant 0 : i32
    %c0_i32_1 = arith.constant 0 : i32
    return %arg0, %c0_i32, %c0_i32_0 : i32, i32, i32
  }
  func.func @transform_14(%arg0: i32, %arg1: i32) -> (i32, i32, i32, i32) {
    %c0_i32 = arith.constant 0 : i32
    %c0_i32_0 = arith.constant 0 : i32
    %c0_i32_1 = arith.constant 0 : i32
    return %arg0, %arg1, %c0_i32, %c0_i32_0 : i32, i32, i32, i32
  }
}

module attributes {stable_mosaic.version = 11 : i64} {
  func.func @_ffn_ln_kernel(%arg0: i32, %arg1: memref<8x32xf32, #tpu.memory_space<vmem>>, %arg2: memref<32x64xbf16, #tpu.memory_space<vmem>>, %arg3: memref<1x64xf32, #tpu.memory_space<vmem>>, %arg4: memref<64x32xbf16, #tpu.memory_space<vmem>>, %arg5: memref<1x32xf32, #tpu.memory_space<vmem>>, %arg6: memref<1x32xf32, #tpu.memory_space<vmem>>, %arg7: memref<1x32xf32, #tpu.memory_space<vmem>>, %arg8: memref<8x32xf32, #tpu.memory_space<vmem>>) attributes {dimension_semantics = [#tpu.dimension_semantics<parallel>], iteration_bounds = array<i64: 2>, scalar_prefetch = 0 : i64, scratch_operands = 0 : i64, tpu.core_type = #tpu.core_type<tc>, window_params = [{transform_indices = @transform_0, window_bounds = array<i64: 8, 32>}, {pipeline_mode = #tpu.pipeline_mode<synchronous>, transform_indices = @transform_1, window_bounds = array<i64: 32, 64>}, {pipeline_mode = #tpu.pipeline_mode<synchronous>, transform_indices = @transform_2, window_bounds = array<i64: 1, 64>}, {pipeline_mode = #tpu.pipeline_mode<synchronous>, transform_indices = @transform_3, window_bounds = array<i64: 64, 32>}, {pipeline_mode = #tpu.pipeline_mode<synchronous>, transform_indices = @transform_4, window_bounds = array<i64: 1, 32>}, {pipeline_mode = #tpu.pipeline_mode<synchronous>, transform_indices = @transform_5, window_bounds = array<i64: 1, 32>}, {pipeline_mode = #tpu.pipeline_mode<synchronous>, transform_indices = @transform_6, window_bounds = array<i64: 1, 32>}, {transform_indices = @transform_7, window_bounds = array<i64: 8, 32>}]} {
    %c0 = arith.constant 0 : index
    %c0_0 = arith.constant 0 : index
    %0 = vector.load %arg1[%c0, %c0_0] : memref<8x32xf32, #tpu.memory_space<vmem>>, vector<8x32xf32>
    %1 = arith.truncf %0 : vector<8x32xf32> to vector<8x32xbf16>
    %c0_1 = arith.constant 0 : index
    %c0_2 = arith.constant 0 : index
    %2 = vector.load %arg2[%c0_1, %c0_2] : memref<32x64xbf16, #tpu.memory_space<vmem>>, vector<32x64xbf16>
    %cst = arith.constant dense<0.000000e+00> : vector<8x64xf32>
    %3 = tpu.matmul %1, %2, %cst {dimension_numbers = #tpu.dot_dimension_numbers<[1], [0], [0], [1], [0, 0, 1, 1], [], []>} : vector<8x32xbf16>, vector<32x64xbf16>, vector<8x64xf32> -> vector<8x64xf32>
    %c0_3 = arith.constant 0 : index
    %c0_4 = arith.constant 0 : index
    %4 = vector.load %arg3[%c0_3, %c0_4] : memref<1x64xf32, #tpu.memory_space<vmem>>, vector<1x64xf32>
    %5 = vector.broadcast %4 : vector<1x64xf32> to vector<8x64xf32>
    %6 = arith.addf %3, %5 : vector<8x64xf32>
    %cst_5 = arith.constant 0.000000e+00 : f32
    %7 = vector.broadcast %cst_5 : f32 to vector<8x64xf32>
    %8 = arith.maximumf %6, %7 : vector<8x64xf32>
    %9 = arith.truncf %8 : vector<8x64xf32> to vector<8x64xbf16>
    %c0_6 = arith.constant 0 : index
    %c0_7 = arith.constant 0 : index
    %10 = vector.load %arg4[%c0_6, %c0_7] : memref<64x32xbf16, #tpu.memory_space<vmem>>, vector<64x32xbf16>
    %cst_8 = arith.constant dense<0.000000e+00> : vector<8x32xf32>
    %11 = tpu.matmul %9, %10, %cst_8 {dimension_numbers = #tpu.dot_dimension_numbers<[1], [0], [0], [1], [0, 0, 1, 1], [], []>} : vector<8x64xbf16>, vector<64x32xbf16>, vector<8x32xf32> -> vector<8x32xf32>
    %c0_9 = arith.constant 0 : index
    %c0_10 = arith.constant 0 : index
    %12 = vector.load %arg5[%c0_9, %c0_10] : memref<1x32xf32, #tpu.memory_space<vmem>>, vector<1x32xf32>
    %13 = vector.broadcast %12 : vector<1x32xf32> to vector<8x32xf32>
    %14 = arith.addf %11, %13 : vector<8x32xf32>
    %15 = arith.addf %14, %0 : vector<8x32xf32>
    %cst_11 = arith.constant dense<0.000000e+00> : vector<8xf32>
    %16 = vector.multi_reduction <add>, %15, %cst_11 [1] : vector<8x32xf32> to vector<8xf32>
    %17 = vector.shape_cast %16 : vector<8xf32> to vector<8x1xf32>
    %cst_12 = arith.constant 3.200000e+01 : f32
    %18 = vector.broadcast %cst_12 : f32 to vector<8x1xf32>
    %19 = arith.divf %17, %18 : vector<8x1xf32>
    %20 = vector.broadcast %19 : vector<8x1xf32> to vector<8x32xf32>
    %21 = arith.subf %15, %20 : vector<8x32xf32>
    %22 = arith.mulf %21, %21 : vector<8x32xf32>
    %cst_13 = arith.constant dense<0.000000e+00> : vector<8xf32>
    %23 = vector.multi_reduction <add>, %22, %cst_13 [1] : vector<8x32xf32> to vector<8xf32>
    %24 = vector.shape_cast %23 : vector<8xf32> to vector<8x1xf32>
    %cst_14 = arith.constant 3.200000e+01 : f32
    %25 = vector.broadcast %cst_14 : f32 to vector<8x1xf32>
    %26 = arith.divf %24, %25 : vector<8x1xf32>
    %27 = vector.broadcast %19 : vector<8x1xf32> to vector<8x32xf32>
    %28 = arith.subf %15, %27 : vector<8x32xf32>
    %cst_15 = arith.constant 9.99999974E-6 : f32
    %29 = vector.broadcast %cst_15 : f32 to vector<8x1xf32>
    %30 = arith.addf %26, %29 : vector<8x1xf32>
    %31 = math.rsqrt %30 : vector<8x1xf32>
    %32 = vector.broadcast %31 : vector<8x1xf32> to vector<8x32xf32>
    %33 = arith.mulf %28, %32 : vector<8x32xf32>
    %c0_16 = arith.constant 0 : index
    %c0_17 = arith.constant 0 : index
    %34 = vector.load %arg6[%c0_16, %c0_17] : memref<1x32xf32, #tpu.memory_space<vmem>>, vector<1x32xf32>
    %35 = vector.broadcast %34 : vector<1x32xf32> to vector<8x32xf32>
    %36 = arith.mulf %33, %35 : vector<8x32xf32>
    %c0_18 = arith.constant 0 : index
    %c0_19 = arith.constant 0 : index
    %37 = vector.load %arg7[%c0_18, %c0_19] : memref<1x32xf32, #tpu.memory_space<vmem>>, vector<1x32xf32>
    %38 = vector.broadcast %37 : vector<1x32xf32> to vector<8x32xf32>
    %39 = arith.addf %36, %38 : vector<8x32xf32>
    %c0_20 = arith.constant 0 : index
    %c0_21 = arith.constant 0 : index
    %40 = vector.load %arg8[%c0_20, %c0_21] : memref<8x32xf32, #tpu.memory_space<vmem>>, vector<8x32xf32>
    tpu.vector_store %arg8[%c0_20, %c0_21], %39 {strides = array<i32>} : memref<8x32xf32, #tpu.memory_space<vmem>>, vector<8x32xf32>,
    return
  }
  func.func @transform_0(%arg0: i32) -> (i32, i32) {
    %c0_i32 = arith.constant 0 : i32
    %c0_i32_0 = arith.constant 0 : i32
    return %arg0, %c0_i32 : i32, i32
  }
  func.func @transform_1(%arg0: i32) -> (i32, i32) {
    %c0_i32 = arith.constant 0 : i32
    %c0_i32_0 = arith.constant 0 : i32
    %c0_i32_1 = arith.constant 0 : i32
    return %c0_i32, %c0_i32_0 : i32, i32
  }
  func.func @transform_2(%arg0: i32) -> (i32, i32) {
    %c0_i32 = arith.constant 0 : i32
    %c0_i32_0 = arith.constant 0 : i32
    %c0_i32_1 = arith.constant 0 : i32
    return %c0_i32, %c0_i32_0 : i32, i32
  }
  func.func @transform_3(%arg0: i32) -> (i32, i32) {
    %c0_i32 = arith.constant 0 : i32
    %c0_i32_0 = arith.constant 0 : i32
    %c0_i32_1 = arith.constant 0 : i32
    return %c0_i32, %c0_i32_0 : i32, i32
  }
  func.func @transform_4(%arg0: i32) -> (i32, i32) {
    %c0_i32 = arith.constant 0 : i32
    %c0_i32_0 = arith.constant 0 : i32
    %c0_i32_1 = arith.constant 0 : i32
    return %c0_i32, %c0_i32_0 : i32, i32
  }
  func.func @transform_5(%arg0: i32) -> (i32, i32) {
    %c0_i32 = arith.constant 0 : i32
    %c0_i32_0 = arith.constant 0 : i32
    %c0_i32_1 = arith.constant 0 : i32
    return %c0_i32, %c0_i32_0 : i32, i32
  }
  func.func @transform_6(%arg0: i32) -> (i32, i32) {
    %c0_i32 = arith.constant 0 : i32
    %c0_i32_0 = arith.constant 0 : i32
    %c0_i32_1 = arith.constant 0 : i32
    return %c0_i32, %c0_i32_0 : i32, i32
  }
  func.func @transform_7(%arg0: i32) -> (i32, i32) {
    %c0_i32 = arith.constant 0 : i32
    %c0_i32_0 = arith.constant 0 : i32
    return %arg0, %c0_i32 : i32, i32
  }
}

module attributes {stable_mosaic.version = 11 : i64} {
  func.func @_mha_ln_kernel(%arg0: i32, %arg1: i32, %arg2: memref<1x8x32xf32, #tpu.memory_space<vmem>>, %arg3: memref<1x8x32xf32, #tpu.memory_space<vmem>>, %arg4: memref<1x1x8xi32, #tpu.memory_space<vmem>>, %arg5: memref<1x32x8xbf16, #tpu.memory_space<vmem>>, %arg6: memref<1x32x8xbf16, #tpu.memory_space<vmem>>, %arg7: memref<1x32x8xbf16, #tpu.memory_space<vmem>>, %arg8: memref<1x1x8xf32, #tpu.memory_space<vmem>>, %arg9: memref<1x1x8xf32, #tpu.memory_space<vmem>>, %arg10: memref<1x1x8xf32, #tpu.memory_space<vmem>>, %arg11: memref<1x8x32xbf16, #tpu.memory_space<vmem>>, %arg12: memref<1x32xf32, #tpu.memory_space<vmem>>, %arg13: memref<1x32xf32, #tpu.memory_space<vmem>>, %arg14: memref<1x32xf32, #tpu.memory_space<vmem>>, %arg15: memref<1x8x32xf32, #tpu.memory_space<vmem>>, %arg16: memref<1x1x8x8xbf16, #tpu.memory_space<vmem>>, %arg17: memref<8x8xf32, #tpu.memory_space<vmem>>, %arg18: memref<8x32xf32, #tpu.memory_space<vmem>>) attributes {dimension_semantics = [#tpu.dimension_semantics<parallel>, #tpu.dimension_semantics<arbitrary>], iteration_bounds = array<i64: 2, 4>, scalar_prefetch = 0 : i64, scratch_operands = 2 : i64, tpu.core_type = #tpu.core_type<tc>, window_params = [{transform_indices = @transform_0, window_bounds = array<i64: 1, 8, 32>}, {transform_indices = @transform_1, window_bounds = array<i64: 1, 8, 32>}, {transform_indices = @transform_2, window_bounds = array<i64: 1, 1, 8>}, {transform_indices = @transform_3, window_bounds = array<i64: 1, 32, 8>}, {transform_indices = @transform_4, window_bounds = array<i64: 1, 32, 8>}, {transform_indices = @transform_5, window_bounds = array<i64: 1, 32, 8>}, {transform_indices = @transform_6, window_bounds = array<i64: 1, 1, 8>}, {transform_indices = @transform_7, window_bounds = array<i64: 1, 1, 8>}, {transform_indices = @transform_8, window_bounds = array<i64: 1, 1, 8>}, {transform_indices = @transform_9, window_bounds = array<i64: 1, 8, 32>}, {pipeline_mode = #tpu.pipeline_mode<synchronous>, transform_indices = @transform_10, window_bounds = array<i64: 1, 32>}, {pipeline_mode = #tpu.pipeline_mode<synchronous>, transform_indices = @transform_11, window_bounds = array<i64: 1, 32>}, {pipeline_mode = #tpu.pipeline_mode<synchronous>, transform_indices = @transform_12, window_bounds = array<i64: 1, 32>}, {transform_indices = @transform_13, window_bounds = array<i64: 1, 8, 32>}, {transform_indices = @transform_14, window_bounds = array<i64: 1, 1, 8, 8>}]} {
    %c0 = arith.constant 0 : index
    %c0_0 = arith.constant 0 : index
    %c0_1 = arith.constant 0 : index
    %0 = vector.load %arg2[%c0, %c0_0, %c0_1] : memref<1x8x32xf32, #tpu.memory_space<vmem>>, vector<1x8x32xf32>
    %1 = vector.shape_cast %0 : vector<1x8x32xf32> to vector<8x32xf32>
    %c0_i32 = arith.constant 0 : i32
    %2 = arith.cmpi eq, %arg1, %c0_i32 : i32
    %3 = arith.extui %2 : i1 to i32
    %c0_i32_2 = arith.constant 0 : i32
    %4 = arith.cmpi ne, %3, %c0_i32_2 : i32
    scf.if %4 {
      %c0_45 = arith.constant 0 : index
      %c0_46 = arith.constant 0 : index
      %c0_47 = arith.constant 0 : index
      %61 = vector.load %arg4[%c0_45, %c0_46, %c0_47] : memref<1x1x8xi32, #tpu.memory_space<vmem>>, vector<1x1x8xi32>
      %62 = vector.shape_cast %61 : vector<1x1x8xi32> to vector<1x8xi32>
      %c0_i32_48 = arith.constant 0 : i32
      %63 = vector.broadcast %c0_i32_48 : i32 to vector<1x8xi32>
      %64 = arith.cmpi eq, %62, %63 : vector<1x8xi32>
      %cst_49 = arith.constant -1.000000e+09 : f32
      %cst_50 = arith.constant 0.000000e+00 : f32
      %65 = vector.broadcast %cst_49 : f32 to vector<1x8xf32>
      %66 = vector.broadcast %cst_50 : f32 to vector<1x8xf32>
      %67 = arith.select %64, %65, %66 : vector<1x8xi1>, vector<1x8xf32>
      %68 = vector.shape_cast %67 : vector<1x8xf32> to vector<1x8xf32>
      %69 = vector.broadcast %68 : vector<1x8xf32> to vector<8x8xf32>
      %70 = tpu.iota {dimensions = array<i32: 0>} : vector<8x8xi32>
      %71 = tpu.iota {dimensions = array<i32: 1>} : vector<8x8xi32>
      %72 = arith.cmpi sgt, %71, %70 : vector<8x8xi32>
      %cst_51 = arith.constant -1.000000e+09 : f32
      %73 = vector.broadcast %cst_51 : f32 to vector<8x8xf32>
      %74 = arith.select %72, %73, %69 : vector<8x8xi1>, vector<8x8xf32>
      %c0_52 = arith.constant 0 : index
      %c0_53 = arith.constant 0 : index
      %75 = vector.load %arg17[%c0_52, %c0_53] : memref<8x8xf32, #tpu.memory_space<vmem>>, vector<8x8xf32>
      tpu.vector_store %arg17[%c0_52, %c0_53], %74 {strides = array<i32>} : memref<8x8xf32, #tpu.memory_space<vmem>>, vector<8x8xf32>,
      %cst_54 = arith.constant 0.000000e+00 : f32
      %76 = vector.broadcast %cst_54 : f32 to vector<8x32xf32>
      %c0_55 = arith.constant 0 : index
      %c0_56 = arith.constant 0 : index
      %77 = vector.load %arg18[%c0_55, %c0_56] : memref<8x32xf32, #tpu.memory_space<vmem>>, vector<8x32xf32>
      tpu.vector_store %arg18[%c0_55, %c0_56], %76 {strides = array<i32>} : memref<8x32xf32, #tpu.memory_space<vmem>>, vector<8x32xf32>,
    } else {
    }
    %5 = arith.truncf %1 : vector<8x32xf32> to vector<8x32xbf16>
    %c0_3 = arith.constant 0 : index
    %c0_4 = arith.constant 0 : index
    %c0_5 = arith.constant 0 : index
    %6 = vector.load %arg3[%c0_3, %c0_4, %c0_5] : memref<1x8x32xf32, #tpu.memory_space<vmem>>, vector<1x8x32xf32>
    %7 = vector.shape_cast %6 : vector<1x8x32xf32> to vector<8x32xf32>
    %8 = arith.truncf %7 : vector<8x32xf32> to vector<8x32xbf16>
    %c0_6 = arith.constant 0 : index
    %c0_7 = arith.constant 0 : index
    %c0_8 = arith.constant 0 : index
    %9 = vector.load %arg5[%c0_6, %c0_7, %c0_8] : memref<1x32x8xbf16, #tpu.memory_space<vmem>>, vector<1x32x8xbf16>
    %10 = vector.shape_cast %9 : vector<1x32x8xbf16> to vector<32x8xbf16>
    %cst = arith.constant dense<0.000000e+00> : vector<8x8xf32>
    %11 = tpu.matmul %5, %10, %cst {dimension_numbers = #tpu.dot_dimension_numbers<[1], [0], [0], [1], [0, 0, 1, 1], [], []>} : vector<8x32xbf16>, vector<32x8xbf16>, vector<8x8xf32> -> vector<8x8xf32>
    %c0_9 = arith.constant 0 : index
    %c0_10 = arith.constant 0 : index
    %c0_11 = arith.constant 0 : index
    %12 = vector.load %arg8[%c0_9, %c0_10, %c0_11] : memref<1x1x8xf32, #tpu.memory_space<vmem>>, vector<1x1x8xf32>
    %13 = vector.shape_cast %12 : vector<1x1x8xf32> to vector<1x8xf32>
    %14 = vector.broadcast %13 : vector<1x8xf32> to vector<8x8xf32>
    %15 = arith.addf %11, %14 : vector<8x8xf32>
    %c0_12 = arith.constant 0 : index
    %c0_13 = arith.constant 0 : index
    %c0_14 = arith.constant 0 : index
    %16 = vector.load %arg6[%c0_12, %c0_13, %c0_14] : memref<1x32x8xbf16, #tpu.memory_space<vmem>>, vector<1x32x8xbf16>
    %17 = vector.shape_cast %16 : vector<1x32x8xbf16> to vector<32x8xbf16>
    %cst_15 = arith.constant dense<0.000000e+00> : vector<8x8xf32>
    %18 = tpu.matmul %8, %17, %cst_15 {dimension_numbers = #tpu.dot_dimension_numbers<[1], [0], [0], [1], [0, 0, 1, 1], [], []>} : vector<8x32xbf16>, vector<32x8xbf16>, vector<8x8xf32> -> vector<8x8xf32>
    %c0_16 = arith.constant 0 : index
    %c0_17 = arith.constant 0 : index
    %c0_18 = arith.constant 0 : index
    %19 = vector.load %arg9[%c0_16, %c0_17, %c0_18] : memref<1x1x8xf32, #tpu.memory_space<vmem>>, vector<1x1x8xf32>
    %20 = vector.shape_cast %19 : vector<1x1x8xf32> to vector<1x8xf32>
    %21 = vector.broadcast %20 : vector<1x8xf32> to vector<8x8xf32>
    %22 = arith.addf %18, %21 : vector<8x8xf32>
    %c0_19 = arith.constant 0 : index
    %c0_20 = arith.constant 0 : index
    %c0_21 = arith.constant 0 : index
    %23 = vector.load %arg7[%c0_19, %c0_20, %c0_21] : memref<1x32x8xbf16, #tpu.memory_space<vmem>>, vector<1x32x8xbf16>
    %24 = vector.shape_cast %23 : vector<1x32x8xbf16> to vector<32x8xbf16>
    %cst_22 = arith.constant dense<0.000000e+00> : vector<8x8xf32>
    %25 = tpu.matmul %8, %24, %cst_22 {dimension_numbers = #tpu.dot_dimension_numbers<[1], [0], [0], [1], [0, 0, 1, 1], [], []>} : vector<8x32xbf16>, vector<32x8xbf16>, vector<8x8xf32> -> vector<8x8xf32>
    %c0_23 = arith.constant 0 : index
    %c0_24 = arith.constant 0 : index
    %c0_25 = arith.constant 0 : index
    %26 = vector.load %arg10[%c0_23, %c0_24, %c0_25] : memref<1x1x8xf32, #tpu.memory_space<vmem>>, vector<1x1x8xf32>
    %27 = vector.shape_cast %26 : vector<1x1x8xf32> to vector<1x8xf32>
    %28 = vector.broadcast %27 : vector<1x8xf32> to vector<8x8xf32>
    %29 = arith.addf %25, %28 : vector<8x8xf32>
    %30 = arith.truncf %15 : vector<8x8xf32> to vector<8x8xbf16>
    %31 = arith.truncf %22 : vector<8x8xf32> to vector<8x8xbf16>
    %cst_26 = arith.constant dense<0.000000e+00> : vector<8x8xf32>
    %32 = tpu.matmul %30, %31, %cst_26 {dimension_numbers = #tpu.dot_dimension_numbers<[1], [1], [0], [0], [0, 0, 1, 0], [], []>} : vector<8x8xbf16>, vector<8x8xbf16>, vector<8x8xf32> -> vector<8x8xf32>
    %c0_27 = arith.constant 0 : index
    %c0_28 = arith.constant 0 : index
    %33 = vector.load %arg17[%c0_27, %c0_28] : memref<8x8xf32, #tpu.memory_space<vmem>>, vector<8x8xf32>
    %34 = arith.addf %32, %33 : vector<8x8xf32>
    %cst_29 = arith.constant dense<0xFF800000> : vector<8xf32>
    %35 = vector.multi_reduction <maximumf>, %34, %cst_29 [1] : vector<8x8xf32> to vector<8xf32>
    %36 = vector.shape_cast %35 : vector<8xf32> to vector<8x1xf32>
    %37 = vector.broadcast %36 : vector<8x1xf32> to vector<8x8xf32>
    %38 = arith.subf %34, %37 : vector<8x8xf32>
    %39 = math.exp %38 : vector<8x8xf32>
    %cst_30 = arith.constant dense<0.000000e+00> : vector<8xf32>
    %40 = vector.multi_reduction <add>, %39, %cst_30 [1] : vector<8x8xf32> to vector<8xf32>
    %41 = vector.shape_cast %40 : vector<8xf32> to vector<8x1xf32>
    %42 = tpu.reciprocal %41 {approx = true} : vector<8x1xf32> -> vector<8x1xf32>
    %43 = vector.broadcast %42 : vector<8x1xf32> to vector<8x8xf32>
    %44 = arith.mulf %39, %43 : vector<8x8xf32>
    %45 = arith.truncf %44 : vector<8x8xf32> to vector<8x8xbf16>
    %c0_31 = arith.constant 0 : index
    %c0_32 = arith.constant 0 : index
    %c0_33 = arith.constant 0 : index
    %c0_34 = arith.constant 0 : index
    %46 = vector.load %arg16[%c0_31, %c0_32, %c0_33, %c0_34] : memref<1x1x8x8xbf16, #tpu.memory_space<vmem>>, vector<1x1x8x8xbf16>
    %47 = vector.shape_cast %46 : vector<1x1x8x8xbf16> to vector<8x8xbf16>
    %48 = vector.shape_cast %45 : vector<8x8xbf16> to vector<1x1x8x8xbf16>
    tpu.vector_store %arg16[%c0_31, %c0_32, %c0_33, %c0_34], %48 {strides = array<i32>} : memref<1x1x8x8xbf16, #tpu.memory_space<vmem>>, vector<1x1x8x8xbf16>,
    %49 = arith.truncf %29 : vector<8x8xf32> to vector<8x8xbf16>
    %cst_35 = arith.constant dense<0.000000e+00> : vector<8x8xf32>
    %50 = tpu.matmul %45, %49, %cst_35 {dimension_numbers = #tpu.dot_dimension_numbers<[1], [0], [0], [1], [0, 0, 1, 1], [], []>} : vector<8x8xbf16>, vector<8x8xbf16>, vector<8x8xf32> -> vector<8x8xf32>
    %c0_36 = arith.constant 0 : index
    %c0_37 = arith.constant 0 : index
    %51 = vector.load %arg18[%c0_36, %c0_37] : memref<8x32xf32, #tpu.memory_space<vmem>>, vector<8x32xf32>
    %52 = arith.truncf %50 : vector<8x8xf32> to vector<8x8xbf16>
    %c0_38 = arith.constant 0 : index
    %c0_39 = arith.constant 0 : index
    %c0_40 = arith.constant 0 : index
    %53 = vector.load %arg11[%c0_38, %c0_39, %c0_40] : memref<1x8x32xbf16, #tpu.memory_space<vmem>>, vector<1x8x32xbf16>
    %54 = vector.shape_cast %53 : vector<1x8x32xbf16> to vector<8x32xbf16>
    %cst_41 = arith.constant dense<0.000000e+00> : vector<8x32xf32>
    %55 = tpu.matmul %52, %54, %cst_41 {dimension_numbers = #tpu.dot_dimension_numbers<[1], [0], [0], [1], [0, 0, 1, 1], [], []>} : vector<8x8xbf16>, vector<8x32xbf16>, vector<8x32xf32> -> vector<8x32xf32>
    %56 = arith.addf %51, %55 : vector<8x32xf32>
    %c0_42 = arith.constant 0 : index
    %c0_43 = arith.constant 0 : index
    %57 = vector.load %arg18[%c0_42, %c0_43] : memref<8x32xf32, #tpu.memory_space<vmem>>, vector<8x32xf32>
    tpu.vector_store %arg18[%c0_42, %c0_43], %56 {strides = array<i32>} : memref<8x32xf32, #tpu.memory_space<vmem>>, vector<8x32xf32>,
    %c3_i32 = arith.constant 3 : i32
    %58 = arith.cmpi eq, %arg1, %c3_i32 : i32
    %59 = arith.extui %58 : i1 to i32
    %c0_i32_44 = arith.constant 0 : i32
    %60 = arith.cmpi ne, %59, %c0_i32_44 : i32
    scf.if %60 {
      %c0_45 = arith.constant 0 : index
      %c0_46 = arith.constant 0 : index
      %61 = vector.load %arg18[%c0_45, %c0_46] : memref<8x32xf32, #tpu.memory_space<vmem>>, vector<8x32xf32>
      %c0_47 = arith.constant 0 : index
      %c0_48 = arith.constant 0 : index
      %62 = vector.load %arg12[%c0_47, %c0_48] : memref<1x32xf32, #tpu.memory_space<vmem>>, vector<1x32xf32>
      %63 = vector.broadcast %62 : vector<1x32xf32> to vector<8x32xf32>
      %64 = arith.addf %61, %63 : vector<8x32xf32>
      %65 = arith.addf %64, %1 : vector<8x32xf32>
      %cst_49 = arith.constant dense<0.000000e+00> : vector<8xf32>
      %66 = vector.multi_reduction <add>, %65, %cst_49 [1] : vector<8x32xf32> to vector<8xf32>
      %67 = vector.shape_cast %66 : vector<8xf32> to vector<8x1xf32>
      %cst_50 = arith.constant 3.200000e+01 : f32
      %68 = vector.broadcast %cst_50 : f32 to vector<8x1xf32>
      %69 = arith.divf %67, %68 : vector<8x1xf32>
      %70 = vector.broadcast %69 : vector<8x1xf32> to vector<8x32xf32>
      %71 = arith.subf %65, %70 : vector<8x32xf32>
      %72 = arith.mulf %71, %71 : vector<8x32xf32>
      %cst_51 = arith.constant dense<0.000000e+00> : vector<8xf32>
      %73 = vector.multi_reduction <add>, %72, %cst_51 [1] : vector<8x32xf32> to vector<8xf32>
      %74 = vector.shape_cast %73 : vector<8xf32> to vector<8x1xf32>
      %cst_52 = arith.constant 3.200000e+01 : f32
      %75 = vector.broadcast %cst_52 : f32 to vector<8x1xf32>
      %76 = arith.divf %74, %75 : vector<8x1xf32>
      %77 = vector.broadcast %69 : vector<8x1xf32> to vector<8x32xf32>
      %78 = arith.subf %65, %77 : vector<8x32xf32>
      %cst_53 = arith.constant 9.99999974E-6 : f32
      %79 = vector.broadcast %cst_53 : f32 to vector<8x1xf32>
      %80 = arith.addf %76, %79 : vector<8x1xf32>
      %81 = math.rsqrt %80 : vector<8x1xf32>
      %82 = vector.broadcast %81 : vector<8x1xf32> to vector<8x32xf32>
      %83 = arith.mulf %78, %82 : vector<8x32xf32>
      %c0_54 = arith.constant 0 : index
      %c0_55 = arith.constant 0 : index
      %84 = vector.load %arg13[%c0_54, %c0_55] : memref<1x32xf32, #tpu.memory_space<vmem>>, vector<1x32xf32>
      %85 = vector.broadcast %84 : vector<1x32xf32> to vector<8x32xf32>
      %86 = arith.mulf %83, %85 : vector<8x32xf32>
      %c0_56 = arith.constant 0 : index
      %c0_57 = arith.constant 0 : index
      %87 = vector.load %arg14[%c0_56, %c0_57] : memref<1x32xf32, #tpu.memory_space<vmem>>, vector<1x32xf32>
      %88 = vector.broadcast %87 : vector<1x32xf32> to vector<8x32xf32>
      %89 = arith.addf %86, %88 : vector<8x32xf32>
      %c0_58 = arith.constant 0 : index
      %c0_59 = arith.constant 0 : index
      %c0_60 = arith.constant 0 : index
      %90 = vector.load %arg15[%c0_58, %c0_59, %c0_60] : memref<1x8x32xf32, #tpu.memory_space<vmem>>, vector<1x8x32xf32>
      %91 = vector.shape_cast %90 : vector<1x8x32xf32> to vector<8x32xf32>
      %92 = vector.shape_cast %89 : vector<8x32xf32> to vector<1x8x32xf32>
      tpu.vector_store %arg15[%c0_58, %c0_59, %c0_60], %92 {strides = array<i32>} : memref<1x8x32xf32, #tpu.memory_space<vmem>>, vector<1x8x32xf32>,
    } else {
    }
    return
  }
  func.func @transform_0(%arg0: i32, %arg1: i32) -> (i32, i32, i32) {
    %c0_i32 = arith.constant 0 : i32
    %c0_i32_0 = arith.constant 0 : i32
    %c0_i32_1 = arith.constant 0 : i32
    return %arg0, %c0_i32, %c0_i32_0 : i32, i32, i32
  }
  func.func @transform_1(%arg0: i32, %arg1: i32) -> (i32, i32, i32) {
    %c0_i32 = arith.constant 0 : i32
    %c0_i32_0 = arith.constant 0 : i32
    %c0_i32_1 = arith.constant 0 : i32
    return %arg0, %c0_i32, %c0_i32_0 : i32, i32, i32
  }
  func.func @transform_2(%arg0: i32, %arg1: i32) -> (i32, i32, i32) {
    %c0_i32 = arith.constant 0 : i32
    %c0_i32_0 = arith.constant 0 : i32
    %c0_i32_1 = arith.constant 0 : i32
    return %arg0, %c0_i32, %c0_i32_0 : i32, i32, i32
  }
  func.func @transform_3(%arg0: i32, %arg1: i32) -> (i32, i32, i32) {
    %c0_i32 = arith.constant 0 : i32
    %c0_i32_0 = arith.constant 0 : i32
    %c0_i32_1 = arith.constant 0 : i32
    return %arg1, %c0_i32, %c0_i32_0 : i32, i32, i32
  }
  func.func @transform_4(%arg0: i32, %arg1: i32) -> (i32, i32, i32) {
    %c0_i32 = arith.constant 0 : i32
    %c0_i32_0 = arith.constant 0 : i32
    %c0_i32_1 = arith.constant 0 : i32
    return %arg1, %c0_i32, %c0_i32_0 : i32, i32, i32
  }
  func.func @transform_5(%arg0: i32, %arg1: i32) -> (i32, i32, i32) {
    %c0_i32 = arith.constant 0 : i32
    %c0_i32_0 = arith.constant 0 : i32
    %c0_i32_1 = arith.constant 0 : i32
    return %arg1, %c0_i32, %c0_i32_0 : i32, i32, i32
  }
  func.func @transform_6(%arg0: i32, %arg1: i32) -> (i32, i32, i32) {
    %c0_i32 = arith.constant 0 : i32
    %c0_i32_0 = arith.constant 0 : i32
    %c0_i32_1 = arith.constant 0 : i32
    return %arg1, %c0_i32, %c0_i32_0 : i32, i32, i32
  }
  func.func @transform_7(%arg0: i32, %arg1: i32) -> (i32, i32, i32) {
    %c0_i32 = arith.constant 0 : i32
    %c0_i32_0 = arith.constant 0 : i32
    %c0_i32_1 = arith.constant 0 : i32
    return %arg1, %c0_i32, %c0_i32_0 : i32, i32, i32
  }
  func.func @transform_8(%arg0: i32, %arg1: i32) -> (i32, i32, i32) {
    %c0_i32 = arith.constant 0 : i32
    %c0_i32_0 = arith.constant 0 : i32
    %c0_i32_1 = arith.constant 0 : i32
    return %arg1, %c0_i32, %c0_i32_0 : i32, i32, i32
  }
  func.func @transform_9(%arg0: i32, %arg1: i32) -> (i32, i32, i32) {
    %c0_i32 = arith.constant 0 : i32
    %c0_i32_0 = arith.constant 0 : i32
    %c0_i32_1 = arith.constant 0 : i32
    return %arg1, %c0_i32, %c0_i32_0 : i32, i32, i32
  }
  func.func @transform_10(%arg0: i32, %arg1: i32) -> (i32, i32) {
    %c0_i32 = arith.constant 0 : i32
    %c0_i32_0 = arith.constant 0 : i32
    %c0_i32_1 = arith.constant 0 : i32
    return %c0_i32, %c0_i32_0 : i32, i32
  }
  func.func @transform_11(%arg0: i32, %arg1: i32) -> (i32, i32) {
    %c0_i32 = arith.constant 0 : i32
    %c0_i32_0 = arith.constant 0 : i32
    %c0_i32_1 = arith.constant 0 : i32
    return %c0_i32, %c0_i32_0 : i32, i32
  }
  func.func @transform_12(%arg0: i32, %arg1: i32) -> (i32, i32) {
    %c0_i32 = arith.constant 0 : i32
    %c0_i32_0 = arith.constant 0 : i32
    %c0_i32_1 = arith.constant 0 : i32
    return %c0_i32, %c0_i32_0 : i32, i32
  }
  func.func @transform_13(%arg0: i32, %arg1: i32) -> (i32, i32, i32) {
    %c0_i32 = arith.constant 0 : i32
    %c0_i32_0 = arith.constant 0 : i32
    %c0_i32_1 = arith.constant 0 : i32
    return %arg0, %c0_i32, %c0_i32_0 : i32, i32, i32
  }
  func.func @transform_14(%arg0: i32, %arg1: i32) -> (i32, i32, i32, i32) {
    %c0_i32 = arith.constant 0 : i32
    %c0_i32_0 = arith.constant 0 : i32
    %c0_i32_1 = arith.constant 0 : i32
    return %arg0, %arg1, %c0_i32, %c0_i32_0 : i32, i32, i32, i32
  }
}

module attributes {stable_mosaic.version = 11 : i64} {
  func.func @_vocab_stats_kernel(%arg0: i32, %arg1: i32, %arg2: memref<8x32xf32, #tpu.memory_space<vmem>>, %arg3: memref<32x128xbf16, #tpu.memory_space<vmem>>, %arg4: memref<8x1xf32, #tpu.memory_space<vmem>>, %arg5: memref<8x1xf32, #tpu.memory_space<vmem>>, %arg6: memref<8x1xf32, #tpu.memory_space<vmem>>, %arg7: memref<8x1xf32, #tpu.memory_space<vmem>>) attributes {dimension_semantics = [#tpu.dimension_semantics<parallel>, #tpu.dimension_semantics<arbitrary>], iteration_bounds = array<i64: 2, 1>, scalar_prefetch = 0 : i64, scratch_operands = 2 : i64, tpu.core_type = #tpu.core_type<tc>, window_params = [{transform_indices = @transform_0, window_bounds = array<i64: 8, 32>}, {transform_indices = @transform_1, window_bounds = array<i64: 32, 128>}, {transform_indices = @transform_2, window_bounds = array<i64: 8, 1>}, {transform_indices = @transform_3, window_bounds = array<i64: 8, 1>}]} {
    %c0_i32 = arith.constant 0 : i32
    %0 = arith.cmpi eq, %arg1, %c0_i32 : i32
    %1 = arith.extui %0 : i1 to i32
    %c0_i32_0 = arith.constant 0 : i32
    %2 = arith.cmpi ne, %1, %c0_i32_0 : i32
    scf.if %2 {
      %cst_19 = arith.constant -1.000000e+30 : f32
      %35 = vector.broadcast %cst_19 : f32 to vector<8x1xf32>
      %c0_20 = arith.constant 0 : index
      %c0_21 = arith.constant 0 : index
      %36 = vector.load %arg6[%c0_20, %c0_21] : memref<8x1xf32, #tpu.memory_space<vmem>>, vector<8x1xf32>
      tpu.vector_store %arg6[%c0_20, %c0_21], %35 {strides = array<i32>} : memref<8x1xf32, #tpu.memory_space<vmem>>, vector<8x1xf32>,
      %cst_22 = arith.constant 0.000000e+00 : f32
      %37 = vector.broadcast %cst_22 : f32 to vector<8x1xf32>
      %c0_23 = arith.constant 0 : index
      %c0_24 = arith.constant 0 : index
      %38 = vector.load %arg7[%c0_23, %c0_24] : memref<8x1xf32, #tpu.memory_space<vmem>>, vector<8x1xf32>
      tpu.vector_store %arg7[%c0_23, %c0_24], %37 {strides = array<i32>} : memref<8x1xf32, #tpu.memory_space<vmem>>, vector<8x1xf32>,
    } else {
    }
    %c0 = arith.constant 0 : index
    %c0_1 = arith.constant 0 : index
    %3 = vector.load %arg2[%c0, %c0_1] : memref<8x32xf32, #tpu.memory_space<vmem>>, vector<8x32xf32>
    %4 = arith.truncf %3 : vector<8x32xf32> to vector<8x32xbf16>
    %c0_2 = arith.constant 0 : index
    %c0_3 = arith.constant 0 : index
    %5 = vector.load %arg3[%c0_2, %c0_3] : memref<32x128xbf16, #tpu.memory_space<vmem>>, vector<32x128xbf16>
    %cst = arith.constant dense<0.000000e+00> : vector<8x128xf32>
    %6 = tpu.matmul %4, %5, %cst {dimension_numbers = #tpu.dot_dimension_numbers<[1], [0], [0], [1], [0, 0, 1, 1], [], []>} : vector<8x32xbf16>, vector<32x128xbf16>, vector<8x128xf32> -> vector<8x128xf32>
    %c128_i32 = arith.constant 128 : i32
    %7 = arith.muli %arg1, %c128_i32 : i32
    %8 = tpu.iota {dimensions = array<i32: 1>} : vector<8x128xi32>
    %9 = vector.broadcast %7 : i32 to vector<8x128xi32>
    %10 = arith.addi %9, %8 : vector<8x128xi32>
    %c16_i32 = arith.constant 16 : i32
    %11 = vector.broadcast %c16_i32 : i32 to vector<8x128xi32>
    %12 = arith.cmpi slt, %10, %11 : vector<8x128xi32>
    %cst_4 = arith.constant -1.000000e+30 : f32
    %13 = vector.broadcast %cst_4 : f32 to vector<8x128xf32>
    %14 = arith.select %12, %6, %13 : vector<8x128xi1>, vector<8x128xf32>
    %c0_5 = arith.constant 0 : index
    %c0_6 = arith.constant 0 : index
    %15 = vector.load %arg6[%c0_5, %c0_6] : memref<8x1xf32, #tpu.memory_space<vmem>>, vector<8x1xf32>
    %cst_7 = arith.constant dense<0xFF800000> : vector<8xf32>
    %16 = vector.multi_reduction <maximumf>, %14, %cst_7 [1] : vector<8x128xf32> to vector<8xf32>
    %17 = vector.shape_cast %16 : vector<8xf32> to vector<8x1xf32>
    %18 = arith.maximumf %15, %17 : vector<8x1xf32>
    %c0_8 = arith.constant 0 : index
    %c0_9 = arith.constant 0 : index
    %19 = vector.load %arg7[%c0_8, %c0_9] : memref<8x1xf32, #tpu.memory_space<vmem>>, vector<8x1xf32>
    %c0_10 = arith.constant 0 : index
    %c0_11 = arith.constant 0 : index
    %20 = vector.load %arg6[%c0_10, %c0_11] : memref<8x1xf32, #tpu.memory_space<vmem>>, vector<8x1xf32>
    %21 = arith.subf %20, %18 : vector<8x1xf32>
    %22 = math.exp %21 : vector<8x1xf32>
    %23 = arith.mulf %19, %22 : vector<8x1xf32>
    %24 = vector.broadcast %18 : vector<8x1xf32> to vector<8x128xf32>
    %25 = arith.subf %14, %24 : vector<8x128xf32>
    %26 = math.exp %25 : vector<8x128xf32>
    %cst_12 = arith.constant dense<0.000000e+00> : vector<8xf32>
    %27 = vector.multi_reduction <add>, %26, %cst_12 [1] : vector<8x128xf32> to vector<8xf32>
    %28 = vector.shape_cast %27 : vector<8xf32> to vector<8x1xf32>
    %29 = arith.addf %23, %28 : vector<8x1xf32>
    %c0_13 = arith.constant 0 : index
    %c0_14 = arith.constant 0 : index
    %30 = vector.load %arg7[%c0_13, %c0_14] : memref<8x1xf32, #tpu.memory_space<vmem>>, vector<8x1xf32>
    tpu.vector_store %arg7[%c0_13, %c0_14], %29 {strides = array<i32>} : memref<8x1xf32, #tpu.memory_space<vmem>>, vector<8x1xf32>,
    %c0_15 = arith.constant 0 : index
    %c0_16 = arith.constant 0 : index
    %31 = vector.load %arg6[%c0_15, %c0_16] : memref<8x1xf32, #tpu.memory_space<vmem>>, vector<8x1xf32>
    tpu.vector_store %arg6[%c0_15, %c0_16], %18 {strides = array<i32>} : memref<8x1xf32, #tpu.memory_space<vmem>>, vector<8x1xf32>,
    %c0_i32_17 = arith.constant 0 : i32
    %32 = arith.cmpi eq, %arg1, %c0_i32_17 : i32
    %33 = arith.extui %32 : i1 to i32
    %c0_i32_18 = arith.constant 0 : i32
    %34 = arith.cmpi ne, %33, %c0_i32_18 : i32
    scf.if %34 {
      %c0_19 = arith.constant 0 : index
      %c0_20 = arith.constant 0 : index
      %35 = vector.load %arg6[%c0_19, %c0_20] : memref<8x1xf32, #tpu.memory_space<vmem>>, vector<8x1xf32>
      %c0_21 = arith.constant 0 : index
      %c0_22 = arith.constant 0 : index
      %36 = vector.load %arg4[%c0_21, %c0_22] : memref<8x1xf32, #tpu.memory_space<vmem>>, vector<8x1xf32>
      tpu.vector_store %arg4[%c0_21, %c0_22], %35 {strides = array<i32>} : memref<8x1xf32, #tpu.memory_space<vmem>>, vector<8x1xf32>,
      %c0_23 = arith.constant 0 : index
      %c0_24 = arith.constant 0 : index
      %37 = vector.load %arg7[%c0_23, %c0_24] : memref<8x1xf32, #tpu.memory_space<vmem>>, vector<8x1xf32>
      %c0_25 = arith.constant 0 : index
      %c0_26 = arith.constant 0 : index
      %38 = vector.load %arg5[%c0_25, %c0_26] : memref<8x1xf32, #tpu.memory_space<vmem>>, vector<8x1xf32>
      tpu.vector_store %arg5[%c0_25, %c0_26], %37 {strides = array<i32>} : memref<8x1xf32, #tpu.memory_space<vmem>>, vector<8x1xf32>,
    } else {
    }
    return
  }
  func.func @transform_0(%arg0: i32, %arg1: i32) -> (i32, i32) {
    %c0_i32 = arith.constant 0 : i32
    %c0_i32_0 = arith.constant 0 : i32
    return %arg0, %c0_i32 : i32, i32
  }
  func.func @transform_1(%arg0: i32, %arg1: i32) -> (i32, i32) {
    %c0_i32 = arith.constant 0 : i32
    %c0_i32_0 = arith.constant 0 : i32
    return %c0_i32, %arg1 : i32, i32
  }
  func.func @transform_2(%arg0: i32, %arg1: i32) -> (i32, i32) {
    %c0_i32 = arith.constant 0 : i32
    %c0_i32_0 = arith.constant 0 : i32
    return %arg0, %c0_i32 : i32, i32
  }
  func.func @transform_3(%arg0: i32, %arg1: i32) -> (i32, i32) {
    %c0_i32 = arith.constant 0 : i32
    %c0_i32_0 = arith.constant 0 : i32
    return %arg0, %c0_i32 : i32, i32
  }
}

module attributes {stable_mosaic.version = 11 : i64} {
  func.func @_vocab_norm_kernel(%arg0: i32, %arg1: i32, %arg2: memref<8x32xf32, #tpu.memory_space<vmem>>, %arg3: memref<32x128xbf16, #tpu.memory_space<vmem>>, %arg4: memref<8x1xf32, #tpu.memory_space<vmem>>, %arg5: memref<8x1xf32, #tpu.memory_space<vmem>>, %arg6: memref<8x128xf32, #tpu.memory_space<vmem>>) attributes {dimension_semantics = [#tpu.dimension_semantics<parallel>, #tpu.dimension_semantics<parallel>], iteration_bounds = array<i64: 2, 1>, scalar_prefetch = 0 : i64, scratch_operands = 0 : i64, tpu.core_type = #tpu.core_type<tc>, window_params = [{transform_indices = @transform_0, window_bounds = array<i64: 8, 32>}, {transform_indices = @transform_1, window_bounds = array<i64: 32, 128>}, {transform_indices = @transform_2, window_bounds = array<i64: 8, 1>}, {transform_indices = @transform_3, window_bounds = array<i64: 8, 1>}, {transform_indices = @transform_4, window_bounds = array<i64: 8, 128>}]} {
    %c0 = arith.constant 0 : index
    %c0_0 = arith.constant 0 : index
    %0 = vector.load %arg2[%c0, %c0_0] : memref<8x32xf32, #tpu.memory_space<vmem>>, vector<8x32xf32>
    %1 = arith.truncf %0 : vector<8x32xf32> to vector<8x32xbf16>
    %c0_1 = arith.constant 0 : index
    %c0_2 = arith.constant 0 : index
    %2 = vector.load %arg3[%c0_1, %c0_2] : memref<32x128xbf16, #tpu.memory_space<vmem>>, vector<32x128xbf16>
    %cst = arith.constant dense<0.000000e+00> : vector<8x128xf32>
    %3 = tpu.matmul %1, %2, %cst {dimension_numbers = #tpu.dot_dimension_numbers<[1], [0], [0], [1], [0, 0, 1, 1], [], []>} : vector<8x32xbf16>, vector<32x128xbf16>, vector<8x128xf32> -> vector<8x128xf32>
    %c128_i32 = arith.constant 128 : i32
    %4 = arith.muli %arg1, %c128_i32 : i32
    %5 = tpu.iota {dimensions = array<i32: 1>} : vector<8x128xi32>
    %6 = vector.broadcast %4 : i32 to vector<8x128xi32>
    %7 = arith.addi %6, %5 : vector<8x128xi32>
    %c16_i32 = arith.constant 16 : i32
    %8 = vector.broadcast %c16_i32 : i32 to vector<8x128xi32>
    %9 = arith.cmpi slt, %7, %8 : vector<8x128xi32>
    %cst_3 = arith.constant -1.000000e+30 : f32
    %10 = vector.broadcast %cst_3 : f32 to vector<8x128xf32>
    %11 = arith.select %9, %3, %10 : vector<8x128xi1>, vector<8x128xf32>
    %c0_4 = arith.constant 0 : index
    %c0_5 = arith.constant 0 : index
    %12 = vector.load %arg4[%c0_4, %c0_5] : memref<8x1xf32, #tpu.memory_space<vmem>>, vector<8x1xf32>
    %13 = vector.broadcast %12 : vector<8x1xf32> to vector<8x128xf32>
    %14 = arith.subf %11, %13 : vector<8x128xf32>
    %15 = math.exp %14 : vector<8x128xf32>
    %c0_6 = arith.constant 0 : index
    %c0_7 = arith.constant 0 : index
    %16 = vector.load %arg5[%c0_6, %c0_7] : memref<8x1xf32, #tpu.memory_space<vmem>>, vector<8x1xf32>
    %17 = vector.broadcast %16 : vector<8x1xf32> to vector<8x128xf32>
    %18 = arith.divf %15, %17 : vector<8x128xf32>
    %c0_8 = arith.constant 0 : index
    %c0_9 = arith.constant 0 : index
    %19 = vector.load %arg6[%c0_8, %c0_9] : memref<8x128xf32, #tpu.memory_space<vmem>>, vector<8x128xf32>
    tpu.vector_store %arg6[%c0_8, %c0_9], %18 {strides = array<i32>} : memref<8x128xf32, #tpu.memory_space<vmem>>, vector<8x128xf32>,
    return
  }
  func.func @transform_0(%arg0: i32, %arg1: i32) -> (i32, i32) {
    %c0_i32 = arith.constant 0 : i32
    %c0_i32_0 = arith.constant 0 : i32
    return %arg0, %c0_i32 : i32, i32
  }
  func.func @transform_1(%arg0: i32, %arg1: i32) -> (i32, i32) {
    %c0_i32 = arith.constant 0 : i32
    %c0_i32_0 = arith.constant 0 : i32
    return %c0_i32, %arg1 : i32, i32
  }
  func.func @transform_2(%arg0: i32, %arg1: i32) -> (i32, i32) {
    %c0_i32 = arith.constant 0 : i32
    %c0_i32_0 = arith.constant 0 : i32
    return %arg0, %c0_i32 : i32, i32
  }
  func.func @transform_3(%arg0: i32, %arg1: i32) -> (i32, i32) {
    %c0_i32 = arith.constant 0 : i32
    %c0_i32_0 = arith.constant 0 : i32
    return %arg0, %c0_i32 : i32, i32
  }
  func.func @transform_4(%arg0: i32, %arg1: i32) -> (i32, i32) {
    %c0_i32 = arith.constant 0 : i32
    return %arg0, %arg1 : i32, i32
  }
}

</mosaic_0001>

<llo_original>
// kernel: transformer_forward.22
$region0: #{transformer_forward.22}
  #allocation0 [shape = 'u32[]', space=smem, size = 0x4, offset = 0x4, fixed_abs, tag = 'smem constant byte address 0x4 - core index']
  #allocation1 [shape = 'u32[144,128]{1,0:T(1,128)}', space=vmem, size = 0x12000, scoped, tag = 'internal scratch']
  #allocation2 [shape = 'f32[8,1]{1,0:T(8,128)}', space=vmem, size = 0x1000, scoped, tag = 'scratch operand']
  #allocation3 [shape = 'f32[8,1]{1,0:T(8,128)}', space=vmem, size = 0x1000, scoped, tag = 'scratch operand']
  %s0 = inlined_call_operand.hbm [shape: f32[16,32], index: 0, kind: input, shape index: {}]
  %s1 = inlined_call_operand.hbm [shape: bf16[32,128], index: 1, kind: input, shape index: {}]
  %s2 = inlined_call_operand.hbm [shape: f32[16,1], index: 2, kind: output, shape index: {0}]
  %s3 = inlined_call_operand.hbm [shape: f32[16,1], index: 3, kind: output, shape index: {1}]
  %4 = xla_tuple %s2, %s3
  %s5 = sld [smem:[#allocation0]]
  $region65: #{transformer_forward.22} parent=0
    _
  %s7 = ssub.s32 1, %s5
  %s8 = scalar_select 0, %s7, %s5
  $region1: #{transformer_forward.22} parent=0
    #allocation4 [shape = 'u8[8192]{0}', space=vmem, size = 0x2000, scoped, tag = 'input window, operand 0']
    #allocation5 [shape = 's32[2]{0}', space=sflag, size = 0x8, scoped, tag = 'scoped memory for transformer_forward.22']
    #allocation6 [shape = 's32[2]{0}', space=sflag, size = 0x8, scoped, tag = 'scoped memory for transformer_forward.22']
    #allocation7 [shape = 'u8[8192]{0}', space=vmem, size = 0x2000, scoped, tag = 'input window, operand 1, single buffered']
    #allocation8 [shape = 's32[1]{0}', space=sflag, size = 0x4, scoped, tag = 'scoped memory for transformer_forward.22']
    #allocation9 [shape = 'u8[8192]{0}', space=vmem, size = 0x2000, scoped, tag = 'output window, operand 0']
    #allocation10 [shape = 'u8[8192]{0}', space=vmem, size = 0x2000, scoped, tag = 'output window, operand 1']
    #allocation11 [shape = 's32[2]{0}', space=sflag, size = 0x8, scoped, tag = 'scoped memory for transformer_forward.22']
    %9 = vsyncpa [#allocation5], 0
    %s10 = scalar_lea.sflag [#allocation5], 1
    %11 = vsyncpa %s10, 0
    %12 = vsyncpa [#allocation8], 0
    %13 = vsyncpa [#allocation6], 0
    %s14 = scalar_lea.sflag [#allocation6], 1
    %15 = vsyncpa %s14, 0
    %16 = vsyncpa [#allocation11], 0
    %s17 = scalar_lea.sflag [#allocation11], 1
    %18 = vsyncpa %s17, 0
    loop: start=0, step=1, limit=4
    $region2: #{transformer_forward.22} parent=1 // loop_pre_header
      _
    $region3: #{transformer_forward.22} parent=1 // loop_header
      %s20 = sphi 0, %s24
      %p21 = scmp.ge.s32.totalorder %s20, 4
      %s27 = sphi 0, %s39
      %s28 = sphi 0, %s35
      %s29 = sphi 0, %s27
      %s30 = sphi 0, %s28
      %s31 = sphi 0, %s29
      %s32 = sphi 0, %s30
      %s42 = sphi 0, %s44
      %s45 = sphi 0, %s42
      %s46 = sphi 0, %s45
      %s62 = sphi 0, %s46
      %s68 = sphi 0, %s70
      %s71 = sphi 0, %s68
      %s72 = sphi 0, %s71
      %s88 = sphi 0, %s72
      %s94 = sphi 0, %s96
      %s97 = sphi 0, %s94
      %s98 = sphi 0, %s97
      %s114 = sphi 0, %s98
      %s120 = sphi 0, %s122
      %s123 = sphi 0, %s120
      %s124 = sphi 0, %s123
      %s140 = sphi 0, %s124
    $region4: #{transformer_forward.22} parent=1 // loop_header_branch
      %23 = sbr.rel (%p21) target = $region8
    $region5: #{transformer_forward.22} parent=1 // loop_body
      %s25 = ssub.s32 %s20, 1
      %s26 = ssub.s32 %s20, 2
      %s33 = sadd.s32 1, %s28
      %p34 = scmp.ge.s32.totalorder %s33, 1
      %s35 = scalar_select %p34, 0, %s33
      %s36 = sadd.s32 1, %s27
      %s37 = scalar_select %p34, %s36, %s27
      %p38 = scmp.ge.s32.totalorder %s37, 2
      %s39 = scalar_select %p38, 0, %s37
      %s40 = ssub.s32 %s27, %s39
      %p41 = scmp.eq.s32.totalorder %s40, 0
      %s43 = sadd.s32 %s42, 1
      %s44 = scalar_select %p41, %s42, %s43
      %p47 = pneg %p41
      %p48 = scmp.eq.s32.totalorder %s20, 1
      %p49 = por %p47, %p48
      %p50 = scmp.ne.s32.totalorder %s42, %s45
      %p51 = scmp.eq.s32.totalorder %s20, 0
      %p52 = por %p50, %p51
      %p53 = scmp.ne.s32.totalorder %s42, %s45
      %p54 = scmp.eq.s32.totalorder %s25, 1
      %p55 = por %p53, %p54
      %p56 = scmp.ne.s32.totalorder %s45, %s46
      %p57 = scmp.eq.s32.totalorder %s25, 0
      %p58 = por %p56, %p57
      %p59 = scmp.ne.s32.totalorder %s45, %s46
      %p60 = scmp.eq.s32.totalorder %s26, 1
      %p61 = por %p59, %p60
      %p63 = scmp.ne.s32.totalorder %s46, %s62
      %p64 = scmp.eq.s32.totalorder %s26, 0
      %p65 = por %p63, %p64
      %s66 = ssub.s32 %s28, %s35
      %p67 = scmp.eq.s32.totalorder %s66, 0
      %s69 = sadd.s32 %s68, 1
      %s70 = scalar_select %p67, %s68, %s69
      %p73 = pneg %p67
      %p74 = scmp.eq.s32.totalorder %s20, 1
      %p75 = por %p73, %p74
      %p76 = scmp.ne.s32.totalorder %s68, %s71
      %p77 = scmp.eq.s32.totalorder %s20, 0
      %p78 = por %p76, %p77
      %p79 = scmp.ne.s32.totalorder %s68, %s71
      %p80 = scmp.eq.s32.totalorder %s25, 1
      %p81 = por %p79, %p80
      %p82 = scmp.ne.s32.totalorder %s71, %s72
      %p83 = scmp.eq.s32.totalorder %s25, 0
      %p84 = por %p82, %p83
      %p85 = scmp.ne.s32.totalorder %s71, %s72
      %p86 = scmp.eq.s32.totalorder %s26, 1
      %p87 = por %p85, %p86
      %p89 = scmp.ne.s32.totalorder %s72, %s88
      %p90 = scmp.eq.s32.totalorder %s26, 0
      %p91 = por %p89, %p90
      %s92 = ssub.s32 %s27, %s39
      %p93 = scmp.eq.s32.totalorder %s92, 0
      %s95 = sadd.s32 %s94, 1
      %s96 = scalar_select %p93, %s94, %s95
      %p99 = pneg %p93
      %p100 = scmp.eq.s32.totalorder %s20, 1
      %p101 = por %p99, %p100
      %p102 = scmp.ne.s32.totalorder %s94, %s97
      %p103 = scmp.eq.s32.totalorder %s20, 0
      %p104 = por %p102, %p103
      %p105 = scmp.ne.s32.totalorder %s94, %s97
      %p106 = scmp.eq.s32.totalorder %s25, 1
      %p107 = por %p105, %p106
      %p108 = scmp.ne.s32.totalorder %s97, %s98
      %p109 = scmp.eq.s32.totalorder %s25, 0
      %p110 = por %p108, %p109
      %p111 = scmp.ne.s32.totalorder %s97, %s98
      %p112 = scmp.eq.s32.totalorder %s26, 1
      %p113 = por %p111, %p112
      %p115 = scmp.ne.s32.totalorder %s98, %s114
      %p116 = scmp.eq.s32.totalorder %s26, 0
      %p117 = por %p115, %p116
      %s118 = ssub.s32 %s27, %s39
      %p119 = scmp.eq.s32.totalorder %s118, 0
      %s121 = sadd.s32 %s120, 1
      %s122 = scalar_select %p119, %s120, %s121
      %p125 = pneg %p119
      %p126 = scmp.eq.s32.totalorder %s20, 1
      %p127 = por %p125, %p126
      %p128 = scmp.ne.s32.totalorder %s120, %s123
      %p129 = scmp.eq.s32.totalorder %s20, 0
      %p130 = por %p128, %p129
      %p131 = scmp.ne.s32.totalorder %s120, %s123
      %p132 = scmp.eq.s32.totalorder %s25, 1
      %p133 = por %p131, %p132
      %p134 = scmp.ne.s32.totalorder %s123, %s124
      %p135 = scmp.eq.s32.totalorder %s25, 0
      %p136 = por %p134, %p135
      %p137 = scmp.ne.s32.totalorder %s123, %s124
      %p138 = scmp.eq.s32.totalorder %s26, 1
      %p139 = por %p137, %p138
      %p141 = scmp.ne.s32.totalorder %s124, %s140
      %p142 = scmp.eq.s32.totalorder %s26, 0
      %p143 = por %p141, %p142
      %p144 = scmp.le.s32.totalorder 1, %s20
      %p145 = scmp.lt.s32.totalorder %s20, 3
      %p146 = pnand %p144, %p145
      %p147 = pneg %p146
      // Predicated region
      $region9: #{transformer_forward.22} parent=5 // pred_check
        _
      $region10: #{transformer_forward.22} parent=5 // pred_check_branch
        %149 = sbr.rel (%p146) target = $region12
      $region11: #{transformer_forward.22} parent=5 // pred_region
        %s150 = ssub.s32 %s20, 1
        // Predicated region
        $region13: #{transformer_forward.22} parent=11 // pred_check
          %p151 = pneg %p84
        $region14: #{transformer_forward.22} parent=11 // pred_check_branch
          %153 = sbr.rel (%p151) target = $region16
        $region15: #{transformer_forward.22} parent=11 // pred_region
          %s155 = ssub.s32 256, 256
          %156 = vsyncadd [#allocation8], %s155
          %s157 = smul.addr %s30, 64
          %s158 = scalar_lea.hbm %s1, %s157
          %s159 = sshll.u32 [#allocation7], 4
          %s160 = int_to_ptr.vmem [resolvable:$true] %s159
          %165 = dma.hbm_to_vmem [thread:$0]  %s158, 256, %s160, [#allocation8], 64, 64, 4
        $region16: #{transformer_forward.22} parent=11 // pred_fallthru
          _
      $region12: #{transformer_forward.22} parent=5 // pred_fallthru
        _
      %p166 = scmp.lt.s32.totalorder %s20, 2
      // Predicated region
      $region17: #{transformer_forward.22} parent=5 // pred_check
        %p167 = pneg %p166
      $region18: #{transformer_forward.22} parent=5 // pred_check_branch
        %169 = sbr.rel (%p167) target = $region20
      $region19: #{transformer_forward.22} parent=5 // pred_region
        // Predicated region
        $region21: #{transformer_forward.22} parent=19 // pred_check
          %p170 = pneg %p52
        $region22: #{transformer_forward.22} parent=19 // pred_check_branch
          %172 = sbr.rel (%p170) target = $region24
        $region23: #{transformer_forward.22} parent=19 // pred_region
          %s173 = sand.u32 %s42, 1
          %s174 = scalar_lea.sflag [#allocation5], %s173
          %s175 = sand.u32 %s42, 1
          %s176 = smul.addr %s175, 8
          %s177 = scalar_lea.vmem [#allocation4], %s176
          %s179 = ssub.s32 128, 128
          %180 = vsyncadd %s174, %s179
          %s181 = smul.addr %s27, 128
          %s182 = scalar_lea.hbm %s0, %s181
          %s184 = sshll.u32 %s177, 4
          %s185 = int_to_ptr.vmem [resolvable:$true] %s184
          %187 = dma.hbm_to_vmem [thread:$0]  %s182, 128, %s185, %s174
        $region24: #{transformer_forward.22} parent=19 // pred_fallthru
          _
      $region20: #{transformer_forward.22} parent=5 // pred_fallthru
        _
      %p188 = scmp.le.s32.totalorder 1, %s20
      %p189 = scmp.lt.s32.totalorder %s20, 3
      %p190 = pnand %p188, %p189
      %p191 = pneg %p190
      // Predicated region
      $region25: #{transformer_forward.22} parent=5 // pred_check
        _
      $region26: #{transformer_forward.22} parent=5 // pred_check_branch
        %193 = sbr.rel (%p190) target = $region28
      $region27: #{transformer_forward.22} parent=5 // pred_region
        %s194 = ssub.s32 %s20, 1
        %s195 = sand.u32 %s45, 1
        %s196 = scalar_lea.sflag [#allocation5], %s195
        %s197 = sand.u32 %s45, 1
        %s198 = smul.addr %s197, 8
        %s199 = scalar_lea.vmem [#allocation4], %s198
        // Predicated region
        $region29: #{transformer_forward.22} parent=27 // pred_check
          %p200 = pneg %p58
        $region30: #{transformer_forward.22} parent=27 // pred_check_branch
          %202 = sbr.rel (%p200) target = $region32
        $region31: #{transformer_forward.22} parent=27 // pred_region
          %203 = dma.done %s196, 128
        $region32: #{transformer_forward.22} parent=27 // pred_fallthru
          _
        // Predicated region
        $region33: #{transformer_forward.22} parent=27 // pred_check
          %p204 = pneg %p84
        $region34: #{transformer_forward.22} parent=27 // pred_check_branch
          %206 = sbr.rel (%p204) target = $region36
        $region35: #{transformer_forward.22} parent=27 // pred_region
          %207 = dma.done [#allocation8], 256
        $region36: #{transformer_forward.22} parent=27 // pred_fallthru
          _
        %s208 = sand.u32 %s45, 1
        %s209 = scalar_lea.sflag [#allocation5], %s208
        %s210 = sand.u32 %s45, 1
        %s211 = smul.addr %s210, 8
        %s212 = scalar_lea.vmem [#allocation4], %s211
        %p213 = pneg %p58
        %p214 = pneg %p55
        %p215 = pneg %p84
        %p216 = pneg %p81
        %p217 = pneg %p110
        %p218 = pneg %p107
        %s219 = sand.u32 %s97, 1
        %s220 = scalar_lea.sflag [#allocation6], %s219
        %s221 = sand.u32 %s97, 1
        %s222 = smul.addr %s221, 8
        %s223 = scalar_lea.vmem [#allocation9], %s222
        %p224 = pneg %p136
        %p225 = pneg %p133
        %s226 = sand.u32 %s123, 1
        %s227 = scalar_lea.sflag [#allocation11], %s226
        %s228 = sand.u32 %s123, 1
        %s229 = smul.addr %s228, 8
        %s230 = scalar_lea.vmem [#allocation10], %s229
        %p232 = scmp.eq.s32.totalorder %s30, 0
        // Predicated region
        $region37: #{transformer_forward.22} parent=27 // pred_check
          %p233 = pneg %p232
        $region38: #{transformer_forward.22} parent=27 // pred_check_branch
          %235 = sbr.rel (%p233) target = $region40
        $region39: #{transformer_forward.22} parent=27 // pred_region
          %vm236 = vcmask 7168
          %237 = vst.msk [vmem:[#allocation2] sm:$0xff] %vm236, -1e+30
          %238 = vst.msk [vmem:[#allocation3] sm:$0xff] %vm236, 0.0
        $region40: #{transformer_forward.22} parent=27 // pred_fallthru
          _
        %v239 = vld [vmem:[%s199] sm:$0xff]
        %v240 = vpack.c.bf16 %v239, %v239
        %v241 = vld [vmem:[#allocation7] sm:$0xf]
        %v242 = vld [vmem:[#allocation7 + $0x4] sm:$0xf]
        %v243 = vld [vmem:[#allocation7 + $0x8] sm:$0xf]
        %v244 = vld [vmem:[#allocation7 + $0xc] sm:$0xf]
        %v249 = vunpack.c.l.b16 %v241
        %v250 = vunpack.c.l.b16 %v242
        %v251 = vunpack.c.l.b16 %v243
        %v252 = vunpack.c.l.b16 %v244
        %v253 = vpack.c.b16 %v250, %v249
        %v254 = vpack.c.b16 %v252, %v251
        %vm257 = vcmask 261120
        %v259 = vsel %vm257, %v240, 0
        %261 = vmatprep.subr.bf16.mxu0 0
        %262 = vmatpush1.bf16.msra.mxu0 %v253
        %263 = vmatprep.subr.bf16.mxu0 0
        %264 = vmatpush1.bf16.msra.mxu0 %v254
        %265 = vmatprep.subr.bf16.mxu0 0
        %266 = vmatpush1.bf16.msra.mxu0 0
        %267 = vmatprep.subr.bf16.mxu0 0
        %268 = vmatpush1.bf16.msra.mxu0 0
        %269 = vmatprep.subr.bf16.mxu0 0
        %270 = vmatpush1.bf16.msra.mxu0 0
        %271 = vmatprep.subr.bf16.mxu0 0
        %272 = vmatpush1.bf16.msra.mxu0 0
        %273 = vmatprep.subr.bf16.mxu0 0
        %274 = vmatpush1.bf16.msra.mxu0 0
        %275 = vmatprep.subr.bf16.mxu0 0
        %276 = vmatpush1.bf16.msra.mxu0 0
        %277 = vmatprep.subr.bf16.mxu0 0
        %278 = vmatpush1.bf16.msra.mxu0 0
        %279 = vmatprep.subr.bf16.mxu0 0
        %280 = vmatpush1.bf16.msra.mxu0 0
        %281 = vmatprep.subr.bf16.mxu0 0
        %282 = vmatpush1.bf16.msra.mxu0 0
        %283 = vmatprep.subr.bf16.mxu0 0
        %284 = vmatpush1.bf16.msra.mxu0 0
        %285 = vmatprep.subr.bf16.mxu0 0
        %286 = vmatpush1.bf16.msra.mxu0 0
        %287 = vmatprep.subr.bf16.mxu0 0
        %288 = vmatpush1.bf16.msra.mxu0 0
        %289 = vmatprep.subr.bf16.mxu0 0
        %290 = vmatpush1.bf16.msra.mxu0 0
        %291 = vmatprep.subr.bf16.mxu0 0
        %292 = vmatpush1.bf16.msra.mxu0 0
        %293 = vmatprep.mubr.bf16.mxu0 0
        %294 = vmatmul.mubr.bf16.gmra.mrb[0].mxu0 %v259
        %v295 = vpop.f32.mrb[0].mxu0
        %v296 = vadd.f32 0.0, %v295
        %v297 = vpop.f32.mrb[0].mxu0
        %v298 = vpop.f32.mrb[0].mxu0
        %v299 = vpop.f32.mrb[0].mxu0
        %300 = vdwg.mxu0
        %s301 = smul.u32 %s30, 128
        %v302 = vlaneseq
        %v303 = vand.u32 %v302, 127
        %v304 = vstv %s301
        %v305 = vadd.s32 %v304, %v303
        %vm306 = vcmp.lt.s32.totalorder %v305, 16
        %v307 = vsel %vm306, %v296, -1e+30
        %v308 = vld [vmem:[#allocation2] sm:$0xff]
        %309 = vmax.xlane.f32.xlu0 %v307
        %v310 = vpop.xlane.xlu0 %309
        %v311 = vmax.f32 %v308, %v310
        %v312 = vld [vmem:[#allocation3] sm:$0xff]
        %v313 = vsub.f32 %v308, %v311
        %v314 = vmul.f32 %v313, 1.442695
        %v315 = vpow.pop %v314
        %v316 = vmul.f32 %v312, %v315
        %318 = vset.pattern.permute.xlu0 0
        %319 = vperm.xlu0 %318, %v311
        %v320 = vpop.permute.xlu0 %319
        %v322 = vsub.f32 %v307, %v320
        %v323 = vmul.f32 %v322, 1.442695
        %v324 = vpow.pop %v323
        %325 = vadd.xlane.f32.xlu0 %v324
        %v326 = vpop.xlane.xlu0 %325
        %v327 = vadd.f32 %v316, %v326
        %vm328 = vcmask 7168
        %329 = vst.msk [vmem:[#allocation3] sm:$0xff] %vm328, %v327
        %330 = vst.msk [vmem:[#allocation2] sm:$0xff] %vm328, %v311
        // Predicated region
        $region41: #{transformer_forward.22} parent=27 // pred_check
          %p331 = pneg %p232
        $region42: #{transformer_forward.22} parent=27 // pred_check_branch
          %333 = sbr.rel (%p331) target = $region44
        $region43: #{transformer_forward.22} parent=27 // pred_region
          %v334 = vld [vmem:[#allocation2] sm:$0xff]
          %335 = vst.msk [vmem:[%s223] sm:$0xff] %vm328, %v334
          %v336 = vld [vmem:[#allocation3] sm:$0xff]
          %337 = vst.msk [vmem:[%s230] sm:$0xff] %vm328, %v336
        $region44: #{transformer_forward.22} parent=27 // pred_fallthru
          _
        %s338 = sand.u32 %s97, 1
        %s339 = scalar_lea.sflag [#allocation6], %s338
        %s340 = sand.u32 %s97, 1
        %s341 = smul.addr %s340, 8
        %s342 = scalar_lea.vmem [#allocation9], %s341
        %s343 = sand.u32 %s123, 1
        %s344 = scalar_lea.sflag [#allocation11], %s343
        %s345 = sand.u32 %s123, 1
        %s346 = smul.addr %s345, 8
        %s347 = scalar_lea.vmem [#allocation10], %s346
        // Predicated region
        $region45: #{transformer_forward.22} parent=27 // pred_check
          %p348 = pneg %p107
        $region46: #{transformer_forward.22} parent=27 // pred_check_branch
          %350 = sbr.rel (%p348) target = $region48
        $region47: #{transformer_forward.22} parent=27 // pred_region
          %s352 = ssub.s32 128, 128
          %353 = vsyncadd %s339, %s352
          %s354 = smul.addr %s29, 128
          %s355 = scalar_lea.hbm %s2, %s354
          %s357 = sshll.u32 %s342, 4
          %s358 = int_to_ptr.vmem [resolvable:$true] %s357
          %360 = dma.vmem_to_hbm [thread:$0]  %s358, 128, %s355, %s339
        $region48: #{transformer_forward.22} parent=27 // pred_fallthru
          _
        // Predicated region
        $region49: #{transformer_forward.22} parent=27 // pred_check
          %p361 = pneg %p133
        $region50: #{transformer_forward.22} parent=27 // pred_check_branch
          %363 = sbr.rel (%p361) target = $region52
        $region51: #{transformer_forward.22} parent=27 // pred_region
          %s365 = ssub.s32 128, 128
          %366 = vsyncadd %s344, %s365
          %s367 = smul.addr %s29, 128
          %s368 = scalar_lea.hbm %s3, %s367
          %s370 = sshll.u32 %s347, 4
          %s371 = int_to_ptr.vmem [resolvable:$true] %s370
          %373 = dma.vmem_to_hbm [thread:$0]  %s371, 128, %s368, %s344
        $region52: #{transformer_forward.22} parent=27 // pred_fallthru
          _
      $region28: #{transformer_forward.22} parent=5 // pred_fallthru
        _
      %p374 = scmp.le.s32.totalorder 2, %s20
      // Predicated region
      $region53: #{transformer_forward.22} parent=5 // pred_check
        %p375 = pneg %p374
      $region54: #{transformer_forward.22} parent=5 // pred_check_branch
        %377 = sbr.rel (%p375) target = $region56
      $region55: #{transformer_forward.22} parent=5 // pred_region
        %s378 = ssub.s32 %s20, 2
        // Predicated region
        $region57: #{transformer_forward.22} parent=55 // pred_check
          %p379 = pneg %p113
        $region58: #{transformer_forward.22} parent=55 // pred_check_branch
          %381 = sbr.rel (%p379) target = $region60
        $region59: #{transformer_forward.22} parent=55 // pred_region
          %s382 = sand.u32 %s98, 1
          %s383 = scalar_lea.sflag [#allocation6], %s382
          %s384 = sand.u32 %s98, 1
          %s385 = smul.addr %s384, 8
          %s386 = scalar_lea.vmem [#allocation9], %s385
          %387 = dma.done %s383, 128
        $region60: #{transformer_forward.22} parent=55 // pred_fallthru
          _
        // Predicated region
        $region61: #{transformer_forward.22} parent=55 // pred_check
          %p388 = pneg %p139
        $region62: #{transformer_forward.22} parent=55 // pred_check_branch
          %390 = sbr.rel (%p388) target = $region64
        $region63: #{transformer_forward.22} parent=55 // pred_region
          %s391 = sand.u32 %s124, 1
          %s392 = scalar_lea.sflag [#allocation11], %s391
          %s393 = sand.u32 %s124, 1
          %s394 = smul.addr %s393, 8
          %s395 = scalar_lea.vmem [#allocation10], %s394
          %396 = dma.done %s392, 128
        $region64: #{transformer_forward.22} parent=55 // pred_fallthru
          _
      $region56: #{transformer_forward.22} parent=5 // pred_fallthru
        _
    $region6: #{transformer_forward.22} parent=1 // loop_footer
      %s24 = sadd.s32 1, %s20
    $region7: #{transformer_forward.22} parent=1 // loop_footer_branch
      %19 = sbr.rel target = $region3
    $region8: #{transformer_forward.22} parent=1 // loop_exit
      _
    %397 = vsyncpa [#allocation5], 1
    %s398 = scalar_lea.sflag [#allocation5], 1
    %399 = vsyncpa %s398, 1
    %400 = vsyncpa [#allocation8], 1
    %401 = vsyncpa [#allocation6], 1
    %s402 = scalar_lea.sflag [#allocation6], 1
    %403 = vsyncpa %s402, 1
    %404 = vsyncpa [#allocation11], 1
    %s405 = scalar_lea.sflag [#allocation11], 1
    %406 = vsyncpa %s405, 1

// kernel: transformer_forward.13
$region0: #{transformer_forward.13}
  #allocation0 [shape = 'u32[]', space=smem, size = 0x4, offset = 0x4, fixed_abs, tag = 'smem constant byte address 0x4 - core index']
  #allocation1 [shape = 'u32[144,128]{1,0:T(1,128)}', space=vmem, size = 0x12000, scoped, tag = 'internal scratch']
  %s0 = inlined_call_operand.hbm [shape: f32[16,32], index: 0, kind: input, shape index: {}]
  %s1 = inlined_call_operand.hbm [shape: bf16[32,64], index: 1, kind: input, shape index: {}]
  %s2 = inlined_call_operand.hbm [shape: f32[1,64], index: 2, kind: input, shape index: {}]
  %s3 = inlined_call_operand.hbm [shape: bf16[64,32], index: 3, kind: input, shape index: {}]
  %s4 = inlined_call_operand.hbm [shape: f32[1,32], index: 4, kind: input, shape index: {}]
  %s5 = inlined_call_operand.hbm [shape: f32[1,32], index: 5, kind: input, shape index: {}]
  %s6 = inlined_call_operand.hbm [shape: f32[1,32], index: 6, kind: input, shape index: {}]
  %s7 = inlined_call_operand.hbm [shape: f32[16,32], index: 7, kind: output, shape index: {}]
  %s8 = sld [smem:[#allocation0]]
  $region89: #{transformer_forward.13} parent=0
    _
  %s10 = ssub.s32 1, %s8
  %s11 = scalar_select 0, %s10, %s8
  $region1: #{transformer_forward.13} parent=0
    #allocation2 [shape = 'u8[8192]{0}', space=vmem, size = 0x2000, scoped, tag = 'input window, operand 0']
    #allocation3 [shape = 's32[2]{0}', space=sflag, size = 0x8, scoped, tag = 'scoped memory for transformer_forward.13']
    #allocation4 [shape = 's32[2]{0}', space=sflag, size = 0x8, scoped, tag = 'scoped memory for transformer_forward.13']
    #allocation5 [shape = 'u8[8192]{0}', space=vmem, size = 0x2000, scoped, tag = 'input window, operand 1, single buffered']
    #allocation6 [shape = 's32[1]{0}', space=sflag, size = 0x4, scoped, tag = 'scoped memory for transformer_forward.13']
    #allocation7 [shape = 'u8[512]{0}', space=vmem, size = 0x400, scoped, tag = 'input window, operand 2, single buffered']
    #allocation8 [shape = 'u8[16384]{0}', space=vmem, size = 0x4000, scoped, tag = 'input window, operand 3, single buffered']
    #allocation9 [shape = 's32[1]{0}', space=sflag, size = 0x4, scoped, tag = 'scoped memory for transformer_forward.13']
    #allocation10 [shape = 'u8[512]{0}', space=vmem, size = 0x400, scoped, tag = 'input window, operand 4, single buffered']
    #allocation11 [shape = 'u8[512]{0}', space=vmem, size = 0x400, scoped, tag = 'input window, operand 5, single buffered']
    #allocation12 [shape = 's32[1]{0}', space=sflag, size = 0x4, scoped, tag = 'scoped memory for transformer_forward.13']
    #allocation13 [shape = 'u8[512]{0}', space=vmem, size = 0x400, scoped, tag = 'input window, operand 6, single buffered']
    #allocation14 [shape = 'u8[8192]{0}', space=vmem, size = 0x2000, scoped, tag = 'output window, operand 0']
    %12 = vsyncpa [#allocation3], 0
    %s13 = scalar_lea.sflag [#allocation3], 1
    %14 = vsyncpa %s13, 0
    %15 = vsyncpa [#allocation6], 0
    %16 = vsyncpa [#allocation9], 0
    %17 = vsyncpa [#allocation12], 0
    %18 = vsyncpa [#allocation4], 0
    %s19 = scalar_lea.sflag [#allocation4], 1
    %20 = vsyncpa %s19, 0
    loop: start=0, step=1, limit=4
    $region2: #{transformer_forward.13} parent=1 // loop_pre_header
      _
    $region3: #{transformer_forward.13} parent=1 // loop_header
      %s22 = sphi 0, %s26
      %p23 = scmp.ge.s32.totalorder %s22, 4
      %s32 = sphi 0, %s34
      %s35 = sphi 0, %s32
      %s36 = sphi 0, %s35
      %s52 = sphi 0, %s36
      %s56 = sphi 0, %s56
      %s58 = sphi 0, %s56
      %s59 = sphi 0, %s58
      %s73 = sphi 0, %s59
      %s77 = sphi 0, %s77
      %s79 = sphi 0, %s77
      %s80 = sphi 0, %s79
      %s94 = sphi 0, %s80
      %s98 = sphi 0, %s98
      %s100 = sphi 0, %s98
      %s101 = sphi 0, %s100
      %s115 = sphi 0, %s101
      %s119 = sphi 0, %s119
      %s121 = sphi 0, %s119
      %s122 = sphi 0, %s121
      %s136 = sphi 0, %s122
      %s140 = sphi 0, %s140
      %s142 = sphi 0, %s140
      %s143 = sphi 0, %s142
      %s157 = sphi 0, %s143
      %s161 = sphi 0, %s161
      %s163 = sphi 0, %s161
      %s164 = sphi 0, %s163
      %s178 = sphi 0, %s164
      %s184 = sphi 0, %s186
      %s187 = sphi 0, %s184
      %s188 = sphi 0, %s187
      %s204 = sphi 0, %s188
    $region4: #{transformer_forward.13} parent=1 // loop_header_branch
      %25 = sbr.rel (%p23) target = $region8
    $region5: #{transformer_forward.13} parent=1 // loop_body
      %s27 = ssub.s32 %s22, 1
      %s28 = ssub.s32 %s22, 2
      %s29 = sadd.s32 %s22, 1
      %s30 = ssub.s32 %s22, %s29
      %p31 = scmp.eq.s32.totalorder %s30, 0
      %s33 = sadd.s32 %s32, 1
      %s34 = scalar_select %p31, %s32, %s33
      %p37 = pneg %p31
      %p38 = scmp.eq.s32.totalorder %s22, 1
      %p39 = por %p37, %p38
      %p40 = scmp.ne.s32.totalorder %s32, %s35
      %p41 = scmp.eq.s32.totalorder %s22, 0
      %p42 = por %p40, %p41
      %p43 = scmp.ne.s32.totalorder %s32, %s35
      %p44 = scmp.eq.s32.totalorder %s27, 1
      %p45 = por %p43, %p44
      %p46 = scmp.ne.s32.totalorder %s35, %s36
      %p47 = scmp.eq.s32.totalorder %s27, 0
      %p48 = por %p46, %p47
      %p49 = scmp.ne.s32.totalorder %s35, %s36
      %p50 = scmp.eq.s32.totalorder %s28, 1
      %p51 = por %p49, %p50
      %p53 = scmp.ne.s32.totalorder %s36, %s52
      %p54 = scmp.eq.s32.totalorder %s28, 0
      %p55 = por %p53, %p54
      %s57 = sadd.s32 %s56, 1
      %p60 = scmp.eq.s32.totalorder %s22, 1
      %p61 = scmp.ne.s32.totalorder %s56, %s58
      %p62 = scmp.eq.s32.totalorder %s22, 0
      %p63 = por %p61, %p62
      %p64 = scmp.ne.s32.totalorder %s56, %s58
      %p65 = scmp.eq.s32.totalorder %s27, 1
      %p66 = por %p64, %p65
      %p67 = scmp.ne.s32.totalorder %s58, %s59
      %p68 = scmp.eq.s32.totalorder %s27, 0
      %p69 = por %p67, %p68
      %p70 = scmp.ne.s32.totalorder %s58, %s59
      %p71 = scmp.eq.s32.totalorder %s28, 1
      %p72 = por %p70, %p71
      %p74 = scmp.ne.s32.totalorder %s59, %s73
      %p75 = scmp.eq.s32.totalorder %s28, 0
      %p76 = por %p74, %p75
      %s78 = sadd.s32 %s77, 1
      %p81 = scmp.eq.s32.totalorder %s22, 1
      %p82 = scmp.ne.s32.totalorder %s77, %s79
      %p83 = scmp.eq.s32.totalorder %s22, 0
      %p84 = por %p82, %p83
      %p85 = scmp.ne.s32.totalorder %s77, %s79
      %p86 = scmp.eq.s32.totalorder %s27, 1
      %p87 = por %p85, %p86
      %p88 = scmp.ne.s32.totalorder %s79, %s80
      %p89 = scmp.eq.s32.totalorder %s27, 0
      %p90 = por %p88, %p89
      %p91 = scmp.ne.s32.totalorder %s79, %s80
      %p92 = scmp.eq.s32.totalorder %s28, 1
      %p93 = por %p91, %p92
      %p95 = scmp.ne.s32.totalorder %s80, %s94
      %p96 = scmp.eq.s32.totalorder %s28, 0
      %p97 = por %p95, %p96
      %s99 = sadd.s32 %s98, 1
      %p102 = scmp.eq.s32.totalorder %s22, 1
      %p103 = scmp.ne.s32.totalorder %s98, %s100
      %p104 = scmp.eq.s32.totalorder %s22, 0
      %p105 = por %p103, %p104
      %p106 = scmp.ne.s32.totalorder %s98, %s100
      %p107 = scmp.eq.s32.totalorder %s27, 1
      %p108 = por %p106, %p107
      %p109 = scmp.ne.s32.totalorder %s100, %s101
      %p110 = scmp.eq.s32.totalorder %s27, 0
      %p111 = por %p109, %p110
      %p112 = scmp.ne.s32.totalorder %s100, %s101
      %p113 = scmp.eq.s32.totalorder %s28, 1
      %p114 = por %p112, %p113
      %p116 = scmp.ne.s32.totalorder %s101, %s115
      %p117 = scmp.eq.s32.totalorder %s28, 0
      %p118 = por %p116, %p117
      %s120 = sadd.s32 %s119, 1
      %p123 = scmp.eq.s32.totalorder %s22, 1
      %p124 = scmp.ne.s32.totalorder %s119, %s121
      %p125 = scmp.eq.s32.totalorder %s22, 0
      %p126 = por %p124, %p125
      %p127 = scmp.ne.s32.totalorder %s119, %s121
      %p128 = scmp.eq.s32.totalorder %s27, 1
      %p129 = por %p127, %p128
      %p130 = scmp.ne.s32.totalorder %s121, %s122
      %p131 = scmp.eq.s32.totalorder %s27, 0
      %p132 = por %p130, %p131
      %p133 = scmp.ne.s32.totalorder %s121, %s122
      %p134 = scmp.eq.s32.totalorder %s28, 1
      %p135 = por %p133, %p134
      %p137 = scmp.ne.s32.totalorder %s122, %s136
      %p138 = scmp.eq.s32.totalorder %s28, 0
      %p139 = por %p137, %p138
      %s141 = sadd.s32 %s140, 1
      %p144 = scmp.eq.s32.totalorder %s22, 1
      %p145 = scmp.ne.s32.totalorder %s140, %s142
      %p146 = scmp.eq.s32.totalorder %s22, 0
      %p147 = por %p145, %p146
      %p148 = scmp.ne.s32.totalorder %s140, %s142
      %p149 = scmp.eq.s32.totalorder %s27, 1
      %p150 = por %p148, %p149
      %p151 = scmp.ne.s32.totalorder %s142, %s143
      %p152 = scmp.eq.s32.totalorder %s27, 0
      %p153 = por %p151, %p152
      %p154 = scmp.ne.s32.totalorder %s142, %s143
      %p155 = scmp.eq.s32.totalorder %s28, 1
      %p156 = por %p154, %p155
      %p158 = scmp.ne.s32.totalorder %s143, %s157
      %p159 = scmp.eq.s32.totalorder %s28, 0
      %p160 = por %p158, %p159
      %s162 = sadd.s32 %s161, 1
      %p165 = scmp.eq.s32.totalorder %s22, 1
      %p166 = scmp.ne.s32.totalorder %s161, %s163
      %p167 = scmp.eq.s32.totalorder %s22, 0
      %p168 = por %p166, %p167
      %p169 = scmp.ne.s32.totalorder %s161, %s163
      %p170 = scmp.eq.s32.totalorder %s27, 1
      %p171 = por %p169, %p170
      %p172 = scmp.ne.s32.totalorder %s163, %s164
      %p173 = scmp.eq.s32.totalorder %s27, 0
      %p174 = por %p172, %p173
      %p175 = scmp.ne.s32.totalorder %s163, %s164
      %p176 = scmp.eq.s32.totalorder %s28, 1
      %p177 = por %p175, %p176
      %p179 = scmp.ne.s32.totalorder %s164, %s178
      %p180 = scmp.eq.s32.totalorder %s28, 0
      %p181 = por %p179, %p180
      %s182 = ssub.s32 %s22, %s29
      %p183 = scmp.eq.s32.totalorder %s182, 0
      %s185 = sadd.s32 %s184, 1
      %s186 = scalar_select %p183, %s184, %s185
      %p189 = pneg %p183
      %p190 = scmp.eq.s32.totalorder %s22, 1
      %p191 = por %p189, %p190
      %p192 = scmp.ne.s32.totalorder %s184, %s187
      %p193 = scmp.eq.s32.totalorder %s22, 0
      %p194 = por %p192, %p193
      %p195 = scmp.ne.s32.totalorder %s184, %s187
      %p196 = scmp.eq.s32.totalorder %s27, 1
      %p197 = por %p195, %p196
      %p198 = scmp.ne.s32.totalorder %s187, %s188
      %p199 = scmp.eq.s32.totalorder %s27, 0
      %p200 = por %p198, %p199
      %p201 = scmp.ne.s32.totalorder %s187, %s188
      %p202 = scmp.eq.s32.totalorder %s28, 1
      %p203 = por %p201, %p202
      %p205 = scmp.ne.s32.totalorder %s188, %s204
      %p206 = scmp.eq.s32.totalorder %s28, 0
      %p207 = por %p205, %p206
      %p208 = scmp.le.s32.totalorder 1, %s22
      %p209 = scmp.lt.s32.totalorder %s22, 3
      %p210 = pnand %p208, %p209
      %p211 = pneg %p210
      // Predicated region
      $region9: #{transformer_forward.13} parent=5 // pred_check
        _
      $region10: #{transformer_forward.13} parent=5 // pred_check_branch
        %213 = sbr.rel (%p210) target = $region12
      $region11: #{transformer_forward.13} parent=5 // pred_region
        %s214 = ssub.s32 %s22, 1
        // Predicated region
        $region13: #{transformer_forward.13} parent=11 // pred_check
          %p215 = pneg %p69
        $region14: #{transformer_forward.13} parent=11 // pred_check_branch
          %217 = sbr.rel (%p215) target = $region16
        $region15: #{transformer_forward.13} parent=11 // pred_region
          %s219 = ssub.s32 256, 256
          %220 = vsyncadd [#allocation6], %s219
          %s221 = sshll.u32 [#allocation5], 4
          %s222 = int_to_ptr.vmem [resolvable:$true] %s221
          %227 = dma.hbm_to_vmem [thread:$0]  %s1, 256, %s222, [#allocation6], 64, 64, 4
        $region16: #{transformer_forward.13} parent=11 // pred_fallthru
          _
        // Predicated region
        $region17: #{transformer_forward.13} parent=11 // pred_check
          %p228 = pneg %p90
        $region18: #{transformer_forward.13} parent=11 // pred_check_branch
          %230 = sbr.rel (%p228) target = $region20
        $region19: #{transformer_forward.13} parent=11 // pred_region
          %s232 = ssub.s32 16, 16
          %233 = vsyncadd [#allocation6], %s232
          %s235 = sshll.u32 [#allocation7], 4
          %s236 = int_to_ptr.vmem [resolvable:$true] %s235
          %238 = dma.hbm_to_vmem [thread:$0]  %s2, 16, %s236, [#allocation6]
        $region20: #{transformer_forward.13} parent=11 // pred_fallthru
          _
        // Predicated region
        $region21: #{transformer_forward.13} parent=11 // pred_check
          %p239 = pneg %p111
        $region22: #{transformer_forward.13} parent=11 // pred_check_branch
          %241 = sbr.rel (%p239) target = $region24
        $region23: #{transformer_forward.13} parent=11 // pred_region
          %s243 = ssub.s32 512, 512
          %244 = vsyncadd [#allocation9], %s243
          %s245 = sshll.u32 [#allocation8], 4
          %s246 = int_to_ptr.vmem [resolvable:$true] %s245
          %251 = dma.hbm_to_vmem [thread:$0]  %s3, 512, %s246, [#allocation9], 64, 64, 4
        $region24: #{transformer_forward.13} parent=11 // pred_fallthru
          _
        // Predicated region
        $region25: #{transformer_forward.13} parent=11 // pred_check
          %p252 = pneg %p132
        $region26: #{transformer_forward.13} parent=11 // pred_check_branch
          %254 = sbr.rel (%p252) target = $region28
        $region27: #{transformer_forward.13} parent=11 // pred_region
          %s256 = ssub.s32 16, 16
          %257 = vsyncadd [#allocation9], %s256
          %s259 = sshll.u32 [#allocation10], 4
          %s260 = int_to_ptr.vmem [resolvable:$true] %s259
          %262 = dma.hbm_to_vmem [thread:$0]  %s4, 16, %s260, [#allocation9]
        $region28: #{transformer_forward.13} parent=11 // pred_fallthru
          _
        // Predicated region
        $region29: #{transformer_forward.13} parent=11 // pred_check
          %p263 = pneg %p153
        $region30: #{transformer_forward.13} parent=11 // pred_check_branch
          %265 = sbr.rel (%p263) target = $region32
        $region31: #{transformer_forward.13} parent=11 // pred_region
          %s267 = ssub.s32 16, 16
          %268 = vsyncadd [#allocation12], %s267
          %s270 = sshll.u32 [#allocation11], 4
          %s271 = int_to_ptr.vmem [resolvable:$true] %s270
          %273 = dma.hbm_to_vmem [thread:$0]  %s5, 16, %s271, [#allocation12]
        $region32: #{transformer_forward.13} parent=11 // pred_fallthru
          _
        // Predicated region
        $region33: #{transformer_forward.13} parent=11 // pred_check
          %p274 = pneg %p174
        $region34: #{transformer_forward.13} parent=11 // pred_check_branch
          %276 = sbr.rel (%p274) target = $region36
        $region35: #{transformer_forward.13} parent=11 // pred_region
          %s278 = ssub.s32 16, 16
          %279 = vsyncadd [#allocation12], %s278
          %s281 = sshll.u32 [#allocation13], 4
          %s282 = int_to_ptr.vmem [resolvable:$true] %s281
          %284 = dma.hbm_to_vmem [thread:$0]  %s6, 16, %s282, [#allocation12]
        $region36: #{transformer_forward.13} parent=11 // pred_fallthru
          _
      $region12: #{transformer_forward.13} parent=5 // pred_fallthru
        _
      %p285 = scmp.lt.s32.totalorder %s22, 2
      // Predicated region
      $region37: #{transformer_forward.13} parent=5 // pred_check
        %p286 = pneg %p285
      $region38: #{transformer_forward.13} parent=5 // pred_check_branch
        %288 = sbr.rel (%p286) target = $region40
      $region39: #{transformer_forward.13} parent=5 // pred_region
        // Predicated region
        $region41: #{transformer_forward.13} parent=39 // pred_check
          %p289 = pneg %p42
        $region42: #{transformer_forward.13} parent=39 // pred_check_branch
          %291 = sbr.rel (%p289) target = $region44
        $region43: #{transformer_forward.13} parent=39 // pred_region
          %s292 = sand.u32 %s32, 1
          %s293 = scalar_lea.sflag [#allocation3], %s292
          %s294 = sand.u32 %s32, 1
          %s295 = smul.addr %s294, 8
          %s296 = scalar_lea.vmem [#allocation2], %s295
          %s298 = ssub.s32 128, 128
          %299 = vsyncadd %s293, %s298
          %s300 = smul.addr %s22, 128
          %s301 = scalar_lea.hbm %s0, %s300
          %s303 = sshll.u32 %s296, 4
          %s304 = int_to_ptr.vmem [resolvable:$true] %s303
          %306 = dma.hbm_to_vmem [thread:$0]  %s301, 128, %s304, %s293
        $region44: #{transformer_forward.13} parent=39 // pred_fallthru
          _
      $region40: #{transformer_forward.13} parent=5 // pred_fallthru
        _
      %p307 = scmp.le.s32.totalorder 1, %s22
      %p308 = scmp.lt.s32.totalorder %s22, 3
      %p309 = pnand %p307, %p308
      %p310 = pneg %p309
      // Predicated region
      $region45: #{transformer_forward.13} parent=5 // pred_check
        _
      $region46: #{transformer_forward.13} parent=5 // pred_check_branch
        %312 = sbr.rel (%p309) target = $region48
      $region47: #{transformer_forward.13} parent=5 // pred_region
        %s313 = ssub.s32 %s22, 1
        %s314 = sand.u32 %s35, 1
        %s315 = scalar_lea.sflag [#allocation3], %s314
        %s316 = sand.u32 %s35, 1
        %s317 = smul.addr %s316, 8
        %s318 = scalar_lea.vmem [#allocation2], %s317
        // Predicated region
        $region49: #{transformer_forward.13} parent=47 // pred_check
          %p319 = pneg %p48
        $region50: #{transformer_forward.13} parent=47 // pred_check_branch
          %321 = sbr.rel (%p319) target = $region52
        $region51: #{transformer_forward.13} parent=47 // pred_region
          %322 = dma.done %s315, 128
        $region52: #{transformer_forward.13} parent=47 // pred_fallthru
          _
        // Predicated region
        $region53: #{transformer_forward.13} parent=47 // pred_check
          %p323 = pneg %p69
        $region54: #{transformer_forward.13} parent=47 // pred_check_branch
          %325 = sbr.rel (%p323) target = $region56
        $region55: #{transformer_forward.13} parent=47 // pred_region
          %326 = dma.done [#allocation6], 256
        $region56: #{transformer_forward.13} parent=47 // pred_fallthru
          _
        // Predicated region
        $region57: #{transformer_forward.13} parent=47 // pred_check
          %p327 = pneg %p90
        $region58: #{transformer_forward.13} parent=47 // pred_check_branch
          %329 = sbr.rel (%p327) target = $region60
        $region59: #{transformer_forward.13} parent=47 // pred_region
          %330 = dma.done [#allocation6], 16
        $region60: #{transformer_forward.13} parent=47 // pred_fallthru
          _
        // Predicated region
        $region61: #{transformer_forward.13} parent=47 // pred_check
          %p331 = pneg %p111
        $region62: #{transformer_forward.13} parent=47 // pred_check_branch
          %333 = sbr.rel (%p331) target = $region64
        $region63: #{transformer_forward.13} parent=47 // pred_region
          %334 = dma.done [#allocation9], 512
        $region64: #{transformer_forward.13} parent=47 // pred_fallthru
          _
        // Predicated region
        $region65: #{transformer_forward.13} parent=47 // pred_check
          %p335 = pneg %p132
        $region66: #{transformer_forward.13} parent=47 // pred_check_branch
          %337 = sbr.rel (%p335) target = $region68
        $region67: #{transformer_forward.13} parent=47 // pred_region
          %338 = dma.done [#allocation9], 16
        $region68: #{transformer_forward.13} parent=47 // pred_fallthru
          _
        // Predicated region
        $region69: #{transformer_forward.13} parent=47 // pred_check
          %p339 = pneg %p153
        $region70: #{transformer_forward.13} parent=47 // pred_check_branch
          %341 = sbr.rel (%p339) target = $region72
        $region71: #{transformer_forward.13} parent=47 // pred_region
          %342 = dma.done [#allocation12], 16
        $region72: #{transformer_forward.13} parent=47 // pred_fallthru
          _
        // Predicated region
        $region73: #{transformer_forward.13} parent=47 // pred_check
          %p343 = pneg %p174
        $region74: #{transformer_forward.13} parent=47 // pred_check_branch
          %345 = sbr.rel (%p343) target = $region76
        $region75: #{transformer_forward.13} parent=47 // pred_region
          %346 = dma.done [#allocation12], 16
        $region76: #{transformer_forward.13} parent=47 // pred_fallthru
          _
        %s347 = sand.u32 %s35, 1
        %s348 = scalar_lea.sflag [#allocation3], %s347
        %s349 = sand.u32 %s35, 1
        %s350 = smul.addr %s349, 8
        %s351 = scalar_lea.vmem [#allocation2], %s350
        %p352 = pneg %p48
        %p353 = pneg %p45
        %p354 = pneg %p69
        %p355 = pneg %p66
        %p356 = pneg %p90
        %p357 = pneg %p87
        %p358 = pneg %p111
        %p359 = pneg %p108
        %p360 = pneg %p132
        %p361 = pneg %p129
        %p362 = pneg %p153
        %p363 = pneg %p150
        %p364 = pneg %p174
        %p365 = pneg %p171
        %p366 = pneg %p200
        %p367 = pneg %p197
        %s368 = sand.u32 %s187, 1
        %s369 = scalar_lea.sflag [#allocation4], %s368
        %s370 = sand.u32 %s187, 1
        %s371 = smul.addr %s370, 8
        %s372 = scalar_lea.vmem [#allocation14], %s371
        %v374 = vld [vmem:[%s318] sm:$0xff]
        %v375 = vpack.c.bf16 %v374, %v374
        %v376 = vld [vmem:[#allocation5] sm:$0xf]
        %v377 = vld [vmem:[#allocation5 + $0x4] sm:$0xf]
        %v378 = vld [vmem:[#allocation5 + $0x8] sm:$0xf]
        %v379 = vld [vmem:[#allocation5 + $0xc] sm:$0xf]
        %v380 = vld [vmem:[#allocation7] sm:$0x1]
        %v382 = vlaneseq
        %v383 = vshrl.u32 %v382, 7
        %v384 = vsub.s32 0, %v383
        %v385 = vrot.slane %v380, %v384
        %v391 = vunpack.c.l.b16 %v376
        %v392 = vunpack.c.l.b16 %v377
        %v393 = vunpack.c.l.b16 %v378
        %v394 = vunpack.c.l.b16 %v379
        %v395 = vpack.c.b16 %v392, %v391
        %v396 = vpack.c.b16 %v394, %v393
        %vm399 = vcmask 261120
        %v401 = vsel %vm399, %v375, 0
        %403 = vmatprep.subr.bf16.mxu0 0
        %404 = vmatpush1.bf16.msra.mxu0 %v395
        %405 = vmatprep.subr.bf16.mxu0 0
        %406 = vmatpush1.bf16.msra.mxu0 %v396
        %407 = vmatprep.subr.bf16.mxu0 0
        %408 = vmatpush1.bf16.msra.mxu0 0
        %409 = vmatprep.subr.bf16.mxu0 0
        %410 = vmatpush1.bf16.msra.mxu0 0
        %411 = vmatprep.subr.bf16.mxu0 0
        %412 = vmatpush1.bf16.msra.mxu0 0
        %413 = vmatprep.subr.bf16.mxu0 0
        %414 = vmatpush1.bf16.msra.mxu0 0
        %415 = vmatprep.subr.bf16.mxu0 0
        %416 = vmatpush1.bf16.msra.mxu0 0
        %417 = vmatprep.subr.bf16.mxu0 0
        %418 = vmatpush1.bf16.msra.mxu0 0
        %419 = vmatprep.subr.bf16.mxu0 0
        %420 = vmatpush1.bf16.msra.mxu0 0
        %421 = vmatprep.subr.bf16.mxu0 0
        %422 = vmatpush1.bf16.msra.mxu0 0
        %423 = vmatprep.subr.bf16.mxu0 0
        %424 = vmatpush1.bf16.msra.mxu0 0
        %425 = vmatprep.subr.bf16.mxu0 0
        %426 = vmatpush1.bf16.msra.mxu0 0
        %427 = vmatprep.subr.bf16.mxu0 0
        %428 = vmatpush1.bf16.msra.mxu0 0
        %429 = vmatprep.subr.bf16.mxu0 0
        %430 = vmatpush1.bf16.msra.mxu0 0
        %431 = vmatprep.subr.bf16.mxu0 0
        %432 = vmatpush1.bf16.msra.mxu0 0
        %433 = vmatprep.subr.bf16.mxu0 0
        %434 = vmatpush1.bf16.msra.mxu0 0
        %435 = vmatprep.mubr.bf16.mxu0 0
        %436 = vmatmul.mubr.bf16.gmra.mrb[0].mxu0 %v401
        %v437 = vpop.f32.mrb[0].mxu0
        %v438 = vadd.f32 %v385, %v437
        %v439 = vpop.f32.mrb[0].mxu0
        %v440 = vpop.f32.mrb[0].mxu0
        %v441 = vpop.f32.mrb[0].mxu0
        %442 = vdwg.mxu0
        %v443 = vmax.f32 %v438, 0.0
        %v444 = vpack.c.bf16 %v443, %v443
        %v445 = vld [vmem:[#allocation8] sm:$0xf]
        %v446 = vld [vmem:[#allocation8 + $0x4] sm:$0xf]
        %v447 = vld [vmem:[#allocation8 + $0x8] sm:$0xf]
        %v448 = vld [vmem:[#allocation8 + $0xc] sm:$0xf]
        %v449 = vld [vmem:[#allocation8 + $0x10] sm:$0xf]
        %v450 = vld [vmem:[#allocation8 + $0x14] sm:$0xf]
        %v451 = vld [vmem:[#allocation8 + $0x18] sm:$0xf]
        %v452 = vld [vmem:[#allocation8 + $0x1c] sm:$0xf]
        %v453 = vld [vmem:[#allocation10] sm:$0x1]
        %v455 = vlaneseq
        %v456 = vshrl.u32 %v455, 7
        %v457 = vsub.s32 0, %v456
        %v458 = vrot.slane %v453, %v457
        %v468 = vunpack.c.l.b16 %v445
        %v469 = vunpack.c.l.b16 %v446
        %v470 = vunpack.c.l.b16 %v447
        %v471 = vunpack.c.l.b16 %v448
        %v472 = vunpack.c.l.b16 %v449
        %v473 = vunpack.c.l.b16 %v450
        %v474 = vunpack.c.l.b16 %v451
        %v475 = vunpack.c.l.b16 %v452
        %v476 = vpack.c.b16 %v469, %v468
        %v477 = vpack.c.b16 %v471, %v470
        %v478 = vpack.c.b16 %v473, %v472
        %v479 = vpack.c.b16 %v475, %v474
        %vm484 = vcmask 523264
        %v486 = vsel %vm484, %v444, 0
        %488 = vmatprep.subr.bf16.mxu0 0
        %489 = vmatpush1.bf16.msra.mxu0 %v476
        %490 = vmatprep.subr.bf16.mxu0 0
        %491 = vmatpush1.bf16.msra.mxu0 %v477
        %492 = vmatprep.subr.bf16.mxu0 0
        %493 = vmatpush1.bf16.msra.mxu0 %v478
        %494 = vmatprep.subr.bf16.mxu0 0
        %495 = vmatpush1.bf16.msra.mxu0 %v479
        %496 = vmatprep.subr.bf16.mxu0 0
        %497 = vmatpush1.bf16.msra.mxu0 0
        %498 = vmatprep.subr.bf16.mxu0 0
        %499 = vmatpush1.bf16.msra.mxu0 0
        %500 = vmatprep.subr.bf16.mxu0 0
        %501 = vmatpush1.bf16.msra.mxu0 0
        %502 = vmatprep.subr.bf16.mxu0 0
        %503 = vmatpush1.bf16.msra.mxu0 0
        %504 = vmatprep.subr.bf16.mxu0 0
        %505 = vmatpush1.bf16.msra.mxu0 0
        %506 = vmatprep.subr.bf16.mxu0 0
        %507 = vmatpush1.bf16.msra.mxu0 0
        %508 = vmatprep.subr.bf16.mxu0 0
        %509 = vmatpush1.bf16.msra.mxu0 0
        %510 = vmatprep.subr.bf16.mxu0 0
        %511 = vmatpush1.bf16.msra.mxu0 0
        %512 = vmatprep.subr.bf16.mxu0 0
        %513 = vmatpush1.bf16.msra.mxu0 0
        %514 = vmatprep.subr.bf16.mxu0 0
        %515 = vmatpush1.bf16.msra.mxu0 0
        %516 = vmatprep.subr.bf16.mxu0 0
        %517 = vmatpush1.bf16.msra.mxu0 0
        %518 = vmatprep.subr.bf16.mxu0 0
        %519 = vmatpush1.bf16.msra.mxu0 0
        %520 = vmatprep.mubr.bf16.mxu0 0
        %521 = vmatmul.mubr.bf16.gmra.mrb[0].mxu0 %v486
        %v522 = vpop.f32.mrb[0].mxu0
        %v523 = vadd.f32 %v458, %v522
        %v524 = vpop.f32.mrb[0].mxu0
        %v525 = vpop.f32.mrb[0].mxu0
        %v526 = vpop.f32.mrb[0].mxu0
        %527 = vdwg.mxu0
        %v528 = vadd.f32 %v523, %v374
        %v529 = vsel %vm399, %v528, 0.0
        %530 = vadd.xlane.f32.xlu0 %v529
        %v531 = vpop.xlane.xlu0 %530
        %v532 = vrcp.pop 32.0
        %v533 = vmul.f32 %v531, %v532
        %v534 = vsub.f32 %v528, %v533
        %v535 = vmul.f32 %v534, %v534
        %v536 = vsel %vm399, %v535, 0.0
        %537 = vadd.xlane.f32.xlu0 %v536
        %v538 = vpop.xlane.xlu0 %537
        %v539 = vmul.f32 %v538, %v532
        %v540 = vadd.f32 %v539, 1e-05
        %v541 = vrsqrt.pop %v540
        %v542 = vmul.f32 %v534, %v541
        %v543 = vld [vmem:[#allocation11] sm:$0x1]
        %v545 = vlaneseq
        %v546 = vshrl.u32 %v545, 7
        %v547 = vsub.s32 0, %v546
        %v548 = vrot.slane %v543, %v547
        %v550 = vmul.f32 %v542, %v548
        %v551 = vld [vmem:[#allocation13] sm:$0x1]
        %v553 = vlaneseq
        %v554 = vshrl.u32 %v553, 7
        %v555 = vsub.s32 0, %v554
        %v556 = vrot.slane %v551, %v555
        %v558 = vadd.f32 %v550, %v556
        %559 = vst.msk [vmem:[%s372] sm:$0xff] %vm399, %v558
        %s560 = sand.u32 %s187, 1
        %s561 = scalar_lea.sflag [#allocation4], %s560
        %s562 = sand.u32 %s187, 1
        %s563 = smul.addr %s562, 8
        %s564 = scalar_lea.vmem [#allocation14], %s563
        // Predicated region
        $region77: #{transformer_forward.13} parent=47 // pred_check
          %p565 = pneg %p197
        $region78: #{transformer_forward.13} parent=47 // pred_check_branch
          %567 = sbr.rel (%p565) target = $region80
        $region79: #{transformer_forward.13} parent=47 // pred_region
          %s569 = ssub.s32 128, 128
          %570 = vsyncadd %s561, %s569
          %s571 = smul.addr %s27, 128
          %s572 = scalar_lea.hbm %s7, %s571
          %s574 = sshll.u32 %s564, 4
          %s575 = int_to_ptr.vmem [resolvable:$true] %s574
          %577 = dma.vmem_to_hbm [thread:$0]  %s575, 128, %s572, %s561
        $region80: #{transformer_forward.13} parent=47 // pred_fallthru
          _
      $region48: #{transformer_forward.13} parent=5 // pred_fallthru
        _
      %p578 = scmp.le.s32.totalorder 2, %s22
      // Predicated region
      $region81: #{transformer_forward.13} parent=5 // pred_check
        %p579 = pneg %p578
      $region82: #{transformer_forward.13} parent=5 // pred_check_branch
        %581 = sbr.rel (%p579) target = $region84
      $region83: #{transformer_forward.13} parent=5 // pred_region
        %s582 = ssub.s32 %s22, 2
        // Predicated region
        $region85: #{transformer_forward.13} parent=83 // pred_check
          %p583 = pneg %p203
        $region86: #{transformer_forward.13} parent=83 // pred_check_branch
          %585 = sbr.rel (%p583) target = $region88
        $region87: #{transformer_forward.13} parent=83 // pred_region
          %s586 = sand.u32 %s188, 1
          %s587 = scalar_lea.sflag [#allocation4], %s586
          %s588 = sand.u32 %s188, 1
          %s589 = smul.addr %s588, 8
          %s590 = scalar_lea.vmem [#allocation14], %s589
          %591 = dma.done %s587, 128
        $region88: #{transformer_forward.13} parent=83 // pred_fallthru
          _
      $region84: #{transformer_forward.13} parent=5 // pred_fallthru
        _
    $region6: #{transformer_forward.13} parent=1 // loop_footer
      %s26 = sadd.s32 1, %s22
    $region7: #{transformer_forward.13} parent=1 // loop_footer_branch
      %21 = sbr.rel target = $region3
    $region8: #{transformer_forward.13} parent=1 // loop_exit
      _
    %592 = vsyncpa [#allocation3], 1
    %s593 = scalar_lea.sflag [#allocation3], 1
    %594 = vsyncpa %s593, 1
    %595 = vsyncpa [#allocation6], 1
    %596 = vsyncpa [#allocation9], 1
    %597 = vsyncpa [#allocation12], 1
    %598 = vsyncpa [#allocation4], 1
    %s599 = scalar_lea.sflag [#allocation4], 1
    %600 = vsyncpa %s599, 1

// kernel: transformer_forward.12
$region0: #{transformer_forward.12}
  #allocation0 [shape = 'u32[]', space=smem, size = 0x4, offset = 0x4, fixed_abs, tag = 'smem constant byte address 0x4 - core index']
  #allocation1 [shape = 'u32[144,128]{1,0:T(1,128)}', space=vmem, size = 0x12000, scoped, tag = 'internal scratch']
  #allocation2 [shape = 'f32[8,8]{1,0:T(8,128)}', space=vmem, size = 0x1000, scoped, tag = 'scratch operand']
  #allocation3 [shape = 'f32[8,32]{1,0:T(8,128)}', space=vmem, size = 0x1000, scoped, tag = 'scratch operand']
  %s0 = inlined_call_operand.hbm [shape: f32[2,8,32], index: 0, kind: input, shape index: {}, may-alias: {0,1}]
  %s1 = inlined_call_operand.hbm [shape: f32[2,8,32], index: 1, kind: input, shape index: {}, may-alias: {0,1}]
  %s2 = inlined_call_operand.hbm [shape: s32[2,1,8], index: 2, kind: input, shape index: {}]
  %s3 = inlined_call_operand.hbm [shape: bf16[4,32,8], index: 3, kind: input, shape index: {}]
  %s4 = inlined_call_operand.hbm [shape: bf16[4,32,8], index: 4, kind: input, shape index: {}]
  %s5 = inlined_call_operand.hbm [shape: bf16[4,32,8], index: 5, kind: input, shape index: {}]
  %s6 = inlined_call_operand.hbm [shape: f32[4,1,8], index: 6, kind: input, shape index: {}]
  %s7 = inlined_call_operand.hbm [shape: f32[4,1,8], index: 7, kind: input, shape index: {}]
  %s8 = inlined_call_operand.hbm [shape: f32[4,1,8], index: 8, kind: input, shape index: {}]
  %s9 = inlined_call_operand.hbm [shape: bf16[4,8,32], index: 9, kind: input, shape index: {}]
  %s10 = inlined_call_operand.hbm [shape: f32[1,32], index: 10, kind: input, shape index: {}]
  %s11 = inlined_call_operand.hbm [shape: f32[1,32], index: 11, kind: input, shape index: {}]
  %s12 = inlined_call_operand.hbm [shape: f32[1,32], index: 12, kind: input, shape index: {}]
  %s13 = inlined_call_operand.hbm [shape: f32[2,8,32], index: 13, kind: output, shape index: {0}]
  %s14 = inlined_call_operand.hbm [shape: bf16[2,4,8,8], index: 14, kind: output, shape index: {1}]
  %15 = xla_tuple %s13, %s14
  %s16 = sld [smem:[#allocation0]]
  $region153: #{transformer_forward.12} parent=0
    _
  %s18 = ssub.s32 1, %s16
  %s19 = scalar_select 0, %s18, %s16
  $region1: #{transformer_forward.12} parent=0
    #allocation4 [shape = 'u8[8192]{0}', space=vmem, size = 0x2000, scoped, tag = 'input window, operand 0']
    #allocation5 [shape = 's32[2]{0}', space=sflag, size = 0x8, scoped, tag = 'scoped memory for transformer_forward.12']
    #allocation6 [shape = 's32[2]{0}', space=sflag, size = 0x8, scoped, tag = 'scoped memory for transformer_forward.12']
    #allocation7 [shape = 'u8[8192]{0}', space=vmem, size = 0x2000, scoped, tag = 'input window, operand 1']
    #allocation8 [shape = 's32[2]{0}', space=sflag, size = 0x8, scoped, tag = 'scoped memory for transformer_forward.12']
    #allocation9 [shape = 'u8[1024]{0}', space=vmem, size = 0x400, scoped, tag = 'input window, operand 2']
    #allocation10 [shape = 'u8[16384]{0}', space=vmem, size = 0x4000, scoped, tag = 'input window, operand 3']
    #allocation11 [shape = 's32[2]{0}', space=sflag, size = 0x8, scoped, tag = 'scoped memory for transformer_forward.12']
    #allocation12 [shape = 'u8[16384]{0}', space=vmem, size = 0x4000, scoped, tag = 'input window, operand 4']
    #allocation13 [shape = 'u8[16384]{0}', space=vmem, size = 0x4000, scoped, tag = 'input window, operand 5']
    #allocation14 [shape = 's32[2]{0}', space=sflag, size = 0x8, scoped, tag = 'scoped memory for transformer_forward.12']
    #allocation15 [shape = 'u8[1024]{0}', space=vmem, size = 0x400, scoped, tag = 'input window, operand 6']
    #allocation16 [shape = 'u8[1024]{0}', space=vmem, size = 0x400, scoped, tag = 'input window, operand 7']
    #allocation17 [shape = 's32[2]{0}', space=sflag, size = 0x8, scoped, tag = 'scoped memory for transformer_forward.12']
    #allocation18 [shape = 'u8[1024]{0}', space=vmem, size = 0x400, scoped, tag = 'input window, operand 8']
    #allocation19 [shape = 'u8[4096]{0}', space=vmem, size = 0x1000, scoped, tag = 'input window, operand 9']
    #allocation20 [shape = 's32[2]{0}', space=sflag, size = 0x8, scoped, tag = 'scoped memory for transformer_forward.12']
    #allocation21 [shape = 'u8[512]{0}', space=vmem, size = 0x400, scoped, tag = 'input window, operand 10, single buffered']
    #allocation22 [shape = 'u8[512]{0}', space=vmem, size = 0x400, scoped, tag = 'input window, operand 11, single buffered']
    #allocation23 [shape = 's32[1]{0}', space=sflag, size = 0x4, scoped, tag = 'scoped memory for transformer_forward.12']
    #allocation24 [shape = 'u8[512]{0}', space=vmem, size = 0x400, scoped, tag = 'input window, operand 12, single buffered']
    #allocation25 [shape = 'u8[8192]{0}', space=vmem, size = 0x2000, scoped, tag = 'output window, operand 0']
    #allocation26 [shape = 'u8[4096]{0}', space=vmem, size = 0x1000, scoped, tag = 'output window, operand 1']
    #allocation27 [shape = 's32[2]{0}', space=sflag, size = 0x8, scoped, tag = 'scoped memory for transformer_forward.12']
    %20 = vsyncpa [#allocation5], 0
    %s21 = scalar_lea.sflag [#allocation5], 1
    %22 = vsyncpa %s21, 0
    %23 = vsyncpa [#allocation8], 0
    %s24 = scalar_lea.sflag [#allocation8], 1
    %25 = vsyncpa %s24, 0
    %26 = vsyncpa [#allocation11], 0
    %s27 = scalar_lea.sflag [#allocation11], 1
    %28 = vsyncpa %s27, 0
    %29 = vsyncpa [#allocation14], 0
    %s30 = scalar_lea.sflag [#allocation14], 1
    %31 = vsyncpa %s30, 0
    %32 = vsyncpa [#allocation17], 0
    %s33 = scalar_lea.sflag [#allocation17], 1
    %34 = vsyncpa %s33, 0
    %35 = vsyncpa [#allocation20], 0
    %s36 = scalar_lea.sflag [#allocation20], 1
    %37 = vsyncpa %s36, 0
    %38 = vsyncpa [#allocation23], 0
    %39 = vsyncpa [#allocation6], 0
    %s40 = scalar_lea.sflag [#allocation6], 1
    %41 = vsyncpa %s40, 0
    %42 = vsyncpa [#allocation27], 0
    %s43 = scalar_lea.sflag [#allocation27], 1
    %44 = vsyncpa %s43, 0
    loop: start=0, step=1, limit=10
    $region2: #{transformer_forward.12} parent=1 // loop_pre_header
      _
    $region3: #{transformer_forward.12} parent=1 // loop_header
      %s46 = sphi 0, %s50
      %p47 = scmp.ge.s32.totalorder %s46, 10
      %s53 = sphi 0, %s65
      %s54 = sphi 0, %s61
      %s55 = sphi 0, %s53
      %s56 = sphi 0, %s54
      %s57 = sphi 0, %s55
      %s58 = sphi 0, %s56
      %s68 = sphi 0, %s70
      %s71 = sphi 0, %s68
      %s72 = sphi 0, %s71
      %s88 = sphi 0, %s72
      %s94 = sphi 0, %s96
      %s97 = sphi 0, %s94
      %s98 = sphi 0, %s97
      %s114 = sphi 0, %s98
      %s120 = sphi 0, %s122
      %s123 = sphi 0, %s120
      %s124 = sphi 0, %s123
      %s140 = sphi 0, %s124
      %s146 = sphi 0, %s148
      %s149 = sphi 0, %s146
      %s150 = sphi 0, %s149
      %s166 = sphi 0, %s150
      %s172 = sphi 0, %s174
      %s175 = sphi 0, %s172
      %s176 = sphi 0, %s175
      %s192 = sphi 0, %s176
      %s198 = sphi 0, %s200
      %s201 = sphi 0, %s198
      %s202 = sphi 0, %s201
      %s218 = sphi 0, %s202
      %s224 = sphi 0, %s226
      %s227 = sphi 0, %s224
      %s228 = sphi 0, %s227
      %s244 = sphi 0, %s228
      %s250 = sphi 0, %s252
      %s253 = sphi 0, %s250
      %s254 = sphi 0, %s253
      %s270 = sphi 0, %s254
      %s276 = sphi 0, %s278
      %s279 = sphi 0, %s276
      %s280 = sphi 0, %s279
      %s296 = sphi 0, %s280
      %s302 = sphi 0, %s304
      %s305 = sphi 0, %s302
      %s306 = sphi 0, %s305
      %s322 = sphi 0, %s306
      %s326 = sphi 0, %s326
      %s328 = sphi 0, %s326
      %s329 = sphi 0, %s328
      %s343 = sphi 0, %s329
      %s347 = sphi 0, %s347
      %s349 = sphi 0, %s347
      %s350 = sphi 0, %s349
      %s364 = sphi 0, %s350
      %s368 = sphi 0, %s368
      %s370 = sphi 0, %s368
      %s371 = sphi 0, %s370
      %s385 = sphi 0, %s371
      %s391 = sphi 0, %s393
      %s394 = sphi 0, %s391
      %s395 = sphi 0, %s394
      %s411 = sphi 0, %s395
      %s419 = sphi 0, %s421
      %s422 = sphi 0, %s419
      %s423 = sphi 0, %s422
      %s439 = sphi 0, %s423
    $region4: #{transformer_forward.12} parent=1 // loop_header_branch
      %49 = sbr.rel (%p47) target = $region8
    $region5: #{transformer_forward.12} parent=1 // loop_body
      %s51 = ssub.s32 %s46, 1
      %s52 = ssub.s32 %s46, 2
      %s59 = sadd.s32 1, %s54
      %p60 = scmp.ge.s32.totalorder %s59, 4
      %s61 = scalar_select %p60, 0, %s59
      %s62 = sadd.s32 1, %s53
      %s63 = scalar_select %p60, %s62, %s53
      %p64 = scmp.ge.s32.totalorder %s63, 2
      %s65 = scalar_select %p64, 0, %s63
      %s66 = ssub.s32 %s53, %s65
      %p67 = scmp.eq.s32.totalorder %s66, 0
      %s69 = sadd.s32 %s68, 1
      %s70 = scalar_select %p67, %s68, %s69
      %p73 = pneg %p67
      %p74 = scmp.eq.s32.totalorder %s46, 7
      %p75 = por %p73, %p74
      %p76 = scmp.ne.s32.totalorder %s68, %s71
      %p77 = scmp.eq.s32.totalorder %s46, 0
      %p78 = por %p76, %p77
      %p79 = scmp.ne.s32.totalorder %s68, %s71
      %p80 = scmp.eq.s32.totalorder %s51, 7
      %p81 = por %p79, %p80
      %p82 = scmp.ne.s32.totalorder %s71, %s72
      %p83 = scmp.eq.s32.totalorder %s51, 0
      %p84 = por %p82, %p83
      %p85 = scmp.ne.s32.totalorder %s71, %s72
      %p86 = scmp.eq.s32.totalorder %s52, 7
      %p87 = por %p85, %p86
      %p89 = scmp.ne.s32.totalorder %s72, %s88
      %p90 = scmp.eq.s32.totalorder %s52, 0
      %p91 = por %p89, %p90
      %s92 = ssub.s32 %s53, %s65
      %p93 = scmp.eq.s32.totalorder %s92, 0
      %s95 = sadd.s32 %s94, 1
      %s96 = scalar_select %p93, %s94, %s95
      %p99 = pneg %p93
      %p100 = scmp.eq.s32.totalorder %s46, 7
      %p101 = por %p99, %p100
      %p102 = scmp.ne.s32.totalorder %s94, %s97
      %p103 = scmp.eq.s32.totalorder %s46, 0
      %p104 = por %p102, %p103
      %p105 = scmp.ne.s32.totalorder %s94, %s97
      %p106 = scmp.eq.s32.totalorder %s51, 7
      %p107 = por %p105, %p106
      %p108 = scmp.ne.s32.totalorder %s97, %s98
      %p109 = scmp.eq.s32.totalorder %s51, 0
      %p110 = por %p108, %p109
      %p111 = scmp.ne.s32.totalorder %s97, %s98
      %p112 = scmp.eq.s32.totalorder %s52, 7
      %p113 = por %p111, %p112
      %p115 = scmp.ne.s32.totalorder %s98, %s114
      %p116 = scmp.eq.s32.totalorder %s52, 0
      %p117 = por %p115, %p116
      %s118 = ssub.s32 %s53, %s65
      %p119 = scmp.eq.s32.totalorder %s118, 0
      %s121 = sadd.s32 %s120, 1
      %s122 = scalar_select %p119, %s120, %s121
      %p125 = pneg %p119
      %p126 = scmp.eq.s32.totalorder %s46, 7
      %p127 = por %p125, %p126
      %p128 = scmp.ne.s32.totalorder %s120, %s123
      %p129 = scmp.eq.s32.totalorder %s46, 0
      %p130 = por %p128, %p129
      %p131 = scmp.ne.s32.totalorder %s120, %s123
      %p132 = scmp.eq.s32.totalorder %s51, 7
      %p133 = por %p131, %p132
      %p134 = scmp.ne.s32.totalorder %s123, %s124
      %p135 = scmp.eq.s32.totalorder %s51, 0
      %p136 = por %p134, %p135
      %p137 = scmp.ne.s32.totalorder %s123, %s124
      %p138 = scmp.eq.s32.totalorder %s52, 7
      %p139 = por %p137, %p138
      %p141 = scmp.ne.s32.totalorder %s124, %s140
      %p142 = scmp.eq.s32.totalorder %s52, 0
      %p143 = por %p141, %p142
      %s144 = ssub.s32 %s54, %s61
      %p145 = scmp.eq.s32.totalorder %s144, 0
      %s147 = sadd.s32 %s146, 1
      %s148 = scalar_select %p145, %s146, %s147
      %p151 = pneg %p145
      %p152 = scmp.eq.s32.totalorder %s46, 7
      %p153 = por %p151, %p152
      %p154 = scmp.ne.s32.totalorder %s146, %s149
      %p155 = scmp.eq.s32.totalorder %s46, 0
      %p156 = por %p154, %p155
      %p157 = scmp.ne.s32.totalorder %s146, %s149
      %p158 = scmp.eq.s32.totalorder %s51, 7
      %p159 = por %p157, %p158
      %p160 = scmp.ne.s32.totalorder %s149, %s150
      %p161 = scmp.eq.s32.totalorder %s51, 0
      %p162 = por %p160, %p161
      %p163 = scmp.ne.s32.totalorder %s149, %s150
      %p164 = scmp.eq.s32.totalorder %s52, 7
      %p165 = por %p163, %p164
      %p167 = scmp.ne.s32.totalorder %s150, %s166
      %p168 = scmp.eq.s32.totalorder %s52, 0
      %p169 = por %p167, %p168
      %s170 = ssub.s32 %s54, %s61
      %p171 = scmp.eq.s32.totalorder %s170, 0
      %s173 = sadd.s32 %s172, 1
      %s174 = scalar_select %p171, %s172, %s173
      %p177 = pneg %p171
      %p178 = scmp.eq.s32.totalorder %s46, 7
      %p179 = por %p177, %p178
      %p180 = scmp.ne.s32.totalorder %s172, %s175
      %p181 = scmp.eq.s32.totalorder %s46, 0
      %p182 = por %p180, %p181
      %p183 = scmp.ne.s32.totalorder %s172, %s175
      %p184 = scmp.eq.s32.totalorder %s51, 7
      %p185 = por %p183, %p184
      %p186 = scmp.ne.s32.totalorder %s175, %s176
      %p187 = scmp.eq.s32.totalorder %s51, 0
      %p188 = por %p186, %p187
      %p189 = scmp.ne.s32.totalorder %s175, %s176
      %p190 = scmp.eq.s32.totalorder %s52, 7
      %p191 = por %p189, %p190
      %p193 = scmp.ne.s32.totalorder %s176, %s192
      %p194 = scmp.eq.s32.totalorder %s52, 0
      %p195 = por %p193, %p194
      %s196 = ssub.s32 %s54, %s61
      %p197 = scmp.eq.s32.totalorder %s196, 0
      %s199 = sadd.s32 %s198, 1
      %s200 = scalar_select %p197, %s198, %s199
      %p203 = pneg %p197
      %p204 = scmp.eq.s32.totalorder %s46, 7
      %p205 = por %p203, %p204
      %p206 = scmp.ne.s32.totalorder %s198, %s201
      %p207 = scmp.eq.s32.totalorder %s46, 0
      %p208 = por %p206, %p207
      %p209 = scmp.ne.s32.totalorder %s198, %s201
      %p210 = scmp.eq.s32.totalorder %s51, 7
      %p211 = por %p209, %p210
      %p212 = scmp.ne.s32.totalorder %s201, %s202
      %p213 = scmp.eq.s32.totalorder %s51, 0
      %p214 = por %p212, %p213
      %p215 = scmp.ne.s32.totalorder %s201, %s202
      %p216 = scmp.eq.s32.totalorder %s52, 7
      %p217 = por %p215, %p216
      %p219 = scmp.ne.s32.totalorder %s202, %s218
      %p220 = scmp.eq.s32.totalorder %s52, 0
      %p221 = por %p219, %p220
      %s222 = ssub.s32 %s54, %s61
      %p223 = scmp.eq.s32.totalorder %s222, 0
      %s225 = sadd.s32 %s224, 1
      %s226 = scalar_select %p223, %s224, %s225
      %p229 = pneg %p223
      %p230 = scmp.eq.s32.totalorder %s46, 7
      %p231 = por %p229, %p230
      %p232 = scmp.ne.s32.totalorder %s224, %s227
      %p233 = scmp.eq.s32.totalorder %s46, 0
      %p234 = por %p232, %p233
      %p235 = scmp.ne.s32.totalorder %s224, %s227
      %p236 = scmp.eq.s32.totalorder %s51, 7
      %p237 = por %p235, %p236
      %p238 = scmp.ne.s32.totalorder %s227, %s228
      %p239 = scmp.eq.s32.totalorder %s51, 0
      %p240 = por %p238, %p239
      %p241 = scmp.ne.s32.totalorder %s227, %s228
      %p242 = scmp.eq.s32.totalorder %s52, 7
      %p243 = por %p241, %p242
      %p245 = scmp.ne.s32.totalorder %s228, %s244
      %p246 = scmp.eq.s32.totalorder %s52, 0
      %p247 = por %p245, %p246
      %s248 = ssub.s32 %s54, %s61
      %p249 = scmp.eq.s32.totalorder %s248, 0
      %s251 = sadd.s32 %s250, 1
      %s252 = scalar_select %p249, %s250, %s251
      %p255 = pneg %p249
      %p256 = scmp.eq.s32.totalorder %s46, 7
      %p257 = por %p255, %p256
      %p258 = scmp.ne.s32.totalorder %s250, %s253
      %p259 = scmp.eq.s32.totalorder %s46, 0
      %p260 = por %p258, %p259
      %p261 = scmp.ne.s32.totalorder %s250, %s253
      %p262 = scmp.eq.s32.totalorder %s51, 7
      %p263 = por %p261, %p262
      %p264 = scmp.ne.s32.totalorder %s253, %s254
      %p265 = scmp.eq.s32.totalorder %s51, 0
      %p266 = por %p264, %p265
      %p267 = scmp.ne.s32.totalorder %s253, %s254
      %p268 = scmp.eq.s32.totalorder %s52, 7
      %p269 = por %p267, %p268
      %p271 = scmp.ne.s32.totalorder %s254, %s270
      %p272 = scmp.eq.s32.totalorder %s52, 0
      %p273 = por %p271, %p272
      %s274 = ssub.s32 %s54, %s61
      %p275 = scmp.eq.s32.totalorder %s274, 0
      %s277 = sadd.s32 %s276, 1
      %s278 = scalar_select %p275, %s276, %s277
      %p281 = pneg %p275
      %p282 = scmp.eq.s32.totalorder %s46, 7
      %p283 = por %p281, %p282
      %p284 = scmp.ne.s32.totalorder %s276, %s279
      %p285 = scmp.eq.s32.totalorder %s46, 0
      %p286 = por %p284, %p285
      %p287 = scmp.ne.s32.totalorder %s276, %s279
      %p288 = scmp.eq.s32.totalorder %s51, 7
      %p289 = por %p287, %p288
      %p290 = scmp.ne.s32.totalorder %s279, %s280
      %p291 = scmp.eq.s32.totalorder %s51, 0
      %p292 = por %p290, %p291
      %p293 = scmp.ne.s32.totalorder %s279, %s280
      %p294 = scmp.eq.s32.totalorder %s52, 7
      %p295 = por %p293, %p294
      %p297 = scmp.ne.s32.totalorder %s280, %s296
      %p298 = scmp.eq.s32.totalorder %s52, 0
      %p299 = por %p297, %p298
      %s300 = ssub.s32 %s54, %s61
      %p301 = scmp.eq.s32.totalorder %s300, 0
      %s303 = sadd.s32 %s302, 1
      %s304 = scalar_select %p301, %s302, %s303
      %p307 = pneg %p301
      %p308 = scmp.eq.s32.totalorder %s46, 7
      %p309 = por %p307, %p308
      %p310 = scmp.ne.s32.totalorder %s302, %s305
      %p311 = scmp.eq.s32.totalorder %s46, 0
      %p312 = por %p310, %p311
      %p313 = scmp.ne.s32.totalorder %s302, %s305
      %p314 = scmp.eq.s32.totalorder %s51, 7
      %p315 = por %p313, %p314
      %p316 = scmp.ne.s32.totalorder %s305, %s306
      %p317 = scmp.eq.s32.totalorder %s51, 0
      %p318 = por %p316, %p317
      %p319 = scmp.ne.s32.totalorder %s305, %s306
      %p320 = scmp.eq.s32.totalorder %s52, 7
      %p321 = por %p319, %p320
      %p323 = scmp.ne.s32.totalorder %s306, %s322
      %p324 = scmp.eq.s32.totalorder %s52, 0
      %p325 = por %p323, %p324
      %s327 = sadd.s32 %s326, 1
      %p330 = scmp.eq.s32.totalorder %s46, 7
      %p331 = scmp.ne.s32.totalorder %s326, %s328
      %p332 = scmp.eq.s32.totalorder %s46, 0
      %p333 = por %p331, %p332
      %p334 = scmp.ne.s32.totalorder %s326, %s328
      %p335 = scmp.eq.s32.totalorder %s51, 7
      %p336 = por %p334, %p335
      %p337 = scmp.ne.s32.totalorder %s328, %s329
      %p338 = scmp.eq.s32.totalorder %s51, 0
      %p339 = por %p337, %p338
      %p340 = scmp.ne.s32.totalorder %s328, %s329
      %p341 = scmp.eq.s32.totalorder %s52, 7
      %p342 = por %p340, %p341
      %p344 = scmp.ne.s32.totalorder %s329, %s343
      %p345 = scmp.eq.s32.totalorder %s52, 0
      %p346 = por %p344, %p345
      %s348 = sadd.s32 %s347, 1
      %p351 = scmp.eq.s32.totalorder %s46, 7
      %p352 = scmp.ne.s32.totalorder %s347, %s349
      %p353 = scmp.eq.s32.totalorder %s46, 0
      %p354 = por %p352, %p353
      %p355 = scmp.ne.s32.totalorder %s347, %s349
      %p356 = scmp.eq.s32.totalorder %s51, 7
      %p357 = por %p355, %p356
      %p358 = scmp.ne.s32.totalorder %s349, %s350
      %p359 = scmp.eq.s32.totalorder %s51, 0
      %p360 = por %p358, %p359
      %p361 = scmp.ne.s32.totalorder %s349, %s350
      %p362 = scmp.eq.s32.totalorder %s52, 7
      %p363 = por %p361, %p362
      %p365 = scmp.ne.s32.totalorder %s350, %s364
      %p366 = scmp.eq.s32.totalorder %s52, 0
      %p367 = por %p365, %p366
      %s369 = sadd.s32 %s368, 1
      %p372 = scmp.eq.s32.totalorder %s46, 7
      %p373 = scmp.ne.s32.totalorder %s368, %s370
      %p374 = scmp.eq.s32.totalorder %s46, 0
      %p375 = por %p373, %p374
      %p376 = scmp.ne.s32.totalorder %s368, %s370
      %p377 = scmp.eq.s32.totalorder %s51, 7
      %p378 = por %p376, %p377
      %p379 = scmp.ne.s32.totalorder %s370, %s371
      %p380 = scmp.eq.s32.totalorder %s51, 0
      %p381 = por %p379, %p380
      %p382 = scmp.ne.s32.totalorder %s370, %s371
      %p383 = scmp.eq.s32.totalorder %s52, 7
      %p384 = por %p382, %p383
      %p386 = scmp.ne.s32.totalorder %s371, %s385
      %p387 = scmp.eq.s32.totalorder %s52, 0
      %p388 = por %p386, %p387
      %s389 = ssub.s32 %s53, %s65
      %p390 = scmp.eq.s32.totalorder %s389, 0
      %s392 = sadd.s32 %s391, 1
      %s393 = scalar_select %p390, %s391, %s392
      %p396 = pneg %p390
      %p397 = scmp.eq.s32.totalorder %s46, 7
      %p398 = por %p396, %p397
      %p399 = scmp.ne.s32.totalorder %s391, %s394
      %p400 = scmp.eq.s32.totalorder %s46, 0
      %p401 = por %p399, %p400
      %p402 = scmp.ne.s32.totalorder %s391, %s394
      %p403 = scmp.eq.s32.totalorder %s51, 7
      %p404 = por %p402, %p403
      %p405 = scmp.ne.s32.totalorder %s394, %s395
      %p406 = scmp.eq.s32.totalorder %s51, 0
      %p407 = por %p405, %p406
      %p408 = scmp.ne.s32.totalorder %s394, %s395
      %p409 = scmp.eq.s32.totalorder %s52, 7
      %p410 = por %p408, %p409
      %p412 = scmp.ne.s32.totalorder %s395, %s411
      %p413 = scmp.eq.s32.totalorder %s52, 0
      %p414 = por %p412, %p413
      %s415 = ssub.s32 %s53, %s65
      %s416 = ssub.s32 %s54, %s61
      %s417 = sor.u32 %s415, %s416
      %p418 = scmp.eq.s32.totalorder %s417, 0
      %s420 = sadd.s32 %s419, 1
      %s421 = scalar_select %p418, %s419, %s420
      %p424 = pneg %p418
      %p425 = scmp.eq.s32.totalorder %s46, 7
      %p426 = por %p424, %p425
      %p427 = scmp.ne.s32.totalorder %s419, %s422
      %p428 = scmp.eq.s32.totalorder %s46, 0
      %p429 = por %p427, %p428
      %p430 = scmp.ne.s32.totalorder %s419, %s422
      %p431 = scmp.eq.s32.totalorder %s51, 7
      %p432 = por %p430, %p431
      %p433 = scmp.ne.s32.totalorder %s422, %s423
      %p434 = scmp.eq.s32.totalorder %s51, 0
      %p435 = por %p433, %p434
      %p436 = scmp.ne.s32.totalorder %s422, %s423
      %p437 = scmp.eq.s32.totalorder %s52, 7
      %p438 = por %p436, %p437
      %p440 = scmp.ne.s32.totalorder %s423, %s439
      %p441 = scmp.eq.s32.totalorder %s52, 0
      %p442 = por %p440, %p441
      %p443 = scmp.le.s32.totalorder 1, %s46
      %p444 = scmp.lt.s32.totalorder %s46, 9
      %p445 = pnand %p443, %p444
      %p446 = pneg %p445
      // Predicated region
      $region9: #{transformer_forward.12} parent=5 // pred_check
        _
      $region10: #{transformer_forward.12} parent=5 // pred_check_branch
        %448 = sbr.rel (%p445) target = $region12
      $region11: #{transformer_forward.12} parent=5 // pred_region
        %s449 = ssub.s32 %s46, 1
        // Predicated region
        $region13: #{transformer_forward.12} parent=11 // pred_check
          %p450 = pneg %p339
        $region14: #{transformer_forward.12} parent=11 // pred_check_branch
          %452 = sbr.rel (%p450) target = $region16
        $region15: #{transformer_forward.12} parent=11 // pred_region
          %s454 = ssub.s32 16, 16
          %455 = vsyncadd [#allocation20], %s454
          %s457 = sshll.u32 [#allocation21], 4
          %s458 = int_to_ptr.vmem [resolvable:$true] %s457
          %460 = dma.hbm_to_vmem [thread:$0]  %s10, 16, %s458, [#allocation20]
        $region16: #{transformer_forward.12} parent=11 // pred_fallthru
          _
        // Predicated region
        $region17: #{transformer_forward.12} parent=11 // pred_check
          %p461 = pneg %p360
        $region18: #{transformer_forward.12} parent=11 // pred_check_branch
          %463 = sbr.rel (%p461) target = $region20
        $region19: #{transformer_forward.12} parent=11 // pred_region
          %s465 = ssub.s32 16, 16
          %466 = vsyncadd [#allocation23], %s465
          %s468 = sshll.u32 [#allocation22], 4
          %s469 = int_to_ptr.vmem [resolvable:$true] %s468
          %471 = dma.hbm_to_vmem [thread:$0]  %s11, 16, %s469, [#allocation23]
        $region20: #{transformer_forward.12} parent=11 // pred_fallthru
          _
        // Predicated region
        $region21: #{transformer_forward.12} parent=11 // pred_check
          %p472 = pneg %p381
        $region22: #{transformer_forward.12} parent=11 // pred_check_branch
          %474 = sbr.rel (%p472) target = $region24
        $region23: #{transformer_forward.12} parent=11 // pred_region
          %s476 = ssub.s32 16, 16
          %477 = vsyncadd [#allocation23], %s476
          %s479 = sshll.u32 [#allocation24], 4
          %s480 = int_to_ptr.vmem [resolvable:$true] %s479
          %482 = dma.hbm_to_vmem [thread:$0]  %s12, 16, %s480, [#allocation23]
        $region24: #{transformer_forward.12} parent=11 // pred_fallthru
          _
      $region12: #{transformer_forward.12} parent=5 // pred_fallthru
        _
      %p483 = scmp.lt.s32.totalorder %s46, 8
      // Predicated region
      $region25: #{transformer_forward.12} parent=5 // pred_check
        %p484 = pneg %p483
      $region26: #{transformer_forward.12} parent=5 // pred_check_branch
        %486 = sbr.rel (%p484) target = $region28
      $region27: #{transformer_forward.12} parent=5 // pred_region
        // Predicated region
        $region29: #{transformer_forward.12} parent=27 // pred_check
          %p487 = pneg %p78
        $region30: #{transformer_forward.12} parent=27 // pred_check_branch
          %489 = sbr.rel (%p487) target = $region32
        $region31: #{transformer_forward.12} parent=27 // pred_region
          %s490 = sand.u32 %s68, 1
          %s491 = scalar_lea.sflag [#allocation5], %s490
          %s492 = sand.u32 %s68, 1
          %s493 = smul.addr %s492, 8
          %s494 = scalar_lea.vmem [#allocation4], %s493
          %s496 = ssub.s32 128, 128
          %497 = vsyncadd %s491, %s496
          %s498 = smul.addr %s53, 128
          %s499 = scalar_lea.hbm %s0, %s498
          %s501 = sshll.u32 %s494, 4
          %s502 = int_to_ptr.vmem [resolvable:$true] %s501
          %504 = dma.hbm_to_vmem [thread:$0]  %s499, 128, %s502, %s491
        $region32: #{transformer_forward.12} parent=27 // pred_fallthru
          _
        // Predicated region
        $region33: #{transformer_forward.12} parent=27 // pred_check
          %p505 = pneg %p104
        $region34: #{transformer_forward.12} parent=27 // pred_check_branch
          %507 = sbr.rel (%p505) target = $region36
        $region35: #{transformer_forward.12} parent=27 // pred_region
          %s508 = sand.u32 %s46, 1
          %s509 = scalar_lea.sflag [#allocation8], %s508
          %s510 = sand.u32 %s94, 1
          %s511 = smul.addr %s510, 8
          %s512 = scalar_lea.vmem [#allocation7], %s511
          %s514 = ssub.s32 128, 128
          %515 = vsyncadd %s509, %s514
          %s516 = smul.addr %s53, 128
          %s517 = scalar_lea.hbm %s1, %s516
          %s519 = sshll.u32 %s512, 4
          %s520 = int_to_ptr.vmem [resolvable:$true] %s519
          %522 = dma.hbm_to_vmem [thread:$0]  %s517, 128, %s520, %s509
        $region36: #{transformer_forward.12} parent=27 // pred_fallthru
          _
        // Predicated region
        $region37: #{transformer_forward.12} parent=27 // pred_check
          %p523 = pneg %p130
        $region38: #{transformer_forward.12} parent=27 // pred_check_branch
          %525 = sbr.rel (%p523) target = $region40
        $region39: #{transformer_forward.12} parent=27 // pred_region
          %s526 = sand.u32 %s46, 1
          %s527 = scalar_lea.sflag [#allocation8], %s526
          %s528 = sand.u32 %s120, 1
          %s529 = scalar_lea.vmem [#allocation9], %s528
          %s531 = ssub.s32 16, 16
          %532 = vsyncadd %s527, %s531
          %s533 = smul.addr %s53, 16
          %s534 = scalar_lea.hbm %s2, %s533
          %s536 = sshll.u32 %s529, 4
          %s537 = int_to_ptr.vmem [resolvable:$true] %s536
          %539 = dma.hbm_to_vmem [thread:$0]  %s534, 16, %s537, %s527
        $region40: #{transformer_forward.12} parent=27 // pred_fallthru
          _
        // Predicated region
        $region41: #{transformer_forward.12} parent=27 // pred_check
          %p540 = pneg %p156
        $region42: #{transformer_forward.12} parent=27 // pred_check_branch
          %542 = sbr.rel (%p540) target = $region44
        $region43: #{transformer_forward.12} parent=27 // pred_region
          %s543 = sand.u32 %s46, 1
          %s544 = scalar_lea.sflag [#allocation11], %s543
          %s545 = sand.u32 %s146, 1
          %s546 = smul.addr %s545, 16
          %s547 = scalar_lea.vmem [#allocation10], %s546
          %s549 = ssub.s32 256, 256
          %550 = vsyncadd %s544, %s549
          %s551 = smul.addr %s54, 4
          %s552 = smul.addr %s551, 64
          %s553 = scalar_lea.hbm %s3, %s552
          %s554 = sshll.u32 %s547, 4
          %s555 = int_to_ptr.vmem [resolvable:$true] %s554
          %560 = dma.hbm_to_vmem [thread:$0]  %s553, 256, %s555, %s544, 64, 64, 4
        $region44: #{transformer_forward.12} parent=27 // pred_fallthru
          _
        // Predicated region
        $region45: #{transformer_forward.12} parent=27 // pred_check
          %p561 = pneg %p182
        $region46: #{transformer_forward.12} parent=27 // pred_check_branch
          %563 = sbr.rel (%p561) target = $region48
        $region47: #{transformer_forward.12} parent=27 // pred_region
          %s564 = sand.u32 %s46, 1
          %s565 = scalar_lea.sflag [#allocation11], %s564
          %s566 = sand.u32 %s172, 1
          %s567 = smul.addr %s566, 16
          %s568 = scalar_lea.vmem [#allocation12], %s567
          %s570 = ssub.s32 256, 256
          %571 = vsyncadd %s565, %s570
          %s572 = smul.addr %s54, 4
          %s573 = smul.addr %s572, 64
          %s574 = scalar_lea.hbm %s4, %s573
          %s575 = sshll.u32 %s568, 4
          %s576 = int_to_ptr.vmem [resolvable:$true] %s575
          %581 = dma.hbm_to_vmem [thread:$0]  %s574, 256, %s576, %s565, 64, 64, 4
        $region48: #{transformer_forward.12} parent=27 // pred_fallthru
          _
        // Predicated region
        $region49: #{transformer_forward.12} parent=27 // pred_check
          %p582 = pneg %p208
        $region50: #{transformer_forward.12} parent=27 // pred_check_branch
          %584 = sbr.rel (%p582) target = $region52
        $region51: #{transformer_forward.12} parent=27 // pred_region
          %s585 = sand.u32 %s46, 1
          %s586 = scalar_lea.sflag [#allocation14], %s585
          %s587 = sand.u32 %s198, 1
          %s588 = smul.addr %s587, 16
          %s589 = scalar_lea.vmem [#allocation13], %s588
          %s591 = ssub.s32 256, 256
          %592 = vsyncadd %s586, %s591
          %s593 = smul.addr %s54, 4
          %s594 = smul.addr %s593, 64
          %s595 = scalar_lea.hbm %s5, %s594
          %s596 = sshll.u32 %s589, 4
          %s597 = int_to_ptr.vmem [resolvable:$true] %s596
          %602 = dma.hbm_to_vmem [thread:$0]  %s595, 256, %s597, %s586, 64, 64, 4
        $region52: #{transformer_forward.12} parent=27 // pred_fallthru
          _
        // Predicated region
        $region53: #{transformer_forward.12} parent=27 // pred_check
          %p603 = pneg %p234
        $region54: #{transformer_forward.12} parent=27 // pred_check_branch
          %605 = sbr.rel (%p603) target = $region56
        $region55: #{transformer_forward.12} parent=27 // pred_region
          %s606 = sand.u32 %s46, 1
          %s607 = scalar_lea.sflag [#allocation14], %s606
          %s608 = sand.u32 %s224, 1
          %s609 = scalar_lea.vmem [#allocation15], %s608
          %s611 = ssub.s32 16, 16
          %612 = vsyncadd %s607, %s611
          %s613 = smul.addr %s54, 16
          %s614 = scalar_lea.hbm %s6, %s613
          %s616 = sshll.u32 %s609, 4
          %s617 = int_to_ptr.vmem [resolvable:$true] %s616
          %619 = dma.hbm_to_vmem [thread:$0]  %s614, 16, %s617, %s607
        $region56: #{transformer_forward.12} parent=27 // pred_fallthru
          _
        // Predicated region
        $region57: #{transformer_forward.12} parent=27 // pred_check
          %p620 = pneg %p260
        $region58: #{transformer_forward.12} parent=27 // pred_check_branch
          %622 = sbr.rel (%p620) target = $region60
        $region59: #{transformer_forward.12} parent=27 // pred_region
          %s623 = sand.u32 %s46, 1
          %s624 = scalar_lea.sflag [#allocation17], %s623
          %s625 = sand.u32 %s250, 1
          %s626 = scalar_lea.vmem [#allocation16], %s625
          %s628 = ssub.s32 16, 16
          %629 = vsyncadd %s624, %s628
          %s630 = smul.addr %s54, 16
          %s631 = scalar_lea.hbm %s7, %s630
          %s633 = sshll.u32 %s626, 4
          %s634 = int_to_ptr.vmem [resolvable:$true] %s633
          %636 = dma.hbm_to_vmem [thread:$0]  %s631, 16, %s634, %s624
        $region60: #{transformer_forward.12} parent=27 // pred_fallthru
          _
        // Predicated region
        $region61: #{transformer_forward.12} parent=27 // pred_check
          %p637 = pneg %p286
        $region62: #{transformer_forward.12} parent=27 // pred_check_branch
          %639 = sbr.rel (%p637) target = $region64
        $region63: #{transformer_forward.12} parent=27 // pred_region
          %s640 = sand.u32 %s46, 1
          %s641 = scalar_lea.sflag [#allocation17], %s640
          %s642 = sand.u32 %s276, 1
          %s643 = scalar_lea.vmem [#allocation18], %s642
          %s645 = ssub.s32 16, 16
          %646 = vsyncadd %s641, %s645
          %s647 = smul.addr %s54, 16
          %s648 = scalar_lea.hbm %s8, %s647
          %s650 = sshll.u32 %s643, 4
          %s651 = int_to_ptr.vmem [resolvable:$true] %s650
          %653 = dma.hbm_to_vmem [thread:$0]  %s648, 16, %s651, %s641
        $region64: #{transformer_forward.12} parent=27 // pred_fallthru
          _
        // Predicated region
        $region65: #{transformer_forward.12} parent=27 // pred_check
          %p654 = pneg %p312
        $region66: #{transformer_forward.12} parent=27 // pred_check_branch
          %656 = sbr.rel (%p654) target = $region68
        $region67: #{transformer_forward.12} parent=27 // pred_region
          %s657 = sand.u32 %s46, 1
          %s658 = scalar_lea.sflag [#allocation20], %s657
          %s659 = sand.u32 %s302, 1
          %s660 = smul.addr %s659, 4
          %s661 = scalar_lea.vmem [#allocation19], %s660
          %s663 = ssub.s32 64, 64
          %664 = vsyncadd %s658, %s663
          %s665 = smul.addr %s54, 64
          %s666 = scalar_lea.hbm %s9, %s665
          %s668 = sshll.u32 %s661, 4
          %s669 = int_to_ptr.vmem [resolvable:$true] %s668
          %671 = dma.hbm_to_vmem [thread:$0]  %s666, 64, %s669, %s658
        $region68: #{transformer_forward.12} parent=27 // pred_fallthru
          _
      $region28: #{transformer_forward.12} parent=5 // pred_fallthru
        _
      %p672 = scmp.le.s32.totalorder 1, %s46
      %p673 = scmp.lt.s32.totalorder %s46, 9
      %p674 = pnand %p672, %p673
      %p675 = pneg %p674
      // Predicated region
      $region69: #{transformer_forward.12} parent=5 // pred_check
        _
      $region70: #{transformer_forward.12} parent=5 // pred_check_branch
        %677 = sbr.rel (%p674) target = $region72
      $region71: #{transformer_forward.12} parent=5 // pred_region
        %s678 = ssub.s32 %s46, 1
        %s679 = sand.u32 %s71, 1
        %s680 = scalar_lea.sflag [#allocation5], %s679
        %s681 = sand.u32 %s71, 1
        %s682 = smul.addr %s681, 8
        %s683 = scalar_lea.vmem [#allocation4], %s682
        // Predicated region
        $region73: #{transformer_forward.12} parent=71 // pred_check
          %p684 = pneg %p84
        $region74: #{transformer_forward.12} parent=71 // pred_check_branch
          %686 = sbr.rel (%p684) target = $region76
        $region75: #{transformer_forward.12} parent=71 // pred_region
          %687 = dma.done %s680, 128
        $region76: #{transformer_forward.12} parent=71 // pred_fallthru
          _
        %s688 = sand.u32 %s51, 1
        %s689 = scalar_lea.sflag [#allocation8], %s688
        %s690 = sand.u32 %s97, 1
        %s691 = smul.addr %s690, 8
        %s692 = scalar_lea.vmem [#allocation7], %s691
        // Predicated region
        $region77: #{transformer_forward.12} parent=71 // pred_check
          %p693 = pneg %p110
        $region78: #{transformer_forward.12} parent=71 // pred_check_branch
          %695 = sbr.rel (%p693) target = $region80
        $region79: #{transformer_forward.12} parent=71 // pred_region
          %696 = dma.done %s689, 128
        $region80: #{transformer_forward.12} parent=71 // pred_fallthru
          _
        %s697 = sand.u32 %s51, 1
        %s698 = scalar_lea.sflag [#allocation8], %s697
        %s699 = sand.u32 %s123, 1
        %s700 = scalar_lea.vmem [#allocation9], %s699
        // Predicated region
        $region81: #{transformer_forward.12} parent=71 // pred_check
          %p701 = pneg %p136
        $region82: #{transformer_forward.12} parent=71 // pred_check_branch
          %703 = sbr.rel (%p701) target = $region84
        $region83: #{transformer_forward.12} parent=71 // pred_region
          %704 = dma.done %s698, 16
        $region84: #{transformer_forward.12} parent=71 // pred_fallthru
          _
        %s705 = sand.u32 %s51, 1
        %s706 = scalar_lea.sflag [#allocation11], %s705
        %s707 = sand.u32 %s149, 1
        %s708 = smul.addr %s707, 16
        %s709 = scalar_lea.vmem [#allocation10], %s708
        // Predicated region
        $region85: #{transformer_forward.12} parent=71 // pred_check
          %p710 = pneg %p162
        $region86: #{transformer_forward.12} parent=71 // pred_check_branch
          %712 = sbr.rel (%p710) target = $region88
        $region87: #{transformer_forward.12} parent=71 // pred_region
          %713 = dma.done %s706, 256
        $region88: #{transformer_forward.12} parent=71 // pred_fallthru
          _
        %s714 = sand.u32 %s51, 1
        %s715 = scalar_lea.sflag [#allocation11], %s714
        %s716 = sand.u32 %s175, 1
        %s717 = smul.addr %s716, 16
        %s718 = scalar_lea.vmem [#allocation12], %s717
        // Predicated region
        $region89: #{transformer_forward.12} parent=71 // pred_check
          %p719 = pneg %p188
        $region90: #{transformer_forward.12} parent=71 // pred_check_branch
          %721 = sbr.rel (%p719) target = $region92
        $region91: #{transformer_forward.12} parent=71 // pred_region
          %722 = dma.done %s715, 256
        $region92: #{transformer_forward.12} parent=71 // pred_fallthru
          _
        %s723 = sand.u32 %s51, 1
        %s724 = scalar_lea.sflag [#allocation14], %s723
        %s725 = sand.u32 %s201, 1
        %s726 = smul.addr %s725, 16
        %s727 = scalar_lea.vmem [#allocation13], %s726
        // Predicated region
        $region93: #{transformer_forward.12} parent=71 // pred_check
          %p728 = pneg %p214
        $region94: #{transformer_forward.12} parent=71 // pred_check_branch
          %730 = sbr.rel (%p728) target = $region96
        $region95: #{transformer_forward.12} parent=71 // pred_region
          %731 = dma.done %s724, 256
        $region96: #{transformer_forward.12} parent=71 // pred_fallthru
          _
        %s732 = sand.u32 %s51, 1
        %s733 = scalar_lea.sflag [#allocation14], %s732
        %s734 = sand.u32 %s227, 1
        %s735 = scalar_lea.vmem [#allocation15], %s734
        // Predicated region
        $region97: #{transformer_forward.12} parent=71 // pred_check
          %p736 = pneg %p240
        $region98: #{transformer_forward.12} parent=71 // pred_check_branch
          %738 = sbr.rel (%p736) target = $region100
        $region99: #{transformer_forward.12} parent=71 // pred_region
          %739 = dma.done %s733, 16
        $region100: #{transformer_forward.12} parent=71 // pred_fallthru
          _
        %s740 = sand.u32 %s51, 1
        %s741 = scalar_lea.sflag [#allocation17], %s740
        %s742 = sand.u32 %s253, 1
        %s743 = scalar_lea.vmem [#allocation16], %s742
        // Predicated region
        $region101: #{transformer_forward.12} parent=71 // pred_check
          %p744 = pneg %p266
        $region102: #{transformer_forward.12} parent=71 // pred_check_branch
          %746 = sbr.rel (%p744) target = $region104
        $region103: #{transformer_forward.12} parent=71 // pred_region
          %747 = dma.done %s741, 16
        $region104: #{transformer_forward.12} parent=71 // pred_fallthru
          _
        %s748 = sand.u32 %s51, 1
        %s749 = scalar_lea.sflag [#allocation17], %s748
        %s750 = sand.u32 %s279, 1
        %s751 = scalar_lea.vmem [#allocation18], %s750
        // Predicated region
        $region105: #{transformer_forward.12} parent=71 // pred_check
          %p752 = pneg %p292
        $region106: #{transformer_forward.12} parent=71 // pred_check_branch
          %754 = sbr.rel (%p752) target = $region108
        $region107: #{transformer_forward.12} parent=71 // pred_region
          %755 = dma.done %s749, 16
        $region108: #{transformer_forward.12} parent=71 // pred_fallthru
          _
        %s756 = sand.u32 %s51, 1
        %s757 = scalar_lea.sflag [#allocation20], %s756
        %s758 = sand.u32 %s305, 1
        %s759 = smul.addr %s758, 4
        %s760 = scalar_lea.vmem [#allocation19], %s759
        // Predicated region
        $region109: #{transformer_forward.12} parent=71 // pred_check
          %p761 = pneg %p318
        $region110: #{transformer_forward.12} parent=71 // pred_check_branch
          %763 = sbr.rel (%p761) target = $region112
        $region111: #{transformer_forward.12} parent=71 // pred_region
          %764 = dma.done %s757, 64
        $region112: #{transformer_forward.12} parent=71 // pred_fallthru
          _
        // Predicated region
        $region113: #{transformer_forward.12} parent=71 // pred_check
          %p765 = pneg %p339
        $region114: #{transformer_forward.12} parent=71 // pred_check_branch
          %767 = sbr.rel (%p765) target = $region116
        $region115: #{transformer_forward.12} parent=71 // pred_region
          %768 = dma.done [#allocation20], 16
        $region116: #{transformer_forward.12} parent=71 // pred_fallthru
          _
        // Predicated region
        $region117: #{transformer_forward.12} parent=71 // pred_check
          %p769 = pneg %p360
        $region118: #{transformer_forward.12} parent=71 // pred_check_branch
          %771 = sbr.rel (%p769) target = $region120
        $region119: #{transformer_forward.12} parent=71 // pred_region
          %772 = dma.done [#allocation23], 16
        $region120: #{transformer_forward.12} parent=71 // pred_fallthru
          _
        // Predicated region
        $region121: #{transformer_forward.12} parent=71 // pred_check
          %p773 = pneg %p381
        $region122: #{transformer_forward.12} parent=71 // pred_check_branch
          %775 = sbr.rel (%p773) target = $region124
        $region123: #{transformer_forward.12} parent=71 // pred_region
          %776 = dma.done [#allocation23], 16
        $region124: #{transformer_forward.12} parent=71 // pred_fallthru
          _
        %s777 = sand.u32 %s71, 1
        %s778 = scalar_lea.sflag [#allocation5], %s777
        %s779 = sand.u32 %s71, 1
        %s780 = smul.addr %s779, 8
        %s781 = scalar_lea.vmem [#allocation4], %s780
        %p782 = pneg %p84
        %p783 = pneg %p81
        %s784 = sand.u32 %s51, 1
        %s785 = scalar_lea.sflag [#allocation8], %s784
        %s786 = sand.u32 %s97, 1
        %s787 = smul.addr %s786, 8
        %s788 = scalar_lea.vmem [#allocation7], %s787
        %p789 = pneg %p110
        %p790 = pneg %p107
        %s791 = sand.u32 %s51, 1
        %s792 = scalar_lea.sflag [#allocation8], %s791
        %s793 = sand.u32 %s123, 1
        %s794 = scalar_lea.vmem [#allocation9], %s793
        %p795 = pneg %p136
        %p796 = pneg %p133
        %s797 = sand.u32 %s51, 1
        %s798 = scalar_lea.sflag [#allocation11], %s797
        %s799 = sand.u32 %s149, 1
        %s800 = smul.addr %s799, 16
        %s801 = scalar_lea.vmem [#allocation10], %s800
        %p802 = pneg %p162
        %p803 = pneg %p159
        %s804 = sand.u32 %s51, 1
        %s805 = scalar_lea.sflag [#allocation11], %s804
        %s806 = sand.u32 %s175, 1
        %s807 = smul.addr %s806, 16
        %s808 = scalar_lea.vmem [#allocation12], %s807
        %p809 = pneg %p188
        %p810 = pneg %p185
        %s811 = sand.u32 %s51, 1
        %s812 = scalar_lea.sflag [#allocation14], %s811
        %s813 = sand.u32 %s201, 1
        %s814 = smul.addr %s813, 16
        %s815 = scalar_lea.vmem [#allocation13], %s814
        %p816 = pneg %p214
        %p817 = pneg %p211
        %s818 = sand.u32 %s51, 1
        %s819 = scalar_lea.sflag [#allocation14], %s818
        %s820 = sand.u32 %s227, 1
        %s821 = scalar_lea.vmem [#allocation15], %s820
        %p822 = pneg %p240
        %p823 = pneg %p237
        %s824 = sand.u32 %s51, 1
        %s825 = scalar_lea.sflag [#allocation17], %s824
        %s826 = sand.u32 %s253, 1
        %s827 = scalar_lea.vmem [#allocation16], %s826
        %p828 = pneg %p266
        %p829 = pneg %p263
        %s830 = sand.u32 %s51, 1
        %s831 = scalar_lea.sflag [#allocation17], %s830
        %s832 = sand.u32 %s279, 1
        %s833 = scalar_lea.vmem [#allocation18], %s832
        %p834 = pneg %p292
        %p835 = pneg %p289
        %s836 = sand.u32 %s51, 1
        %s837 = scalar_lea.sflag [#allocation20], %s836
        %s838 = sand.u32 %s305, 1
        %s839 = smul.addr %s838, 4
        %s840 = scalar_lea.vmem [#allocation19], %s839
        %p841 = pneg %p318
        %p842 = pneg %p315
        %p843 = pneg %p339
        %p844 = pneg %p336
        %p845 = pneg %p360
        %p846 = pneg %p357
        %p847 = pneg %p381
        %p848 = pneg %p378
        %p849 = pneg %p407
        %p850 = pneg %p404
        %s851 = sand.u32 %s394, 1
        %s852 = scalar_lea.sflag [#allocation6], %s851
        %s853 = sand.u32 %s394, 1
        %s854 = smul.addr %s853, 8
        %s855 = scalar_lea.vmem [#allocation25], %s854
        %p856 = pneg %p435
        %p857 = pneg %p432
        %s858 = sand.u32 %s422, 1
        %s859 = scalar_lea.sflag [#allocation27], %s858
        %s860 = sand.u32 %s422, 1
        %s861 = smul.addr %s860, 4
        %s862 = scalar_lea.vmem [#allocation26], %s861
        %v864 = vld [vmem:[%s683] sm:$0xff]
        %p865 = scmp.eq.s32.totalorder %s56, 0
        // Predicated region
        $region125: #{transformer_forward.12} parent=71 // pred_check
          %p866 = pneg %p865
        $region126: #{transformer_forward.12} parent=71 // pred_check_branch
          %868 = sbr.rel (%p866) target = $region128
        $region127: #{transformer_forward.12} parent=71 // pred_region
          %v869 = vld [vmem:[%s700] sm:$0x1]
          %vm870 = vcmp.eq.s32.totalorder %v869, 0
          %v871 = vsel %vm870, -1e+09, 0.0
          %v873 = vlaneseq
          %v874 = vshrl.u32 %v873, 7
          %v875 = vsub.s32 0, %v874
          %v876 = vrot.slane %v871, %v875
          %vm878 = vcmask 64512
          %879 = vst.msk [vmem:[#allocation2] sm:$0xff] %vm878, %v876
          %vm880 = vcmask 261120
          %881 = vst.msk [vmem:[#allocation3] sm:$0xff] %vm880, 0.0
        $region128: #{transformer_forward.12} parent=71 // pred_fallthru
          _
        %v882 = vpack.c.bf16 %v864, %v864
        %v883 = vld [vmem:[%s692] sm:$0xff]
        %v884 = vpack.c.bf16 %v883, %v883
        %v885 = vld [vmem:[%s709] sm:$0xf]
        %v886 = vld [vmem:[%s709 + $0x4] sm:$0xf]
        %v887 = vld [vmem:[%s709 + $0x8] sm:$0xf]
        %v888 = vld [vmem:[%s709 + $0xc] sm:$0xf]
        %v889 = vld [vmem:[%s735] sm:$0x1]
        %v891 = vlaneseq
        %v892 = vshrl.u32 %v891, 7
        %v893 = vsub.s32 0, %v892
        %v894 = vrot.slane %v889, %v893
        %v900 = vunpack.c.l.b16 %v885
        %v901 = vunpack.c.l.b16 %v886
        %v902 = vunpack.c.l.b16 %v887
        %v903 = vunpack.c.l.b16 %v888
        %v904 = vpack.c.b16 %v901, %v900
        %v905 = vpack.c.b16 %v903, %v902
        %vm908 = vcmask 261120
        %v910 = vsel %vm908, %v882, 0
        %912 = vmatprep.subr.bf16.mxu0 0
        %913 = vmatpush1.bf16.msra.mxu0 %v904
        %914 = vmatprep.subr.bf16.mxu0 0
        %915 = vmatpush1.bf16.msra.mxu0 %v905
        %916 = vmatprep.subr.bf16.mxu0 0
        %917 = vmatpush1.bf16.msra.mxu0 0
        %918 = vmatprep.subr.bf16.mxu0 0
        %919 = vmatpush1.bf16.msra.mxu0 0
        %920 = vmatprep.subr.bf16.mxu0 0
        %921 = vmatpush1.bf16.msra.mxu0 0
        %922 = vmatprep.subr.bf16.mxu0 0
        %923 = vmatpush1.bf16.msra.mxu0 0
        %924 = vmatprep.subr.bf16.mxu0 0
        %925 = vmatpush1.bf16.msra.mxu0 0
        %926 = vmatprep.subr.bf16.mxu0 0
        %927 = vmatpush1.bf16.msra.mxu0 0
        %928 = vmatprep.subr.bf16.mxu0 0
        %929 = vmatpush1.bf16.msra.mxu0 0
        %930 = vmatprep.subr.bf16.mxu0 0
        %931 = vmatpush1.bf16.msra.mxu0 0
        %932 = vmatprep.subr.bf16.mxu0 0
        %933 = vmatpush1.bf16.msra.mxu0 0
        %934 = vmatprep.subr.bf16.mxu0 0
        %935 = vmatpush1.bf16.msra.mxu0 0
        %936 = vmatprep.subr.bf16.mxu0 0
        %937 = vmatpush1.bf16.msra.mxu0 0
        %938 = vmatprep.subr.bf16.mxu0 0
        %939 = vmatpush1.bf16.msra.mxu0 0
        %940 = vmatprep.subr.bf16.mxu0 0
        %941 = vmatpush1.bf16.msra.mxu0 0
        %942 = vmatprep.subr.bf16.mxu0 0
        %943 = vmatpush1.bf16.msra.mxu0 0
        %944 = vmatprep.mubr.bf16.mxu0 0
        %945 = vmatmul.mubr.bf16.gmra.mrb[0].mxu0 %v910
        %v946 = vpop.f32.mrb[0].mxu0
        %v947 = vadd.f32 %v894, %v946
        %v948 = vpop.f32.mrb[0].mxu0
        %v949 = vpop.f32.mrb[0].mxu0
        %v950 = vpop.f32.mrb[0].mxu0
        %951 = vdwg.mxu0
        %v952 = vld [vmem:[%s718] sm:$0xf]
        %v953 = vld [vmem:[%s718 + $0x4] sm:$0xf]
        %v954 = vld [vmem:[%s718 + $0x8] sm:$0xf]
        %v955 = vld [vmem:[%s718 + $0xc] sm:$0xf]
        %v956 = vld [vmem:[%s743] sm:$0x1]
        %v958 = vlaneseq
        %v959 = vshrl.u32 %v958, 7
        %v960 = vsub.s32 0, %v959
        %v961 = vrot.slane %v956, %v960
        %v967 = vunpack.c.l.b16 %v952
        %v968 = vunpack.c.l.b16 %v953
        %v969 = vunpack.c.l.b16 %v954
        %v970 = vunpack.c.l.b16 %v955
        %v971 = vpack.c.b16 %v968, %v967
        %v972 = vpack.c.b16 %v970, %v969
        %v976 = vsel %vm908, %v884, 0
        %978 = vmatprep.subr.bf16.mxu0 0
        %979 = vmatpush1.bf16.msra.mxu0 %v971
        %980 = vmatprep.subr.bf16.mxu0 0
        %981 = vmatpush1.bf16.msra.mxu0 %v972
        %982 = vmatprep.subr.bf16.mxu0 0
        %983 = vmatpush1.bf16.msra.mxu0 0
        %984 = vmatprep.subr.bf16.mxu0 0
        %985 = vmatpush1.bf16.msra.mxu0 0
        %986 = vmatprep.subr.bf16.mxu0 0
        %987 = vmatpush1.bf16.msra.mxu0 0
        %988 = vmatprep.subr.bf16.mxu0 0
        %989 = vmatpush1.bf16.msra.mxu0 0
        %990 = vmatprep.subr.bf16.mxu0 0
        %991 = vmatpush1.bf16.msra.mxu0 0
        %992 = vmatprep.subr.bf16.mxu0 0
        %993 = vmatpush1.bf16.msra.mxu0 0
        %994 = vmatprep.subr.bf16.mxu0 0
        %995 = vmatpush1.bf16.msra.mxu0 0
        %996 = vmatprep.subr.bf16.mxu0 0
        %997 = vmatpush1.bf16.msra.mxu0 0
        %998 = vmatprep.subr.bf16.mxu0 0
        %999 = vmatpush1.bf16.msra.mxu0 0
        %1000 = vmatprep.subr.bf16.mxu0 0
        %1001 = vmatpush1.bf16.msra.mxu0 0
        %1002 = vmatprep.subr.bf16.mxu0 0
        %1003 = vmatpush1.bf16.msra.mxu0 0
        %1004 = vmatprep.subr.bf16.mxu0 0
        %1005 = vmatpush1.bf16.msra.mxu0 0
        %1006 = vmatprep.subr.bf16.mxu0 0
        %1007 = vmatpush1.bf16.msra.mxu0 0
        %1008 = vmatprep.subr.bf16.mxu0 0
        %1009 = vmatpush1.bf16.msra.mxu0 0
        %1010 = vmatprep.mubr.bf16.mxu0 0
        %1011 = vmatmul.mubr.bf16.gmra.mrb[0].mxu0 %v976
        %v1012 = vpop.f32.mrb[0].mxu0
        %v1013 = vadd.f32 %v961, %v1012
        %v1014 = vpop.f32.mrb[0].mxu0
        %v1015 = vpop.f32.mrb[0].mxu0
        %v1016 = vpop.f32.mrb[0].mxu0
        %1017 = vdwg.mxu0
        %v1018 = vld [vmem:[%s727] sm:$0xf]
        %v1019 = vld [vmem:[%s727 + $0x4] sm:$0xf]
        %v1020 = vld [vmem:[%s727 + $0x8] sm:$0xf]
        %v1021 = vld [vmem:[%s727 + $0xc] sm:$0xf]
        %v1022 = vld [vmem:[%s751] sm:$0x1]
        %v1024 = vlaneseq
        %v1025 = vshrl.u32 %v1024, 7
        %v1026 = vsub.s32 0, %v1025
        %v1027 = vrot.slane %v1022, %v1026
        %v1033 = vunpack.c.l.b16 %v1018
        %v1034 = vunpack.c.l.b16 %v1019
        %v1035 = vunpack.c.l.b16 %v1020
        %v1036 = vunpack.c.l.b16 %v1021
        %v1037 = vpack.c.b16 %v1034, %v1033
        %v1038 = vpack.c.b16 %v1036, %v1035
        %1041 = vmatprep.subr.bf16.mxu0 0
        %1042 = vmatpush1.bf16.msra.mxu0 %v1037
        %1043 = vmatprep.subr.bf16.mxu0 0
        %1044 = vmatpush1.bf16.msra.mxu0 %v1038
        %1045 = vmatprep.subr.bf16.mxu0 0
        %1046 = vmatpush1.bf16.msra.mxu0 0
        %1047 = vmatprep.subr.bf16.mxu0 0
        %1048 = vmatpush1.bf16.msra.mxu0 0
        %1049 = vmatprep.subr.bf16.mxu0 0
        %1050 = vmatpush1.bf16.msra.mxu0 0
        %1051 = vmatprep.subr.bf16.mxu0 0
        %1052 = vmatpush1.bf16.msra.mxu0 0
        %1053 = vmatprep.subr.bf16.mxu0 0
        %1054 = vmatpush1.bf16.msra.mxu0 0
        %1055 = vmatprep.subr.bf16.mxu0 0
        %1056 = vmatpush1.bf16.msra.mxu0 0
        %1057 = vmatprep.subr.bf16.mxu0 0
        %1058 = vmatpush1.bf16.msra.mxu0 0
        %1059 = vmatprep.subr.bf16.mxu0 0
        %1060 = vmatpush1.bf16.msra.mxu0 0
        %1061 = vmatprep.subr.bf16.mxu0 0
        %1062 = vmatpush1.bf16.msra.mxu0 0
        %1063 = vmatprep.subr.bf16.mxu0 0
        %1064 = vmatpush1.bf16.msra.mxu0 0
        %1065 = vmatprep.subr.bf16.mxu0 0
        %1066 = vmatpush1.bf16.msra.mxu0 0
        %1067 = vmatprep.subr.bf16.mxu0 0
        %1068 = vmatpush1.bf16.msra.mxu0 0
        %1069 = vmatprep.subr.bf16.mxu0 0
        %1070 = vmatpush1.bf16.msra.mxu0 0
        %1071 = vmatprep.subr.bf16.mxu0 0
        %1072 = vmatpush1.bf16.msra.mxu0 0
        %1073 = vmatprep.mubr.bf16.mxu0 0
        %1074 = vmatmul.mubr.bf16.gmra.mrb[0].mxu0 %v976
        %v1075 = vpop.f32.mrb[0].mxu0
        %v1076 = vadd.f32 %v1027, %v1075
        %v1077 = vpop.f32.mrb[0].mxu0
        %v1078 = vpop.f32.mrb[0].mxu0
        %v1079 = vpop.f32.mrb[0].mxu0
        %1080 = vdwg.mxu0
        %v1081 = vpack.c.bf16 %v947, %v947
        %v1082 = vpack.c.bf16 %v1013, %v1013
        %v1083 = vld [vmem:[#allocation2] sm:$0xff]
        %vm1084 = vcmask 64512
        %v1086 = vsel %vm1084, %v1081, 0
        %v1089 = vsel %vm1084, %v1082, 0
        %1091 = vmatprep.subr.bf16.mxu0 0
        %1092 = vmatpush1.bf16.xpose.msra.mxu0 %v1089
        %1093 = vmatprep.subr.bf16.mxu0 0
        %1094 = vmatpush1.bf16.xpose.msra.mxu0 0
        %1095 = vmatprep.subr.bf16.mxu0 0
        %1096 = vmatpush1.bf16.xpose.msra.mxu0 0
        %1097 = vmatprep.subr.bf16.mxu0 0
        %1098 = vmatpush1.bf16.xpose.msra.mxu0 0
        %1099 = vmatprep.subr.bf16.mxu0 0
        %1100 = vmatpush1.bf16.xpose.msra.mxu0 0
        %1101 = vmatprep.subr.bf16.mxu0 0
        %1102 = vmatpush1.bf16.xpose.msra.mxu0 0
        %1103 = vmatprep.subr.bf16.mxu0 0
        %1104 = vmatpush1.bf16.xpose.msra.mxu0 0
        %1105 = vmatprep.subr.bf16.mxu0 0
        %1106 = vmatpush1.bf16.xpose.msra.mxu0 0
        %1107 = vmatprep.subr.bf16.mxu0 0
        %1108 = vmatpush1.bf16.xpose.msra.mxu0 0
        %1109 = vmatprep.subr.bf16.mxu0 0
        %1110 = vmatpush1.bf16.xpose.msra.mxu0 0
        %1111 = vmatprep.subr.bf16.mxu0 0
        %1112 = vmatpush1.bf16.xpose.msra.mxu0 0
        %1113 = vmatprep.subr.bf16.mxu0 0
        %1114 = vmatpush1.bf16.xpose.msra.mxu0 0
        %1115 = vmatprep.subr.bf16.mxu0 0
        %1116 = vmatpush1.bf16.xpose.msra.mxu0 0
        %1117 = vmatprep.subr.bf16.mxu0 0
        %1118 = vmatpush1.bf16.xpose.msra.mxu0 0
        %1119 = vmatprep.subr.bf16.mxu0 0
        %1120 = vmatpush1.bf16.xpose.msra.mxu0 0
        %1121 = vmatprep.subr.bf16.mxu0 0
        %1122 = vmatpush1.bf16.xpose.msra.mxu0 0
        %1123 = vmatprep.mubr.bf16.mxu0 0
        %1124 = vmatmul.mubr.bf16.gmra.mrb[0].mxu0 %v1086
        %v1125 = vpop.f32.mrb[0].mxu0
        %v1126 = vadd.f32 %v1083, %v1125
        %v1127 = vpop.f32.mrb[0].mxu0
        %v1128 = vpop.f32.mrb[0].mxu0
        %v1129 = vpop.f32.mrb[0].mxu0
        %1130 = vdwg.mxu0
        %v1131 = vsel %vm1084, %v1126, -inf
        %1132 = vmax.xlane.f32.xlu0 %v1131
        %v1133 = vpop.xlane.xlu0 %1132
        %v1134 = vsub.f32 %v1126, %v1133
        %v1135 = vmul.f32 %v1134, 1.442695
        %v1136 = vpow.pop %v1135
        %v1137 = vsel %vm1084, %v1136, 0.0
        %1138 = vadd.xlane.f32.xlu0 %v1137
        %v1139 = vpop.xlane.xlu0 %1138
        %v1140 = vrcp.pop %v1139
        %v1141 = vmul.f32 %v1136, %v1140
        %v1142 = vpack.c.bf16 %v1141, %v1141
        %vm1143 = vcmask 60416
        %1144 = vst.msk [vmem:[%s862] sm:$0xf] %vm1143, %v1142
        %v1145 = vpack.c.bf16 %v1076, %v1076
        %v1147 = vsel %vm1084, %v1142, 0
        %vm1149 = vcmask 1043456
        %v1151 = vsel %vm1149, %v1145, 0
        %1153 = vmatprep.subr.bf16.mxu0 0
        %1154 = vmatpush1.bf16.msra.mxu0 %v1151
        %1155 = vmatprep.subr.bf16.mxu0 0
        %1156 = vmatpush1.bf16.msra.mxu0 0
        %1157 = vmatprep.subr.bf16.mxu0 0
        %1158 = vmatpush1.bf16.msra.mxu0 0
        %1159 = vmatprep.subr.bf16.mxu0 0
        %1160 = vmatpush1.bf16.msra.mxu0 0
        %1161 = vmatprep.subr.bf16.mxu0 0
        %1162 = vmatpush1.bf16.msra.mxu0 0
        %1163 = vmatprep.subr.bf16.mxu0 0
        %1164 = vmatpush1.bf16.msra.mxu0 0
        %1165 = vmatprep.subr.bf16.mxu0 0
        %1166 = vmatpush1.bf16.msra.mxu0 0
        %1167 = vmatprep.subr.bf16.mxu0 0
        %1168 = vmatpush1.bf16.msra.mxu0 0
        %1169 = vmatprep.subr.bf16.mxu0 0
        %1170 = vmatpush1.bf16.msra.mxu0 0
        %1171 = vmatprep.subr.bf16.mxu0 0
        %1172 = vmatpush1.bf16.msra.mxu0 0
        %1173 = vmatprep.subr.bf16.mxu0 0
        %1174 = vmatpush1.bf16.msra.mxu0 0
        %1175 = vmatprep.subr.bf16.mxu0 0
        %1176 = vmatpush1.bf16.msra.mxu0 0
        %1177 = vmatprep.subr.bf16.mxu0 0
        %1178 = vmatpush1.bf16.msra.mxu0 0
        %1179 = vmatprep.subr.bf16.mxu0 0
        %1180 = vmatpush1.bf16.msra.mxu0 0
        %1181 = vmatprep.subr.bf16.mxu0 0
        %1182 = vmatpush1.bf16.msra.mxu0 0
        %1183 = vmatprep.subr.bf16.mxu0 0
        %1184 = vmatpush1.bf16.msra.mxu0 0
        %1185 = vmatprep.mubr.bf16.mxu0 0
        %1186 = vmatmul.mubr.bf16.gmra.mrb[0].mxu0 %v1147
        %v1187 = vpop.f32.mrb[0].mxu0
        %v1188 = vadd.f32 0.0, %v1187
        %v1189 = vpop.f32.mrb[0].mxu0
        %v1190 = vpop.f32.mrb[0].mxu0
        %v1191 = vpop.f32.mrb[0].mxu0
        %1192 = vdwg.mxu0
        %v1193 = vld [vmem:[#allocation3] sm:$0xff]
        %v1194 = vpack.c.bf16 %v1188, %v1188
        %v1195 = vld [vmem:[%s760] sm:$0xf]
        %v1197 = vsel %vm1084, %v1194, 0
        %v1200 = vsel %vm1149, %v1195, 0
        %1202 = vmatprep.subr.bf16.mxu0 0
        %1203 = vmatpush1.bf16.msra.mxu0 %v1200
        %1204 = vmatprep.subr.bf16.mxu0 0
        %1205 = vmatpush1.bf16.msra.mxu0 0
        %1206 = vmatprep.subr.bf16.mxu0 0
        %1207 = vmatpush1.bf16.msra.mxu0 0
        %1208 = vmatprep.subr.bf16.mxu0 0
        %1209 = vmatpush1.bf16.msra.mxu0 0
        %1210 = vmatprep.subr.bf16.mxu0 0
        %1211 = vmatpush1.bf16.msra.mxu0 0
        %1212 = vmatprep.subr.bf16.mxu0 0
        %1213 = vmatpush1.bf16.msra.mxu0 0
        %1214 = vmatprep.subr.bf16.mxu0 0
        %1215 = vmatpush1.bf16.msra.mxu0 0
        %1216 = vmatprep.subr.bf16.mxu0 0
        %1217 = vmatpush1.bf16.msra.mxu0 0
        %1218 = vmatprep.subr.bf16.mxu0 0
        %1219 = vmatpush1.bf16.msra.mxu0 0
        %1220 = vmatprep.subr.bf16.mxu0 0
        %1221 = vmatpush1.bf16.msra.mxu0 0
        %1222 = vmatprep.subr.bf16.mxu0 0
        %1223 = vmatpush1.bf16.msra.mxu0 0
        %1224 = vmatprep.subr.bf16.mxu0 0
        %1225 = vmatpush1.bf16.msra.mxu0 0
        %1226 = vmatprep.subr.bf16.mxu0 0
        %1227 = vmatpush1.bf16.msra.mxu0 0
        %1228 = vmatprep.subr.bf16.mxu0 0
        %1229 = vmatpush1.bf16.msra.mxu0 0
        %1230 = vmatprep.subr.bf16.mxu0 0
        %1231 = vmatpush1.bf16.msra.mxu0 0
        %1232 = vmatprep.subr.bf16.mxu0 0
        %1233 = vmatpush1.bf16.msra.mxu0 0
        %1234 = vmatprep.mubr.bf16.mxu0 0
        %1235 = vmatmul.mubr.bf16.gmra.mrb[0].mxu0 %v1197
        %v1236 = vpop.f32.mrb[0].mxu0
        %v1237 = vadd.f32 0.0, %v1236
        %v1238 = vpop.f32.mrb[0].mxu0
        %v1239 = vpop.f32.mrb[0].mxu0
        %v1240 = vpop.f32.mrb[0].mxu0
        %1241 = vdwg.mxu0
        %v1242 = vadd.f32 %v1193, %v1237
        %1243 = vst.msk [vmem:[#allocation3] sm:$0xff] %vm908, %v1242
        %p1244 = scmp.eq.s32.totalorder %s56, 3
        // Predicated region
        $region129: #{transformer_forward.12} parent=71 // pred_check
          %p1245 = pneg %p1244
        $region130: #{transformer_forward.12} parent=71 // pred_check_branch
          %1247 = sbr.rel (%p1245) target = $region132
        $region131: #{transformer_forward.12} parent=71 // pred_region
          %v1248 = vld [vmem:[#allocation3] sm:$0xff]
          %v1249 = vld [vmem:[#allocation21] sm:$0x1]
          %v1251 = vlaneseq
          %v1252 = vshrl.u32 %v1251, 7
          %v1253 = vsub.s32 0, %v1252
          %v1254 = vrot.slane %v1249, %v1253
          %v1256 = vadd.f32 %v1248, %v1254
          %v1257 = vadd.f32 %v1256, %v864
          %v1258 = vsel %vm908, %v1257, 0.0
          %1259 = vadd.xlane.f32.xlu0 %v1258
          %v1260 = vpop.xlane.xlu0 %1259
          %v1261 = vrcp.pop 32.0
          %v1262 = vmul.f32 %v1260, %v1261
          %v1263 = vsub.f32 %v1257, %v1262
          %v1264 = vmul.f32 %v1263, %v1263
          %v1265 = vsel %vm908, %v1264, 0.0
          %1266 = vadd.xlane.f32.xlu0 %v1265
          %v1267 = vpop.xlane.xlu0 %1266
          %v1268 = vmul.f32 %v1267, %v1261
          %v1269 = vadd.f32 %v1268, 1e-05
          %v1270 = vrsqrt.pop %v1269
          %v1271 = vmul.f32 %v1263, %v1270
          %v1272 = vld [vmem:[#allocation22] sm:$0x1]
          %v1274 = vlaneseq
          %v1275 = vshrl.u32 %v1274, 7
          %v1276 = vsub.s32 0, %v1275
          %v1277 = vrot.slane %v1272, %v1276
          %v1279 = vmul.f32 %v1271, %v1277
          %v1280 = vld [vmem:[#allocation24] sm:$0x1]
          %v1282 = vlaneseq
          %v1283 = vshrl.u32 %v1282, 7
          %v1284 = vsub.s32 0, %v1283
          %v1285 = vrot.slane %v1280, %v1284
          %v1287 = vadd.f32 %v1279, %v1285
          %1288 = vst.msk [vmem:[%s855] sm:$0xff] %vm908, %v1287
        $region132: #{transformer_forward.12} parent=71 // pred_fallthru
          _
        %s1289 = sand.u32 %s394, 1
        %s1290 = scalar_lea.sflag [#allocation6], %s1289
        %s1291 = sand.u32 %s394, 1
        %s1292 = smul.addr %s1291, 8
        %s1293 = scalar_lea.vmem [#allocation25], %s1292
        %s1294 = sand.u32 %s422, 1
        %s1295 = scalar_lea.sflag [#allocation27], %s1294
        %s1296 = sand.u32 %s422, 1
        %s1297 = smul.addr %s1296, 4
        %s1298 = scalar_lea.vmem [#allocation26], %s1297
        // Predicated region
        $region133: #{transformer_forward.12} parent=71 // pred_check
          %p1299 = pneg %p404
        $region134: #{transformer_forward.12} parent=71 // pred_check_branch
          %1301 = sbr.rel (%p1299) target = $region136
        $region135: #{transformer_forward.12} parent=71 // pred_region
          %s1303 = ssub.s32 128, 128
          %1304 = vsyncadd %s1290, %s1303
          %s1305 = smul.addr %s55, 128
          %s1306 = scalar_lea.hbm %s13, %s1305
          %s1308 = sshll.u32 %s1293, 4
          %s1309 = int_to_ptr.vmem [resolvable:$true] %s1308
          %1311 = dma.vmem_to_hbm [thread:$0]  %s1309, 128, %s1306, %s1290
        $region136: #{transformer_forward.12} parent=71 // pred_fallthru
          _
        // Predicated region
        $region137: #{transformer_forward.12} parent=71 // pred_check
          %p1312 = pneg %p432
        $region138: #{transformer_forward.12} parent=71 // pred_check_branch
          %1314 = sbr.rel (%p1312) target = $region140
        $region139: #{transformer_forward.12} parent=71 // pred_region
          %s1316 = ssub.s32 64, 64
          %1317 = vsyncadd %s1295, %s1316
          %s1318 = smul.addr %s55, 4
          %s1319 = sadd.s32 %s56, %s1318
          %s1320 = smul.addr %s1319, 64
          %s1321 = scalar_lea.hbm %s14, %s1320
          %s1323 = sshll.u32 %s1298, 4
          %s1324 = int_to_ptr.vmem [resolvable:$true] %s1323
          %1326 = dma.vmem_to_hbm [thread:$0]  %s1324, 64, %s1321, %s1295
        $region140: #{transformer_forward.12} parent=71 // pred_fallthru
          _
      $region72: #{transformer_forward.12} parent=5 // pred_fallthru
        _
      %p1327 = scmp.le.s32.totalorder 2, %s46
      // Predicated region
      $region141: #{transformer_forward.12} parent=5 // pred_check
        %p1328 = pneg %p1327
      $region142: #{transformer_forward.12} parent=5 // pred_check_branch
        %1330 = sbr.rel (%p1328) target = $region144
      $region143: #{transformer_forward.12} parent=5 // pred_region
        %s1331 = ssub.s32 %s46, 2
        // Predicated region
        $region145: #{transformer_forward.12} parent=143 // pred_check
          %p1332 = pneg %p410
        $region146: #{transformer_forward.12} parent=143 // pred_check_branch
          %1334 = sbr.rel (%p1332) target = $region148
        $region147: #{transformer_forward.12} parent=143 // pred_region
          %s1335 = sand.u32 %s395, 1
          %s1336 = scalar_lea.sflag [#allocation6], %s1335
          %s1337 = sand.u32 %s395, 1
          %s1338 = smul.addr %s1337, 8
          %s1339 = scalar_lea.vmem [#allocation25], %s1338
          %1340 = dma.done %s1336, 128
        $region148: #{transformer_forward.12} parent=143 // pred_fallthru
          _
        // Predicated region
        $region149: #{transformer_forward.12} parent=143 // pred_check
          %p1341 = pneg %p438
        $region150: #{transformer_forward.12} parent=143 // pred_check_branch
          %1343 = sbr.rel (%p1341) target = $region152
        $region151: #{transformer_forward.12} parent=143 // pred_region
          %s1344 = sand.u32 %s423, 1
          %s1345 = scalar_lea.sflag [#allocation27], %s1344
          %s1346 = sand.u32 %s423, 1
          %s1347 = smul.addr %s1346, 4
          %s1348 = scalar_lea.vmem [#allocation26], %s1347
          %1349 = dma.done %s1345, 64
        $region152: #{transformer_forward.12} parent=143 // pred_fallthru
          _
      $region144: #{transformer_forward.12} parent=5 // pred_fallthru
        _
    $region6: #{transformer_forward.12} parent=1 // loop_footer
      %s50 = sadd.s32 1, %s46
    $region7: #{transformer_forward.12} parent=1 // loop_footer_branch
      %45 = sbr.rel target = $region3
    $region8: #{transformer_forward.12} parent=1 // loop_exit
      _
    %1350 = vsyncpa [#allocation5], 1
    %s1351 = scalar_lea.sflag [#allocation5], 1
    %1352 = vsyncpa %s1351, 1
    %1353 = vsyncpa [#allocation8], 1
    %s1354 = scalar_lea.sflag [#allocation8], 1
    %1355 = vsyncpa %s1354, 1
    %1356 = vsyncpa [#allocation11], 1
    %s1357 = scalar_lea.sflag [#allocation11], 1
    %1358 = vsyncpa %s1357, 1
    %1359 = vsyncpa [#allocation14], 1
    %s1360 = scalar_lea.sflag [#allocation14], 1
    %1361 = vsyncpa %s1360, 1
    %1362 = vsyncpa [#allocation17], 1
    %s1363 = scalar_lea.sflag [#allocation17], 1
    %1364 = vsyncpa %s1363, 1
    %1365 = vsyncpa [#allocation20], 1
    %s1366 = scalar_lea.sflag [#allocation20], 1
    %1367 = vsyncpa %s1366, 1
    %1368 = vsyncpa [#allocation23], 1
    %1369 = vsyncpa [#allocation6], 1
    %s1370 = scalar_lea.sflag [#allocation6], 1
    %1371 = vsyncpa %s1370, 1
    %1372 = vsyncpa [#allocation27], 1
    %s1373 = scalar_lea.sflag [#allocation27], 1
    %1374 = vsyncpa %s1373, 1

// kernel: transformer_forward.16
$region0: #{transformer_forward.16}
  #allocation0 [shape = 'u32[]', space=smem, size = 0x4, offset = 0x4, fixed_abs, tag = 'smem constant byte address 0x4 - core index']
  #allocation1 [shape = 'u32[144,128]{1,0:T(1,128)}', space=vmem, size = 0x12000, scoped, tag = 'internal scratch']
  #allocation2 [shape = 'f32[8,8]{1,0:T(8,128)}', space=vmem, size = 0x1000, scoped, tag = 'scratch operand']
  #allocation3 [shape = 'f32[8,32]{1,0:T(8,128)}', space=vmem, size = 0x1000, scoped, tag = 'scratch operand']
  %s0 = inlined_call_operand.hbm [shape: f32[2,8,32], index: 0, kind: input, shape index: {}, may-alias: {0,1}]
  %s1 = inlined_call_operand.hbm [shape: f32[2,8,32], index: 1, kind: input, shape index: {}, may-alias: {0,1}]
  %s2 = inlined_call_operand.hbm [shape: s32[2,1,8], index: 2, kind: input, shape index: {}]
  %s3 = inlined_call_operand.hbm [shape: bf16[4,32,8], index: 3, kind: input, shape index: {}]
  %s4 = inlined_call_operand.hbm [shape: bf16[4,32,8], index: 4, kind: input, shape index: {}]
  %s5 = inlined_call_operand.hbm [shape: bf16[4,32,8], index: 5, kind: input, shape index: {}]
  %s6 = inlined_call_operand.hbm [shape: f32[4,1,8], index: 6, kind: input, shape index: {}]
  %s7 = inlined_call_operand.hbm [shape: f32[4,1,8], index: 7, kind: input, shape index: {}]
  %s8 = inlined_call_operand.hbm [shape: f32[4,1,8], index: 8, kind: input, shape index: {}]
  %s9 = inlined_call_operand.hbm [shape: bf16[4,8,32], index: 9, kind: input, shape index: {}]
  %s10 = inlined_call_operand.hbm [shape: f32[1,32], index: 10, kind: input, shape index: {}]
  %s11 = inlined_call_operand.hbm [shape: f32[1,32], index: 11, kind: input, shape index: {}]
  %s12 = inlined_call_operand.hbm [shape: f32[1,32], index: 12, kind: input, shape index: {}]
  %s13 = inlined_call_operand.hbm [shape: f32[2,8,32], index: 13, kind: output, shape index: {0}]
  %s14 = inlined_call_operand.hbm [shape: bf16[2,4,8,8], index: 14, kind: output, shape index: {1}]
  %15 = xla_tuple %s13, %s14
  %s16 = sld [smem:[#allocation0]]
  $region153: #{transformer_forward.16} parent=0
    _
  %s18 = ssub.s32 1, %s16
  %s19 = scalar_select 0, %s18, %s16
  $region1: #{transformer_forward.16} parent=0
    #allocation4 [shape = 'u8[8192]{0}', space=vmem, size = 0x2000, scoped, tag = 'input window, operand 0']
    #allocation5 [shape = 's32[2]{0}', space=sflag, size = 0x8, scoped, tag = 'scoped memory for transformer_forward.16']
    #allocation6 [shape = 's32[2]{0}', space=sflag, size = 0x8, scoped, tag = 'scoped memory for transformer_forward.16']
    #allocation7 [shape = 'u8[8192]{0}', space=vmem, size = 0x2000, scoped, tag = 'input window, operand 1']
    #allocation8 [shape = 's32[2]{0}', space=sflag, size = 0x8, scoped, tag = 'scoped memory for transformer_forward.16']
    #allocation9 [shape = 'u8[1024]{0}', space=vmem, size = 0x400, scoped, tag = 'input window, operand 2']
    #allocation10 [shape = 'u8[16384]{0}', space=vmem, size = 0x4000, scoped, tag = 'input window, operand 3']
    #allocation11 [shape = 's32[2]{0}', space=sflag, size = 0x8, scoped, tag = 'scoped memory for transformer_forward.16']
    #allocation12 [shape = 'u8[16384]{0}', space=vmem, size = 0x4000, scoped, tag = 'input window, operand 4']
    #allocation13 [shape = 'u8[16384]{0}', space=vmem, size = 0x4000, scoped, tag = 'input window, operand 5']
    #allocation14 [shape = 's32[2]{0}', space=sflag, size = 0x8, scoped, tag = 'scoped memory for transformer_forward.16']
    #allocation15 [shape = 'u8[1024]{0}', space=vmem, size = 0x400, scoped, tag = 'input window, operand 6']
    #allocation16 [shape = 'u8[1024]{0}', space=vmem, size = 0x400, scoped, tag = 'input window, operand 7']
    #allocation17 [shape = 's32[2]{0}', space=sflag, size = 0x8, scoped, tag = 'scoped memory for transformer_forward.16']
    #allocation18 [shape = 'u8[1024]{0}', space=vmem, size = 0x400, scoped, tag = 'input window, operand 8']
    #allocation19 [shape = 'u8[4096]{0}', space=vmem, size = 0x1000, scoped, tag = 'input window, operand 9']
    #allocation20 [shape = 's32[2]{0}', space=sflag, size = 0x8, scoped, tag = 'scoped memory for transformer_forward.16']
    #allocation21 [shape = 'u8[512]{0}', space=vmem, size = 0x400, scoped, tag = 'input window, operand 10, single buffered']
    #allocation22 [shape = 'u8[512]{0}', space=vmem, size = 0x400, scoped, tag = 'input window, operand 11, single buffered']
    #allocation23 [shape = 's32[1]{0}', space=sflag, size = 0x4, scoped, tag = 'scoped memory for transformer_forward.16']
    #allocation24 [shape = 'u8[512]{0}', space=vmem, size = 0x400, scoped, tag = 'input window, operand 12, single buffered']
    #allocation25 [shape = 'u8[8192]{0}', space=vmem, size = 0x2000, scoped, tag = 'output window, operand 0']
    #allocation26 [shape = 'u8[4096]{0}', space=vmem, size = 0x1000, scoped, tag = 'output window, operand 1']
    #allocation27 [shape = 's32[2]{0}', space=sflag, size = 0x8, scoped, tag = 'scoped memory for transformer_forward.16']
    %20 = vsyncpa [#allocation5], 0
    %s21 = scalar_lea.sflag [#allocation5], 1
    %22 = vsyncpa %s21, 0
    %23 = vsyncpa [#allocation8], 0
    %s24 = scalar_lea.sflag [#allocation8], 1
    %25 = vsyncpa %s24, 0
    %26 = vsyncpa [#allocation11], 0
    %s27 = scalar_lea.sflag [#allocation11], 1
    %28 = vsyncpa %s27, 0
    %29 = vsyncpa [#allocation14], 0
    %s30 = scalar_lea.sflag [#allocation14], 1
    %31 = vsyncpa %s30, 0
    %32 = vsyncpa [#allocation17], 0
    %s33 = scalar_lea.sflag [#allocation17], 1
    %34 = vsyncpa %s33, 0
    %35 = vsyncpa [#allocation20], 0
    %s36 = scalar_lea.sflag [#allocation20], 1
    %37 = vsyncpa %s36, 0
    %38 = vsyncpa [#allocation23], 0
    %39 = vsyncpa [#allocation6], 0
    %s40 = scalar_lea.sflag [#allocation6], 1
    %41 = vsyncpa %s40, 0
    %42 = vsyncpa [#allocation27], 0
    %s43 = scalar_lea.sflag [#allocation27], 1
    %44 = vsyncpa %s43, 0
    loop: start=0, step=1, limit=10
    $region2: #{transformer_forward.16} parent=1 // loop_pre_header
      _
    $region3: #{transformer_forward.16} parent=1 // loop_header
      %s46 = sphi 0, %s50
      %p47 = scmp.ge.s32.totalorder %s46, 10
      %s53 = sphi 0, %s65
      %s54 = sphi 0, %s61
      %s55 = sphi 0, %s53
      %s56 = sphi 0, %s54
      %s57 = sphi 0, %s55
      %s58 = sphi 0, %s56
      %s68 = sphi 0, %s70
      %s71 = sphi 0, %s68
      %s72 = sphi 0, %s71
      %s88 = sphi 0, %s72
      %s94 = sphi 0, %s96
      %s97 = sphi 0, %s94
      %s98 = sphi 0, %s97
      %s114 = sphi 0, %s98
      %s120 = sphi 0, %s122
      %s123 = sphi 0, %s120
      %s124 = sphi 0, %s123
      %s140 = sphi 0, %s124
      %s146 = sphi 0, %s148
      %s149 = sphi 0, %s146
      %s150 = sphi 0, %s149
      %s166 = sphi 0, %s150
      %s172 = sphi 0, %s174
      %s175 = sphi 0, %s172
      %s176 = sphi 0, %s175
      %s192 = sphi 0, %s176
      %s198 = sphi 0, %s200
      %s201 = sphi 0, %s198
      %s202 = sphi 0, %s201
      %s218 = sphi 0, %s202
      %s224 = sphi 0, %s226
      %s227 = sphi 0, %s224
      %s228 = sphi 0, %s227
      %s244 = sphi 0, %s228
      %s250 = sphi 0, %s252
      %s253 = sphi 0, %s250
      %s254 = sphi 0, %s253
      %s270 = sphi 0, %s254
      %s276 = sphi 0, %s278
      %s279 = sphi 0, %s276
      %s280 = sphi 0, %s279
      %s296 = sphi 0, %s280
      %s302 = sphi 0, %s304
      %s305 = sphi 0, %s302
      %s306 = sphi 0, %s305
      %s322 = sphi 0, %s306
      %s326 = sphi 0, %s326
      %s328 = sphi 0, %s326
      %s329 = sphi 0, %s328
      %s343 = sphi 0, %s329
      %s347 = sphi 0, %s347
      %s349 = sphi 0, %s347
      %s350 = sphi 0, %s349
      %s364 = sphi 0, %s350
      %s368 = sphi 0, %s368
      %s370 = sphi 0, %s368
      %s371 = sphi 0, %s370
      %s385 = sphi 0, %s371
      %s391 = sphi 0, %s393
      %s394 = sphi 0, %s391
      %s395 = sphi 0, %s394
      %s411 = sphi 0, %s395
      %s419 = sphi 0, %s421
      %s422 = sphi 0, %s419
      %s423 = sphi 0, %s422
      %s439 = sphi 0, %s423
    $region4: #{transformer_forward.16} parent=1 // loop_header_branch
      %49 = sbr.rel (%p47) target = $region8
    $region5: #{transformer_forward.16} parent=1 // loop_body
      %s51 = ssub.s32 %s46, 1
      %s52 = ssub.s32 %s46, 2
      %s59 = sadd.s32 1, %s54
      %p60 = scmp.ge.s32.totalorder %s59, 4
      %s61 = scalar_select %p60, 0, %s59
      %s62 = sadd.s32 1, %s53
      %s63 = scalar_select %p60, %s62, %s53
      %p64 = scmp.ge.s32.totalorder %s63, 2
      %s65 = scalar_select %p64, 0, %s63
      %s66 = ssub.s32 %s53, %s65
      %p67 = scmp.eq.s32.totalorder %s66, 0
      %s69 = sadd.s32 %s68, 1
      %s70 = scalar_select %p67, %s68, %s69
      %p73 = pneg %p67
      %p74 = scmp.eq.s32.totalorder %s46, 7
      %p75 = por %p73, %p74
      %p76 = scmp.ne.s32.totalorder %s68, %s71
      %p77 = scmp.eq.s32.totalorder %s46, 0
      %p78 = por %p76, %p77
      %p79 = scmp.ne.s32.totalorder %s68, %s71
      %p80 = scmp.eq.s32.totalorder %s51, 7
      %p81 = por %p79, %p80
      %p82 = scmp.ne.s32.totalorder %s71, %s72
      %p83 = scmp.eq.s32.totalorder %s51, 0
      %p84 = por %p82, %p83
      %p85 = scmp.ne.s32.totalorder %s71, %s72
      %p86 = scmp.eq.s32.totalorder %s52, 7
      %p87 = por %p85, %p86
      %p89 = scmp.ne.s32.totalorder %s72, %s88
      %p90 = scmp.eq.s32.totalorder %s52, 0
      %p91 = por %p89, %p90
      %s92 = ssub.s32 %s53, %s65
      %p93 = scmp.eq.s32.totalorder %s92, 0
      %s95 = sadd.s32 %s94, 1
      %s96 = scalar_select %p93, %s94, %s95
      %p99 = pneg %p93
      %p100 = scmp.eq.s32.totalorder %s46, 7
      %p101 = por %p99, %p100
      %p102 = scmp.ne.s32.totalorder %s94, %s97
      %p103 = scmp.eq.s32.totalorder %s46, 0
      %p104 = por %p102, %p103
      %p105 = scmp.ne.s32.totalorder %s94, %s97
      %p106 = scmp.eq.s32.totalorder %s51, 7
      %p107 = por %p105, %p106
      %p108 = scmp.ne.s32.totalorder %s97, %s98
      %p109 = scmp.eq.s32.totalorder %s51, 0
      %p110 = por %p108, %p109
      %p111 = scmp.ne.s32.totalorder %s97, %s98
      %p112 = scmp.eq.s32.totalorder %s52, 7
      %p113 = por %p111, %p112
      %p115 = scmp.ne.s32.totalorder %s98, %s114
      %p116 = scmp.eq.s32.totalorder %s52, 0
      %p117 = por %p115, %p116
      %s118 = ssub.s32 %s53, %s65
      %p119 = scmp.eq.s32.totalorder %s118, 0
      %s121 = sadd.s32 %s120, 1
      %s122 = scalar_select %p119, %s120, %s121
      %p125 = pneg %p119
      %p126 = scmp.eq.s32.totalorder %s46, 7
      %p127 = por %p125, %p126
      %p128 = scmp.ne.s32.totalorder %s120, %s123
      %p129 = scmp.eq.s32.totalorder %s46, 0
      %p130 = por %p128, %p129
      %p131 = scmp.ne.s32.totalorder %s120, %s123
      %p132 = scmp.eq.s32.totalorder %s51, 7
      %p133 = por %p131, %p132
      %p134 = scmp.ne.s32.totalorder %s123, %s124
      %p135 = scmp.eq.s32.totalorder %s51, 0
      %p136 = por %p134, %p135
      %p137 = scmp.ne.s32.totalorder %s123, %s124
      %p138 = scmp.eq.s32.totalorder %s52, 7
      %p139 = por %p137, %p138
      %p141 = scmp.ne.s32.totalorder %s124, %s140
      %p142 = scmp.eq.s32.totalorder %s52, 0
      %p143 = por %p141, %p142
      %s144 = ssub.s32 %s54, %s61
      %p145 = scmp.eq.s32.totalorder %s144, 0
      %s147 = sadd.s32 %s146, 1
      %s148 = scalar_select %p145, %s146, %s147
      %p151 = pneg %p145
      %p152 = scmp.eq.s32.totalorder %s46, 7
      %p153 = por %p151, %p152
      %p154 = scmp.ne.s32.totalorder %s146, %s149
      %p155 = scmp.eq.s32.totalorder %s46, 0
      %p156 = por %p154, %p155
      %p157 = scmp.ne.s32.totalorder %s146, %s149
      %p158 = scmp.eq.s32.totalorder %s51, 7
      %p159 = por %p157, %p158
      %p160 = scmp.ne.s32.totalorder %s149, %s150
      %p161 = scmp.eq.s32.totalorder %s51, 0
      %p162 = por %p160, %p161
      %p163 = scmp.ne.s32.totalorder %s149, %s150
      %p164 = scmp.eq.s32.totalorder %s52, 7
      %p165 = por %p163, %p164
      %p167 = scmp.ne.s32.totalorder %s150, %s166
      %p168 = scmp.eq.s32.totalorder %s52, 0
      %p169 = por %p167, %p168
      %s170 = ssub.s32 %s54, %s61
      %p171 = scmp.eq.s32.totalorder %s170, 0
      %s173 = sadd.s32 %s172, 1
      %s174 = scalar_select %p171, %s172, %s173
      %p177 = pneg %p171
      %p178 = scmp.eq.s32.totalorder %s46, 7
      %p179 = por %p177, %p178
      %p180 = scmp.ne.s32.totalorder %s172, %s175
      %p181 = scmp.eq.s32.totalorder %s46, 0
      %p182 = por %p180, %p181
      %p183 = scmp.ne.s32.totalorder %s172, %s175
      %p184 = scmp.eq.s32.totalorder %s51, 7
      %p185 = por %p183, %p184
      %p186 = scmp.ne.s32.totalorder %s175, %s176
      %p187 = scmp.eq.s32.totalorder %s51, 0
      %p188 = por %p186, %p187
      %p189 = scmp.ne.s32.totalorder %s175, %s176
      %p190 = scmp.eq.s32.totalorder %s52, 7
      %p191 = por %p189, %p190
      %p193 = scmp.ne.s32.totalorder %s176, %s192
      %p194 = scmp.eq.s32.totalorder %s52, 0
      %p195 = por %p193, %p194
      %s196 = ssub.s32 %s54, %s61
      %p197 = scmp.eq.s32.totalorder %s196, 0
      %s199 = sadd.s32 %s198, 1
      %s200 = scalar_select %p197, %s198, %s199
      %p203 = pneg %p197
      %p204 = scmp.eq.s32.totalorder %s46, 7
      %p205 = por %p203, %p204
      %p206 = scmp.ne.s32.totalorder %s198, %s201
      %p207 = scmp.eq.s32.totalorder %s46, 0
      %p208 = por %p206, %p207
      %p209 = scmp.ne.s32.totalorder %s198, %s201
      %p210 = scmp.eq.s32.totalorder %s51, 7
      %p211 = por %p209, %p210
      %p212 = scmp.ne.s32.totalorder %s201, %s202
      %p213 = scmp.eq.s32.totalorder %s51, 0
      %p214 = por %p212, %p213
      %p215 = scmp.ne.s32.totalorder %s201, %s202
      %p216 = scmp.eq.s32.totalorder %s52, 7
      %p217 = por %p215, %p216
      %p219 = scmp.ne.s32.totalorder %s202, %s218
      %p220 = scmp.eq.s32.totalorder %s52, 0
      %p221 = por %p219, %p220
      %s222 = ssub.s32 %s54, %s61
      %p223 = scmp.eq.s32.totalorder %s222, 0
      %s225 = sadd.s32 %s224, 1
      %s226 = scalar_select %p223, %s224, %s225
      %p229 = pneg %p223
      %p230 = scmp.eq.s32.totalorder %s46, 7
      %p231 = por %p229, %p230
      %p232 = scmp.ne.s32.totalorder %s224, %s227
      %p233 = scmp.eq.s32.totalorder %s46, 0
      %p234 = por %p232, %p233
      %p235 = scmp.ne.s32.totalorder %s224, %s227
      %p236 = scmp.eq.s32.totalorder %s51, 7
      %p237 = por %p235, %p236
      %p238 = scmp.ne.s32.totalorder %s227, %s228
      %p239 = scmp.eq.s32.totalorder %s51, 0
      %p240 = por %p238, %p239
      %p241 = scmp.ne.s32.totalorder %s227, %s228
      %p242 = scmp.eq.s32.totalorder %s52, 7
      %p243 = por %p241, %p242
      %p245 = scmp.ne.s32.totalorder %s228, %s244
      %p246 = scmp.eq.s32.totalorder %s52, 0
      %p247 = por %p245, %p246
      %s248 = ssub.s32 %s54, %s61
      %p249 = scmp.eq.s32.totalorder %s248, 0
      %s251 = sadd.s32 %s250, 1
      %s252 = scalar_select %p249, %s250, %s251
      %p255 = pneg %p249
      %p256 = scmp.eq.s32.totalorder %s46, 7
      %p257 = por %p255, %p256
      %p258 = scmp.ne.s32.totalorder %s250, %s253
      %p259 = scmp.eq.s32.totalorder %s46, 0
      %p260 = por %p258, %p259
      %p261 = scmp.ne.s32.totalorder %s250, %s253
      %p262 = scmp.eq.s32.totalorder %s51, 7
      %p263 = por %p261, %p262
      %p264 = scmp.ne.s32.totalorder %s253, %s254
      %p265 = scmp.eq.s32.totalorder %s51, 0
      %p266 = por %p264, %p265
      %p267 = scmp.ne.s32.totalorder %s253, %s254
      %p268 = scmp.eq.s32.totalorder %s52, 7
      %p269 = por %p267, %p268
      %p271 = scmp.ne.s32.totalorder %s254, %s270
      %p272 = scmp.eq.s32.totalorder %s52, 0
      %p273 = por %p271, %p272
      %s274 = ssub.s32 %s54, %s61
      %p275 = scmp.eq.s32.totalorder %s274, 0
      %s277 = sadd.s32 %s276, 1
      %s278 = scalar_select %p275, %s276, %s277
      %p281 = pneg %p275
      %p282 = scmp.eq.s32.totalorder %s46, 7
      %p283 = por %p281, %p282
      %p284 = scmp.ne.s32.totalorder %s276, %s279
      %p285 = scmp.eq.s32.totalorder %s46, 0
      %p286 = por %p284, %p285
      %p287 = scmp.ne.s32.totalorder %s276, %s279
      %p288 = scmp.eq.s32.totalorder %s51, 7
      %p289 = por %p287, %p288
      %p290 = scmp.ne.s32.totalorder %s279, %s280
      %p291 = scmp.eq.s32.totalorder %s51, 0
      %p292 = por %p290, %p291
      %p293 = scmp.ne.s32.totalorder %s279, %s280
      %p294 = scmp.eq.s32.totalorder %s52, 7
      %p295 = por %p293, %p294
      %p297 = scmp.ne.s32.totalorder %s280, %s296
      %p298 = scmp.eq.s32.totalorder %s52, 0
      %p299 = por %p297, %p298
      %s300 = ssub.s32 %s54, %s61
      %p301 = scmp.eq.s32.totalorder %s300, 0
      %s303 = sadd.s32 %s302, 1
      %s304 = scalar_select %p301, %s302, %s303
      %p307 = pneg %p301
      %p308 = scmp.eq.s32.totalorder %s46, 7
      %p309 = por %p307, %p308
      %p310 = scmp.ne.s32.totalorder %s302, %s305
      %p311 = scmp.eq.s32.totalorder %s46, 0
      %p312 = por %p310, %p311
      %p313 = scmp.ne.s32.totalorder %s302, %s305
      %p314 = scmp.eq.s32.totalorder %s51, 7
      %p315 = por %p313, %p314
      %p316 = scmp.ne.s32.totalorder %s305, %s306
      %p317 = scmp.eq.s32.totalorder %s51, 0
      %p318 = por %p316, %p317
      %p319 = scmp.ne.s32.totalorder %s305, %s306
      %p320 = scmp.eq.s32.totalorder %s52, 7
      %p321 = por %p319, %p320
      %p323 = scmp.ne.s32.totalorder %s306, %s322
      %p324 = scmp.eq.s32.totalorder %s52, 0
      %p325 = por %p323, %p324
      %s327 = sadd.s32 %s326, 1
      %p330 = scmp.eq.s32.totalorder %s46, 7
      %p331 = scmp.ne.s32.totalorder %s326, %s328
      %p332 = scmp.eq.s32.totalorder %s46, 0
      %p333 = por %p331, %p332
      %p334 = scmp.ne.s32.totalorder %s326, %s328
      %p335 = scmp.eq.s32.totalorder %s51, 7
      %p336 = por %p334, %p335
      %p337 = scmp.ne.s32.totalorder %s328, %s329
      %p338 = scmp.eq.s32.totalorder %s51, 0
      %p339 = por %p337, %p338
      %p340 = scmp.ne.s32.totalorder %s328, %s329
      %p341 = scmp.eq.s32.totalorder %s52, 7
      %p342 = por %p340, %p341
      %p344 = scmp.ne.s32.totalorder %s329, %s343
      %p345 = scmp.eq.s32.totalorder %s52, 0
      %p346 = por %p344, %p345
      %s348 = sadd.s32 %s347, 1
      %p351 = scmp.eq.s32.totalorder %s46, 7
      %p352 = scmp.ne.s32.totalorder %s347, %s349
      %p353 = scmp.eq.s32.totalorder %s46, 0
      %p354 = por %p352, %p353
      %p355 = scmp.ne.s32.totalorder %s347, %s349
      %p356 = scmp.eq.s32.totalorder %s51, 7
      %p357 = por %p355, %p356
      %p358 = scmp.ne.s32.totalorder %s349, %s350
      %p359 = scmp.eq.s32.totalorder %s51, 0
      %p360 = por %p358, %p359
      %p361 = scmp.ne.s32.totalorder %s349, %s350
      %p362 = scmp.eq.s32.totalorder %s52, 7
      %p363 = por %p361, %p362
      %p365 = scmp.ne.s32.totalorder %s350, %s364
      %p366 = scmp.eq.s32.totalorder %s52, 0
      %p367 = por %p365, %p366
      %s369 = sadd.s32 %s368, 1
      %p372 = scmp.eq.s32.totalorder %s46, 7
      %p373 = scmp.ne.s32.totalorder %s368, %s370
      %p374 = scmp.eq.s32.totalorder %s46, 0
      %p375 = por %p373, %p374
      %p376 = scmp.ne.s32.totalorder %s368, %s370
      %p377 = scmp.eq.s32.totalorder %s51, 7
      %p378 = por %p376, %p377
      %p379 = scmp.ne.s32.totalorder %s370, %s371
      %p380 = scmp.eq.s32.totalorder %s51, 0
      %p381 = por %p379, %p380
      %p382 = scmp.ne.s32.totalorder %s370, %s371
      %p383 = scmp.eq.s32.totalorder %s52, 7
      %p384 = por %p382, %p383
      %p386 = scmp.ne.s32.totalorder %s371, %s385
      %p387 = scmp.eq.s32.totalorder %s52, 0
      %p388 = por %p386, %p387
      %s389 = ssub.s32 %s53, %s65
      %p390 = scmp.eq.s32.totalorder %s389, 0
      %s392 = sadd.s32 %s391, 1
      %s393 = scalar_select %p390, %s391, %s392
      %p396 = pneg %p390
      %p397 = scmp.eq.s32.totalorder %s46, 7
      %p398 = por %p396, %p397
      %p399 = scmp.ne.s32.totalorder %s391, %s394
      %p400 = scmp.eq.s32.totalorder %s46, 0
      %p401 = por %p399, %p400
      %p402 = scmp.ne.s32.totalorder %s391, %s394
      %p403 = scmp.eq.s32.totalorder %s51, 7
      %p404 = por %p402, %p403
      %p405 = scmp.ne.s32.totalorder %s394, %s395
      %p406 = scmp.eq.s32.totalorder %s51, 0
      %p407 = por %p405, %p406
      %p408 = scmp.ne.s32.totalorder %s394, %s395
      %p409 = scmp.eq.s32.totalorder %s52, 7
      %p410 = por %p408, %p409
      %p412 = scmp.ne.s32.totalorder %s395, %s411
      %p413 = scmp.eq.s32.totalorder %s52, 0
      %p414 = por %p412, %p413
      %s415 = ssub.s32 %s53, %s65
      %s416 = ssub.s32 %s54, %s61
      %s417 = sor.u32 %s415, %s416
      %p418 = scmp.eq.s32.totalorder %s417, 0
      %s420 = sadd.s32 %s419, 1
      %s421 = scalar_select %p418, %s419, %s420
      %p424 = pneg %p418
      %p425 = scmp.eq.s32.totalorder %s46, 7
      %p426 = por %p424, %p425
      %p427 = scmp.ne.s32.totalorder %s419, %s422
      %p428 = scmp.eq.s32.totalorder %s46, 0
      %p429 = por %p427, %p428
      %p430 = scmp.ne.s32.totalorder %s419, %s422
      %p431 = scmp.eq.s32.totalorder %s51, 7
      %p432 = por %p430, %p431
      %p433 = scmp.ne.s32.totalorder %s422, %s423
      %p434 = scmp.eq.s32.totalorder %s51, 0
      %p435 = por %p433, %p434
      %p436 = scmp.ne.s32.totalorder %s422, %s423
      %p437 = scmp.eq.s32.totalorder %s52, 7
      %p438 = por %p436, %p437
      %p440 = scmp.ne.s32.totalorder %s423, %s439
      %p441 = scmp.eq.s32.totalorder %s52, 0
      %p442 = por %p440, %p441
      %p443 = scmp.le.s32.totalorder 1, %s46
      %p444 = scmp.lt.s32.totalorder %s46, 9
      %p445 = pnand %p443, %p444
      %p446 = pneg %p445
      // Predicated region
      $region9: #{transformer_forward.16} parent=5 // pred_check
        _
      $region10: #{transformer_forward.16} parent=5 // pred_check_branch
        %448 = sbr.rel (%p445) target = $region12
      $region11: #{transformer_forward.16} parent=5 // pred_region
        %s449 = ssub.s32 %s46, 1
        // Predicated region
        $region13: #{transformer_forward.16} parent=11 // pred_check
          %p450 = pneg %p339
        $region14: #{transformer_forward.16} parent=11 // pred_check_branch
          %452 = sbr.rel (%p450) target = $region16
        $region15: #{transformer_forward.16} parent=11 // pred_region
          %s454 = ssub.s32 16, 16
          %455 = vsyncadd [#allocation20], %s454
          %s457 = sshll.u32 [#allocation21], 4
          %s458 = int_to_ptr.vmem [resolvable:$true] %s457
          %460 = dma.hbm_to_vmem [thread:$0]  %s10, 16, %s458, [#allocation20]
        $region16: #{transformer_forward.16} parent=11 // pred_fallthru
          _
        // Predicated region
        $region17: #{transformer_forward.16} parent=11 // pred_check
          %p461 = pneg %p360
        $region18: #{transformer_forward.16} parent=11 // pred_check_branch
          %463 = sbr.rel (%p461) target = $region20
        $region19: #{transformer_forward.16} parent=11 // pred_region
          %s465 = ssub.s32 16, 16
          %466 = vsyncadd [#allocation23], %s465
          %s468 = sshll.u32 [#allocation22], 4
          %s469 = int_to_ptr.vmem [resolvable:$true] %s468
          %471 = dma.hbm_to_vmem [thread:$0]  %s11, 16, %s469, [#allocation23]
        $region20: #{transformer_forward.16} parent=11 // pred_fallthru
          _
        // Predicated region
        $region21: #{transformer_forward.16} parent=11 // pred_check
          %p472 = pneg %p381
        $region22: #{transformer_forward.16} parent=11 // pred_check_branch
          %474 = sbr.rel (%p472) target = $region24
        $region23: #{transformer_forward.16} parent=11 // pred_region
          %s476 = ssub.s32 16, 16
          %477 = vsyncadd [#allocation23], %s476
          %s479 = sshll.u32 [#allocation24], 4
          %s480 = int_to_ptr.vmem [resolvable:$true] %s479
          %482 = dma.hbm_to_vmem [thread:$0]  %s12, 16, %s480, [#allocation23]
        $region24: #{transformer_forward.16} parent=11 // pred_fallthru
          _
      $region12: #{transformer_forward.16} parent=5 // pred_fallthru
        _
      %p483 = scmp.lt.s32.totalorder %s46, 8
      // Predicated region
      $region25: #{transformer_forward.16} parent=5 // pred_check
        %p484 = pneg %p483
      $region26: #{transformer_forward.16} parent=5 // pred_check_branch
        %486 = sbr.rel (%p484) target = $region28
      $region27: #{transformer_forward.16} parent=5 // pred_region
        // Predicated region
        $region29: #{transformer_forward.16} parent=27 // pred_check
          %p487 = pneg %p78
        $region30: #{transformer_forward.16} parent=27 // pred_check_branch
          %489 = sbr.rel (%p487) target = $region32
        $region31: #{transformer_forward.16} parent=27 // pred_region
          %s490 = sand.u32 %s68, 1
          %s491 = scalar_lea.sflag [#allocation5], %s490
          %s492 = sand.u32 %s68, 1
          %s493 = smul.addr %s492, 8
          %s494 = scalar_lea.vmem [#allocation4], %s493
          %s496 = ssub.s32 128, 128
          %497 = vsyncadd %s491, %s496
          %s498 = smul.addr %s53, 128
          %s499 = scalar_lea.hbm %s0, %s498
          %s501 = sshll.u32 %s494, 4
          %s502 = int_to_ptr.vmem [resolvable:$true] %s501
          %504 = dma.hbm_to_vmem [thread:$0]  %s499, 128, %s502, %s491
        $region32: #{transformer_forward.16} parent=27 // pred_fallthru
          _
        // Predicated region
        $region33: #{transformer_forward.16} parent=27 // pred_check
          %p505 = pneg %p104
        $region34: #{transformer_forward.16} parent=27 // pred_check_branch
          %507 = sbr.rel (%p505) target = $region36
        $region35: #{transformer_forward.16} parent=27 // pred_region
          %s508 = sand.u32 %s46, 1
          %s509 = scalar_lea.sflag [#allocation8], %s508
          %s510 = sand.u32 %s94, 1
          %s511 = smul.addr %s510, 8
          %s512 = scalar_lea.vmem [#allocation7], %s511
          %s514 = ssub.s32 128, 128
          %515 = vsyncadd %s509, %s514
          %s516 = smul.addr %s53, 128
          %s517 = scalar_lea.hbm %s1, %s516
          %s519 = sshll.u32 %s512, 4
          %s520 = int_to_ptr.vmem [resolvable:$true] %s519
          %522 = dma.hbm_to_vmem [thread:$0]  %s517, 128, %s520, %s509
        $region36: #{transformer_forward.16} parent=27 // pred_fallthru
          _
        // Predicated region
        $region37: #{transformer_forward.16} parent=27 // pred_check
          %p523 = pneg %p130
        $region38: #{transformer_forward.16} parent=27 // pred_check_branch
          %525 = sbr.rel (%p523) target = $region40
        $region39: #{transformer_forward.16} parent=27 // pred_region
          %s526 = sand.u32 %s46, 1
          %s527 = scalar_lea.sflag [#allocation8], %s526
          %s528 = sand.u32 %s120, 1
          %s529 = scalar_lea.vmem [#allocation9], %s528
          %s531 = ssub.s32 16, 16
          %532 = vsyncadd %s527, %s531
          %s533 = smul.addr %s53, 16
          %s534 = scalar_lea.hbm %s2, %s533
          %s536 = sshll.u32 %s529, 4
          %s537 = int_to_ptr.vmem [resolvable:$true] %s536
          %539 = dma.hbm_to_vmem [thread:$0]  %s534, 16, %s537, %s527
        $region40: #{transformer_forward.16} parent=27 // pred_fallthru
          _
        // Predicated region
        $region41: #{transformer_forward.16} parent=27 // pred_check
          %p540 = pneg %p156
        $region42: #{transformer_forward.16} parent=27 // pred_check_branch
          %542 = sbr.rel (%p540) target = $region44
        $region43: #{transformer_forward.16} parent=27 // pred_region
          %s543 = sand.u32 %s46, 1
          %s544 = scalar_lea.sflag [#allocation11], %s543
          %s545 = sand.u32 %s146, 1
          %s546 = smul.addr %s545, 16
          %s547 = scalar_lea.vmem [#allocation10], %s546
          %s549 = ssub.s32 256, 256
          %550 = vsyncadd %s544, %s549
          %s551 = smul.addr %s54, 4
          %s552 = smul.addr %s551, 64
          %s553 = scalar_lea.hbm %s3, %s552
          %s554 = sshll.u32 %s547, 4
          %s555 = int_to_ptr.vmem [resolvable:$true] %s554
          %560 = dma.hbm_to_vmem [thread:$0]  %s553, 256, %s555, %s544, 64, 64, 4
        $region44: #{transformer_forward.16} parent=27 // pred_fallthru
          _
        // Predicated region
        $region45: #{transformer_forward.16} parent=27 // pred_check
          %p561 = pneg %p182
        $region46: #{transformer_forward.16} parent=27 // pred_check_branch
          %563 = sbr.rel (%p561) target = $region48
        $region47: #{transformer_forward.16} parent=27 // pred_region
          %s564 = sand.u32 %s46, 1
          %s565 = scalar_lea.sflag [#allocation11], %s564
          %s566 = sand.u32 %s172, 1
          %s567 = smul.addr %s566, 16
          %s568 = scalar_lea.vmem [#allocation12], %s567
          %s570 = ssub.s32 256, 256
          %571 = vsyncadd %s565, %s570
          %s572 = smul.addr %s54, 4
          %s573 = smul.addr %s572, 64
          %s574 = scalar_lea.hbm %s4, %s573
          %s575 = sshll.u32 %s568, 4
          %s576 = int_to_ptr.vmem [resolvable:$true] %s575
          %581 = dma.hbm_to_vmem [thread:$0]  %s574, 256, %s576, %s565, 64, 64, 4
        $region48: #{transformer_forward.16} parent=27 // pred_fallthru
          _
        // Predicated region
        $region49: #{transformer_forward.16} parent=27 // pred_check
          %p582 = pneg %p208
        $region50: #{transformer_forward.16} parent=27 // pred_check_branch
          %584 = sbr.rel (%p582) target = $region52
        $region51: #{transformer_forward.16} parent=27 // pred_region
          %s585 = sand.u32 %s46, 1
          %s586 = scalar_lea.sflag [#allocation14], %s585
          %s587 = sand.u32 %s198, 1
          %s588 = smul.addr %s587, 16
          %s589 = scalar_lea.vmem [#allocation13], %s588
          %s591 = ssub.s32 256, 256
          %592 = vsyncadd %s586, %s591
          %s593 = smul.addr %s54, 4
          %s594 = smul.addr %s593, 64
          %s595 = scalar_lea.hbm %s5, %s594
          %s596 = sshll.u32 %s589, 4
          %s597 = int_to_ptr.vmem [resolvable:$true] %s596
          %602 = dma.hbm_to_vmem [thread:$0]  %s595, 256, %s597, %s586, 64, 64, 4
        $region52: #{transformer_forward.16} parent=27 // pred_fallthru
          _
        // Predicated region
        $region53: #{transformer_forward.16} parent=27 // pred_check
          %p603 = pneg %p234
        $region54: #{transformer_forward.16} parent=27 // pred_check_branch
          %605 = sbr.rel (%p603) target = $region56
        $region55: #{transformer_forward.16} parent=27 // pred_region
          %s606 = sand.u32 %s46, 1
          %s607 = scalar_lea.sflag [#allocation14], %s606
          %s608 = sand.u32 %s224, 1
          %s609 = scalar_lea.vmem [#allocation15], %s608
          %s611 = ssub.s32 16, 16
          %612 = vsyncadd %s607, %s611
          %s613 = smul.addr %s54, 16
          %s614 = scalar_lea.hbm %s6, %s613
          %s616 = sshll.u32 %s609, 4
          %s617 = int_to_ptr.vmem [resolvable:$true] %s616
          %619 = dma.hbm_to_vmem [thread:$0]  %s614, 16, %s617, %s607
        $region56: #{transformer_forward.16} parent=27 // pred_fallthru
          _
        // Predicated region
        $region57: #{transformer_forward.16} parent=27 // pred_check
          %p620 = pneg %p260
        $region58: #{transformer_forward.16} parent=27 // pred_check_branch
          %622 = sbr.rel (%p620) target = $region60
        $region59: #{transformer_forward.16} parent=27 // pred_region
          %s623 = sand.u32 %s46, 1
          %s624 = scalar_lea.sflag [#allocation17], %s623
          %s625 = sand.u32 %s250, 1
          %s626 = scalar_lea.vmem [#allocation16], %s625
          %s628 = ssub.s32 16, 16
          %629 = vsyncadd %s624, %s628
          %s630 = smul.addr %s54, 16
          %s631 = scalar_lea.hbm %s7, %s630
          %s633 = sshll.u32 %s626, 4
          %s634 = int_to_ptr.vmem [resolvable:$true] %s633
          %636 = dma.hbm_to_vmem [thread:$0]  %s631, 16, %s634, %s624
        $region60: #{transformer_forward.16} parent=27 // pred_fallthru
          _
        // Predicated region
        $region61: #{transformer_forward.16} parent=27 // pred_check
          %p637 = pneg %p286
        $region62: #{transformer_forward.16} parent=27 // pred_check_branch
          %639 = sbr.rel (%p637) target = $region64
        $region63: #{transformer_forward.16} parent=27 // pred_region
          %s640 = sand.u32 %s46, 1
          %s641 = scalar_lea.sflag [#allocation17], %s640
          %s642 = sand.u32 %s276, 1
          %s643 = scalar_lea.vmem [#allocation18], %s642
          %s645 = ssub.s32 16, 16
          %646 = vsyncadd %s641, %s645
          %s647 = smul.addr %s54, 16
          %s648 = scalar_lea.hbm %s8, %s647
          %s650 = sshll.u32 %s643, 4
          %s651 = int_to_ptr.vmem [resolvable:$true] %s650
          %653 = dma.hbm_to_vmem [thread:$0]  %s648, 16, %s651, %s641
        $region64: #{transformer_forward.16} parent=27 // pred_fallthru
          _
        // Predicated region
        $region65: #{transformer_forward.16} parent=27 // pred_check
          %p654 = pneg %p312
        $region66: #{transformer_forward.16} parent=27 // pred_check_branch
          %656 = sbr.rel (%p654) target = $region68
        $region67: #{transformer_forward.16} parent=27 // pred_region
          %s657 = sand.u32 %s46, 1
          %s658 = scalar_lea.sflag [#allocation20], %s657
          %s659 = sand.u32 %s302, 1
          %s660 = smul.addr %s659, 4
          %s661 = scalar_lea.vmem [#allocation19], %s660
          %s663 = ssub.s32 64, 64
          %664 = vsyncadd %s658, %s663
          %s665 = smul.addr %s54, 64
          %s666 = scalar_lea.hbm %s9, %s665
          %s668 = sshll.u32 %s661, 4
          %s669 = int_to_ptr.vmem [resolvable:$true] %s668
          %671 = dma.hbm_to_vmem [thread:$0]  %s666, 64, %s669, %s658
        $region68: #{transformer_forward.16} parent=27 // pred_fallthru
          _
      $region28: #{transformer_forward.16} parent=5 // pred_fallthru
        _
      %p672 = scmp.le.s32.totalorder 1, %s46
      %p673 = scmp.lt.s32.totalorder %s46, 9
      %p674 = pnand %p672, %p673
      %p675 = pneg %p674
      // Predicated region
      $region69: #{transformer_forward.16} parent=5 // pred_check
        _
      $region70: #{transformer_forward.16} parent=5 // pred_check_branch
        %677 = sbr.rel (%p674) target = $region72
      $region71: #{transformer_forward.16} parent=5 // pred_region
        %s678 = ssub.s32 %s46, 1
        %s679 = sand.u32 %s71, 1
        %s680 = scalar_lea.sflag [#allocation5], %s679
        %s681 = sand.u32 %s71, 1
        %s682 = smul.addr %s681, 8
        %s683 = scalar_lea.vmem [#allocation4], %s682
        // Predicated region
        $region73: #{transformer_forward.16} parent=71 // pred_check
          %p684 = pneg %p84
        $region74: #{transformer_forward.16} parent=71 // pred_check_branch
          %686 = sbr.rel (%p684) target = $region76
        $region75: #{transformer_forward.16} parent=71 // pred_region
          %687 = dma.done %s680, 128
        $region76: #{transformer_forward.16} parent=71 // pred_fallthru
          _
        %s688 = sand.u32 %s51, 1
        %s689 = scalar_lea.sflag [#allocation8], %s688
        %s690 = sand.u32 %s97, 1
        %s691 = smul.addr %s690, 8
        %s692 = scalar_lea.vmem [#allocation7], %s691
        // Predicated region
        $region77: #{transformer_forward.16} parent=71 // pred_check
          %p693 = pneg %p110
        $region78: #{transformer_forward.16} parent=71 // pred_check_branch
          %695 = sbr.rel (%p693) target = $region80
        $region79: #{transformer_forward.16} parent=71 // pred_region
          %696 = dma.done %s689, 128
        $region80: #{transformer_forward.16} parent=71 // pred_fallthru
          _
        %s697 = sand.u32 %s51, 1
        %s698 = scalar_lea.sflag [#allocation8], %s697
        %s699 = sand.u32 %s123, 1
        %s700 = scalar_lea.vmem [#allocation9], %s699
        // Predicated region
        $region81: #{transformer_forward.16} parent=71 // pred_check
          %p701 = pneg %p136
        $region82: #{transformer_forward.16} parent=71 // pred_check_branch
          %703 = sbr.rel (%p701) target = $region84
        $region83: #{transformer_forward.16} parent=71 // pred_region
          %704 = dma.done %s698, 16
        $region84: #{transformer_forward.16} parent=71 // pred_fallthru
          _
        %s705 = sand.u32 %s51, 1
        %s706 = scalar_lea.sflag [#allocation11], %s705
        %s707 = sand.u32 %s149, 1
        %s708 = smul.addr %s707, 16
        %s709 = scalar_lea.vmem [#allocation10], %s708
        // Predicated region
        $region85: #{transformer_forward.16} parent=71 // pred_check
          %p710 = pneg %p162
        $region86: #{transformer_forward.16} parent=71 // pred_check_branch
          %712 = sbr.rel (%p710) target = $region88
        $region87: #{transformer_forward.16} parent=71 // pred_region
          %713 = dma.done %s706, 256
        $region88: #{transformer_forward.16} parent=71 // pred_fallthru
          _
        %s714 = sand.u32 %s51, 1
        %s715 = scalar_lea.sflag [#allocation11], %s714
        %s716 = sand.u32 %s175, 1
        %s717 = smul.addr %s716, 16
        %s718 = scalar_lea.vmem [#allocation12], %s717
        // Predicated region
        $region89: #{transformer_forward.16} parent=71 // pred_check
          %p719 = pneg %p188
        $region90: #{transformer_forward.16} parent=71 // pred_check_branch
          %721 = sbr.rel (%p719) target = $region92
        $region91: #{transformer_forward.16} parent=71 // pred_region
          %722 = dma.done %s715, 256
        $region92: #{transformer_forward.16} parent=71 // pred_fallthru
          _
        %s723 = sand.u32 %s51, 1
        %s724 = scalar_lea.sflag [#allocation14], %s723
        %s725 = sand.u32 %s201, 1
        %s726 = smul.addr %s725, 16
        %s727 = scalar_lea.vmem [#allocation13], %s726
        // Predicated region
        $region93: #{transformer_forward.16} parent=71 // pred_check
          %p728 = pneg %p214
        $region94: #{transformer_forward.16} parent=71 // pred_check_branch
          %730 = sbr.rel (%p728) target = $region96
        $region95: #{transformer_forward.16} parent=71 // pred_region
          %731 = dma.done %s724, 256
        $region96: #{transformer_forward.16} parent=71 // pred_fallthru
          _
        %s732 = sand.u32 %s51, 1
        %s733 = scalar_lea.sflag [#allocation14], %s732
        %s734 = sand.u32 %s227, 1
        %s735 = scalar_lea.vmem [#allocation15], %s734
        // Predicated region
        $region97: #{transformer_forward.16} parent=71 // pred_check
          %p736 = pneg %p240
        $region98: #{transformer_forward.16} parent=71 // pred_check_branch
          %738 = sbr.rel (%p736) target = $region100
        $region99: #{transformer_forward.16} parent=71 // pred_region
          %739 = dma.done %s733, 16
        $region100: #{transformer_forward.16} parent=71 // pred_fallthru
          _
        %s740 = sand.u32 %s51, 1
        %s741 = scalar_lea.sflag [#allocation17], %s740
        %s742 = sand.u32 %s253, 1
        %s743 = scalar_lea.vmem [#allocation16], %s742
        // Predicated region
        $region101: #{transformer_forward.16} parent=71 // pred_check
          %p744 = pneg %p266
        $region102: #{transformer_forward.16} parent=71 // pred_check_branch
          %746 = sbr.rel (%p744) target = $region104
        $region103: #{transformer_forward.16} parent=71 // pred_region
          %747 = dma.done %s741, 16
        $region104: #{transformer_forward.16} parent=71 // pred_fallthru
          _
        %s748 = sand.u32 %s51, 1
        %s749 = scalar_lea.sflag [#allocation17], %s748
        %s750 = sand.u32 %s279, 1
        %s751 = scalar_lea.vmem [#allocation18], %s750
        // Predicated region
        $region105: #{transformer_forward.16} parent=71 // pred_check
          %p752 = pneg %p292
        $region106: #{transformer_forward.16} parent=71 // pred_check_branch
          %754 = sbr.rel (%p752) target = $region108
        $region107: #{transformer_forward.16} parent=71 // pred_region
          %755 = dma.done %s749, 16
        $region108: #{transformer_forward.16} parent=71 // pred_fallthru
          _
        %s756 = sand.u32 %s51, 1
        %s757 = scalar_lea.sflag [#allocation20], %s756
        %s758 = sand.u32 %s305, 1
        %s759 = smul.addr %s758, 4
        %s760 = scalar_lea.vmem [#allocation19], %s759
        // Predicated region
        $region109: #{transformer_forward.16} parent=71 // pred_check
          %p761 = pneg %p318
        $region110: #{transformer_forward.16} parent=71 // pred_check_branch
          %763 = sbr.rel (%p761) target = $region112
        $region111: #{transformer_forward.16} parent=71 // pred_region
          %764 = dma.done %s757, 64
        $region112: #{transformer_forward.16} parent=71 // pred_fallthru
          _
        // Predicated region
        $region113: #{transformer_forward.16} parent=71 // pred_check
          %p765 = pneg %p339
        $region114: #{transformer_forward.16} parent=71 // pred_check_branch
          %767 = sbr.rel (%p765) target = $region116
        $region115: #{transformer_forward.16} parent=71 // pred_region
          %768 = dma.done [#allocation20], 16
        $region116: #{transformer_forward.16} parent=71 // pred_fallthru
          _
        // Predicated region
        $region117: #{transformer_forward.16} parent=71 // pred_check
          %p769 = pneg %p360
        $region118: #{transformer_forward.16} parent=71 // pred_check_branch
          %771 = sbr.rel (%p769) target = $region120
        $region119: #{transformer_forward.16} parent=71 // pred_region
          %772 = dma.done [#allocation23], 16
        $region120: #{transformer_forward.16} parent=71 // pred_fallthru
          _
        // Predicated region
        $region121: #{transformer_forward.16} parent=71 // pred_check
          %p773 = pneg %p381
        $region122: #{transformer_forward.16} parent=71 // pred_check_branch
          %775 = sbr.rel (%p773) target = $region124
        $region123: #{transformer_forward.16} parent=71 // pred_region
          %776 = dma.done [#allocation23], 16
        $region124: #{transformer_forward.16} parent=71 // pred_fallthru
          _
        %s777 = sand.u32 %s71, 1
        %s778 = scalar_lea.sflag [#allocation5], %s777
        %s779 = sand.u32 %s71, 1
        %s780 = smul.addr %s779, 8
        %s781 = scalar_lea.vmem [#allocation4], %s780
        %p782 = pneg %p84
        %p783 = pneg %p81
        %s784 = sand.u32 %s51, 1
        %s785 = scalar_lea.sflag [#allocation8], %s784
        %s786 = sand.u32 %s97, 1
        %s787 = smul.addr %s786, 8
        %s788 = scalar_lea.vmem [#allocation7], %s787
        %p789 = pneg %p110
        %p790 = pneg %p107
        %s791 = sand.u32 %s51, 1
        %s792 = scalar_lea.sflag [#allocation8], %s791
        %s793 = sand.u32 %s123, 1
        %s794 = scalar_lea.vmem [#allocation9], %s793
        %p795 = pneg %p136
        %p796 = pneg %p133
        %s797 = sand.u32 %s51, 1
        %s798 = scalar_lea.sflag [#allocation11], %s797
        %s799 = sand.u32 %s149, 1
        %s800 = smul.addr %s799, 16
        %s801 = scalar_lea.vmem [#allocation10], %s800
        %p802 = pneg %p162
        %p803 = pneg %p159
        %s804 = sand.u32 %s51, 1
        %s805 = scalar_lea.sflag [#allocation11], %s804
        %s806 = sand.u32 %s175, 1
        %s807 = smul.addr %s806, 16
        %s808 = scalar_lea.vmem [#allocation12], %s807
        %p809 = pneg %p188
        %p810 = pneg %p185
        %s811 = sand.u32 %s51, 1
        %s812 = scalar_lea.sflag [#allocation14], %s811
        %s813 = sand.u32 %s201, 1
        %s814 = smul.addr %s813, 16
        %s815 = scalar_lea.vmem [#allocation13], %s814
        %p816 = pneg %p214
        %p817 = pneg %p211
        %s818 = sand.u32 %s51, 1
        %s819 = scalar_lea.sflag [#allocation14], %s818
        %s820 = sand.u32 %s227, 1
        %s821 = scalar_lea.vmem [#allocation15], %s820
        %p822 = pneg %p240
        %p823 = pneg %p237
        %s824 = sand.u32 %s51, 1
        %s825 = scalar_lea.sflag [#allocation17], %s824
        %s826 = sand.u32 %s253, 1
        %s827 = scalar_lea.vmem [#allocation16], %s826
        %p828 = pneg %p266
        %p829 = pneg %p263
        %s830 = sand.u32 %s51, 1
        %s831 = scalar_lea.sflag [#allocation17], %s830
        %s832 = sand.u32 %s279, 1
        %s833 = scalar_lea.vmem [#allocation18], %s832
        %p834 = pneg %p292
        %p835 = pneg %p289
        %s836 = sand.u32 %s51, 1
        %s837 = scalar_lea.sflag [#allocation20], %s836
        %s838 = sand.u32 %s305, 1
        %s839 = smul.addr %s838, 4
        %s840 = scalar_lea.vmem [#allocation19], %s839
        %p841 = pneg %p318
        %p842 = pneg %p315
        %p843 = pneg %p339
        %p844 = pneg %p336
        %p845 = pneg %p360
        %p846 = pneg %p357
        %p847 = pneg %p381
        %p848 = pneg %p378
        %p849 = pneg %p407
        %p850 = pneg %p404
        %s851 = sand.u32 %s394, 1
        %s852 = scalar_lea.sflag [#allocation6], %s851
        %s853 = sand.u32 %s394, 1
        %s854 = smul.addr %s853, 8
        %s855 = scalar_lea.vmem [#allocation25], %s854
        %p856 = pneg %p435
        %p857 = pneg %p432
        %s858 = sand.u32 %s422, 1
        %s859 = scalar_lea.sflag [#allocation27], %s858
        %s860 = sand.u32 %s422, 1
        %s861 = smul.addr %s860, 4
        %s862 = scalar_lea.vmem [#allocation26], %s861
        %v864 = vld [vmem:[%s683] sm:$0xff]
        %p865 = scmp.eq.s32.totalorder %s56, 0
        // Predicated region
        $region125: #{transformer_forward.16} parent=71 // pred_check
          %p866 = pneg %p865
        $region126: #{transformer_forward.16} parent=71 // pred_check_branch
          %868 = sbr.rel (%p866) target = $region128
        $region127: #{transformer_forward.16} parent=71 // pred_region
          %v869 = vld [vmem:[%s700] sm:$0x1]
          %vm870 = vcmp.eq.s32.totalorder %v869, 0
          %v871 = vsel %vm870, -1e+09, 0.0
          %v873 = vlaneseq
          %v874 = vshrl.u32 %v873, 7
          %v875 = vsub.s32 0, %v874
          %v876 = vrot.slane %v871, %v875
          %v878 = vlaneseq
          %v879 = vshrl.u32 %v878, 7
          %v880 = vlaneseq
          %v881 = vand.u32 %v880, 127
          %vm882 = vcmp.gt.s32.totalorder %v881, %v879
          %v883 = vsel %vm882, -1e+09, %v876
          %vm884 = vcmask 64512
          %885 = vst.msk [vmem:[#allocation2] sm:$0xff] %vm884, %v883
          %vm886 = vcmask 261120
          %887 = vst.msk [vmem:[#allocation3] sm:$0xff] %vm886, 0.0
        $region128: #{transformer_forward.16} parent=71 // pred_fallthru
          _
        %v888 = vpack.c.bf16 %v864, %v864
        %v889 = vld [vmem:[%s692] sm:$0xff]
        %v890 = vpack.c.bf16 %v889, %v889
        %v891 = vld [vmem:[%s709] sm:$0xf]
        %v892 = vld [vmem:[%s709 + $0x4] sm:$0xf]
        %v893 = vld [vmem:[%s709 + $0x8] sm:$0xf]
        %v894 = vld [vmem:[%s709 + $0xc] sm:$0xf]
        %v895 = vld [vmem:[%s735] sm:$0x1]
        %v897 = vlaneseq
        %v898 = vshrl.u32 %v897, 7
        %v899 = vsub.s32 0, %v898
        %v900 = vrot.slane %v895, %v899
        %v906 = vunpack.c.l.b16 %v891
        %v907 = vunpack.c.l.b16 %v892
        %v908 = vunpack.c.l.b16 %v893
        %v909 = vunpack.c.l.b16 %v894
        %v910 = vpack.c.b16 %v907, %v906
        %v911 = vpack.c.b16 %v909, %v908
        %vm914 = vcmask 261120
        %v916 = vsel %vm914, %v888, 0
        %918 = vmatprep.subr.bf16.mxu0 0
        %919 = vmatpush1.bf16.msra.mxu0 %v910
        %920 = vmatprep.subr.bf16.mxu0 0
        %921 = vmatpush1.bf16.msra.mxu0 %v911
        %922 = vmatprep.subr.bf16.mxu0 0
        %923 = vmatpush1.bf16.msra.mxu0 0
        %924 = vmatprep.subr.bf16.mxu0 0
        %925 = vmatpush1.bf16.msra.mxu0 0
        %926 = vmatprep.subr.bf16.mxu0 0
        %927 = vmatpush1.bf16.msra.mxu0 0
        %928 = vmatprep.subr.bf16.mxu0 0
        %929 = vmatpush1.bf16.msra.mxu0 0
        %930 = vmatprep.subr.bf16.mxu0 0
        %931 = vmatpush1.bf16.msra.mxu0 0
        %932 = vmatprep.subr.bf16.mxu0 0
        %933 = vmatpush1.bf16.msra.mxu0 0
        %934 = vmatprep.subr.bf16.mxu0 0
        %935 = vmatpush1.bf16.msra.mxu0 0
        %936 = vmatprep.subr.bf16.mxu0 0
        %937 = vmatpush1.bf16.msra.mxu0 0
        %938 = vmatprep.subr.bf16.mxu0 0
        %939 = vmatpush1.bf16.msra.mxu0 0
        %940 = vmatprep.subr.bf16.mxu0 0
        %941 = vmatpush1.bf16.msra.mxu0 0
        %942 = vmatprep.subr.bf16.mxu0 0
        %943 = vmatpush1.bf16.msra.mxu0 0
        %944 = vmatprep.subr.bf16.mxu0 0
        %945 = vmatpush1.bf16.msra.mxu0 0
        %946 = vmatprep.subr.bf16.mxu0 0
        %947 = vmatpush1.bf16.msra.mxu0 0
        %948 = vmatprep.subr.bf16.mxu0 0
        %949 = vmatpush1.bf16.msra.mxu0 0
        %950 = vmatprep.mubr.bf16.mxu0 0
        %951 = vmatmul.mubr.bf16.gmra.mrb[0].mxu0 %v916
        %v952 = vpop.f32.mrb[0].mxu0
        %v953 = vadd.f32 %v900, %v952
        %v954 = vpop.f32.mrb[0].mxu0
        %v955 = vpop.f32.mrb[0].mxu0
        %v956 = vpop.f32.mrb[0].mxu0
        %957 = vdwg.mxu0
        %v958 = vld [vmem:[%s718] sm:$0xf]
        %v959 = vld [vmem:[%s718 + $0x4] sm:$0xf]
        %v960 = vld [vmem:[%s718 + $0x8] sm:$0xf]
        %v961 = vld [vmem:[%s718 + $0xc] sm:$0xf]
        %v962 = vld [vmem:[%s743] sm:$0x1]
        %v964 = vlaneseq
        %v965 = vshrl.u32 %v964, 7
        %v966 = vsub.s32 0, %v965
        %v967 = vrot.slane %v962, %v966
        %v973 = vunpack.c.l.b16 %v958
        %v974 = vunpack.c.l.b16 %v959
        %v975 = vunpack.c.l.b16 %v960
        %v976 = vunpack.c.l.b16 %v961
        %v977 = vpack.c.b16 %v974, %v973
        %v978 = vpack.c.b16 %v976, %v975
        %v982 = vsel %vm914, %v890, 0
        %984 = vmatprep.subr.bf16.mxu0 0
        %985 = vmatpush1.bf16.msra.mxu0 %v977
        %986 = vmatprep.subr.bf16.mxu0 0
        %987 = vmatpush1.bf16.msra.mxu0 %v978
        %988 = vmatprep.subr.bf16.mxu0 0
        %989 = vmatpush1.bf16.msra.mxu0 0
        %990 = vmatprep.subr.bf16.mxu0 0
        %991 = vmatpush1.bf16.msra.mxu0 0
        %992 = vmatprep.subr.bf16.mxu0 0
        %993 = vmatpush1.bf16.msra.mxu0 0
        %994 = vmatprep.subr.bf16.mxu0 0
        %995 = vmatpush1.bf16.msra.mxu0 0
        %996 = vmatprep.subr.bf16.mxu0 0
        %997 = vmatpush1.bf16.msra.mxu0 0
        %998 = vmatprep.subr.bf16.mxu0 0
        %999 = vmatpush1.bf16.msra.mxu0 0
        %1000 = vmatprep.subr.bf16.mxu0 0
        %1001 = vmatpush1.bf16.msra.mxu0 0
        %1002 = vmatprep.subr.bf16.mxu0 0
        %1003 = vmatpush1.bf16.msra.mxu0 0
        %1004 = vmatprep.subr.bf16.mxu0 0
        %1005 = vmatpush1.bf16.msra.mxu0 0
        %1006 = vmatprep.subr.bf16.mxu0 0
        %1007 = vmatpush1.bf16.msra.mxu0 0
        %1008 = vmatprep.subr.bf16.mxu0 0
        %1009 = vmatpush1.bf16.msra.mxu0 0
        %1010 = vmatprep.subr.bf16.mxu0 0
        %1011 = vmatpush1.bf16.msra.mxu0 0
        %1012 = vmatprep.subr.bf16.mxu0 0
        %1013 = vmatpush1.bf16.msra.mxu0 0
        %1014 = vmatprep.subr.bf16.mxu0 0
        %1015 = vmatpush1.bf16.msra.mxu0 0
        %1016 = vmatprep.mubr.bf16.mxu0 0
        %1017 = vmatmul.mubr.bf16.gmra.mrb[0].mxu0 %v982
        %v1018 = vpop.f32.mrb[0].mxu0
        %v1019 = vadd.f32 %v967, %v1018
        %v1020 = vpop.f32.mrb[0].mxu0
        %v1021 = vpop.f32.mrb[0].mxu0
        %v1022 = vpop.f32.mrb[0].mxu0
        %1023 = vdwg.mxu0
        %v1024 = vld [vmem:[%s727] sm:$0xf]
        %v1025 = vld [vmem:[%s727 + $0x4] sm:$0xf]
        %v1026 = vld [vmem:[%s727 + $0x8] sm:$0xf]
        %v1027 = vld [vmem:[%s727 + $0xc] sm:$0xf]
        %v1028 = vld [vmem:[%s751] sm:$0x1]
        %v1030 = vlaneseq
        %v1031 = vshrl.u32 %v1030, 7
        %v1032 = vsub.s32 0, %v1031
        %v1033 = vrot.slane %v1028, %v1032
        %v1039 = vunpack.c.l.b16 %v1024
        %v1040 = vunpack.c.l.b16 %v1025
        %v1041 = vunpack.c.l.b16 %v1026
        %v1042 = vunpack.c.l.b16 %v1027
        %v1043 = vpack.c.b16 %v1040, %v1039
        %v1044 = vpack.c.b16 %v1042, %v1041
        %1047 = vmatprep.subr.bf16.mxu0 0
        %1048 = vmatpush1.bf16.msra.mxu0 %v1043
        %1049 = vmatprep.subr.bf16.mxu0 0
        %1050 = vmatpush1.bf16.msra.mxu0 %v1044
        %1051 = vmatprep.subr.bf16.mxu0 0
        %1052 = vmatpush1.bf16.msra.mxu0 0
        %1053 = vmatprep.subr.bf16.mxu0 0
        %1054 = vmatpush1.bf16.msra.mxu0 0
        %1055 = vmatprep.subr.bf16.mxu0 0
        %1056 = vmatpush1.bf16.msra.mxu0 0
        %1057 = vmatprep.subr.bf16.mxu0 0
        %1058 = vmatpush1.bf16.msra.mxu0 0
        %1059 = vmatprep.subr.bf16.mxu0 0
        %1060 = vmatpush1.bf16.msra.mxu0 0
        %1061 = vmatprep.subr.bf16.mxu0 0
        %1062 = vmatpush1.bf16.msra.mxu0 0
        %1063 = vmatprep.subr.bf16.mxu0 0
        %1064 = vmatpush1.bf16.msra.mxu0 0
        %1065 = vmatprep.subr.bf16.mxu0 0
        %1066 = vmatpush1.bf16.msra.mxu0 0
        %1067 = vmatprep.subr.bf16.mxu0 0
        %1068 = vmatpush1.bf16.msra.mxu0 0
        %1069 = vmatprep.subr.bf16.mxu0 0
        %1070 = vmatpush1.bf16.msra.mxu0 0
        %1071 = vmatprep.subr.bf16.mxu0 0
        %1072 = vmatpush1.bf16.msra.mxu0 0
        %1073 = vmatprep.subr.bf16.mxu0 0
        %1074 = vmatpush1.bf16.msra.mxu0 0
        %1075 = vmatprep.subr.bf16.mxu0 0
        %1076 = vmatpush1.bf16.msra.mxu0 0
        %1077 = vmatprep.subr.bf16.mxu0 0
        %1078 = vmatpush1.bf16.msra.mxu0 0
        %1079 = vmatprep.mubr.bf16.mxu0 0
        %1080 = vmatmul.mubr.bf16.gmra.mrb[0].mxu0 %v982
        %v1081 = vpop.f32.mrb[0].mxu0
        %v1082 = vadd.f32 %v1033, %v1081
        %v1083 = vpop.f32.mrb[0].mxu0
        %v1084 = vpop.f32.mrb[0].mxu0
        %v1085 = vpop.f32.mrb[0].mxu0
        %1086 = vdwg.mxu0
        %v1087 = vpack.c.bf16 %v953, %v953
        %v1088 = vpack.c.bf16 %v1019, %v1019
        %v1089 = vld [vmem:[#allocation2] sm:$0xff]
        %vm1090 = vcmask 64512
        %v1092 = vsel %vm1090, %v1087, 0
        %v1095 = vsel %vm1090, %v1088, 0
        %1097 = vmatprep.subr.bf16.mxu0 0
        %1098 = vmatpush1.bf16.xpose.msra.mxu0 %v1095
        %1099 = vmatprep.subr.bf16.mxu0 0
        %1100 = vmatpush1.bf16.xpose.msra.mxu0 0
        %1101 = vmatprep.subr.bf16.mxu0 0
        %1102 = vmatpush1.bf16.xpose.msra.mxu0 0
        %1103 = vmatprep.subr.bf16.mxu0 0
        %1104 = vmatpush1.bf16.xpose.msra.mxu0 0
        %1105 = vmatprep.subr.bf16.mxu0 0
        %1106 = vmatpush1.bf16.xpose.msra.mxu0 0
        %1107 = vmatprep.subr.bf16.mxu0 0
        %1108 = vmatpush1.bf16.xpose.msra.mxu0 0
        %1109 = vmatprep.subr.bf16.mxu0 0
        %1110 = vmatpush1.bf16.xpose.msra.mxu0 0
        %1111 = vmatprep.subr.bf16.mxu0 0
        %1112 = vmatpush1.bf16.xpose.msra.mxu0 0
        %1113 = vmatprep.subr.bf16.mxu0 0
        %1114 = vmatpush1.bf16.xpose.msra.mxu0 0
        %1115 = vmatprep.subr.bf16.mxu0 0
        %1116 = vmatpush1.bf16.xpose.msra.mxu0 0
        %1117 = vmatprep.subr.bf16.mxu0 0
        %1118 = vmatpush1.bf16.xpose.msra.mxu0 0
        %1119 = vmatprep.subr.bf16.mxu0 0
        %1120 = vmatpush1.bf16.xpose.msra.mxu0 0
        %1121 = vmatprep.subr.bf16.mxu0 0
        %1122 = vmatpush1.bf16.xpose.msra.mxu0 0
        %1123 = vmatprep.subr.bf16.mxu0 0
        %1124 = vmatpush1.bf16.xpose.msra.mxu0 0
        %1125 = vmatprep.subr.bf16.mxu0 0
        %1126 = vmatpush1.bf16.xpose.msra.mxu0 0
        %1127 = vmatprep.subr.bf16.mxu0 0
        %1128 = vmatpush1.bf16.xpose.msra.mxu0 0
        %1129 = vmatprep.mubr.bf16.mxu0 0
        %1130 = vmatmul.mubr.bf16.gmra.mrb[0].mxu0 %v1092
        %v1131 = vpop.f32.mrb[0].mxu0
        %v1132 = vadd.f32 %v1089, %v1131
        %v1133 = vpop.f32.mrb[0].mxu0
        %v1134 = vpop.f32.mrb[0].mxu0
        %v1135 = vpop.f32.mrb[0].mxu0
        %1136 = vdwg.mxu0
        %v1137 = vsel %vm1090, %v1132, -inf
        %1138 = vmax.xlane.f32.xlu0 %v1137
        %v1139 = vpop.xlane.xlu0 %1138
        %v1140 = vsub.f32 %v1132, %v1139
        %v1141 = vmul.f32 %v1140, 1.442695
        %v1142 = vpow.pop %v1141
        %v1143 = vsel %vm1090, %v1142, 0.0
        %1144 = vadd.xlane.f32.xlu0 %v1143
        %v1145 = vpop.xlane.xlu0 %1144
        %v1146 = vrcp.pop %v1145
        %v1147 = vmul.f32 %v1142, %v1146
        %v1148 = vpack.c.bf16 %v1147, %v1147
        %vm1149 = vcmask 60416
        %1150 = vst.msk [vmem:[%s862] sm:$0xf] %vm1149, %v1148
        %v1151 = vpack.c.bf16 %v1082, %v1082
        %v1153 = vsel %vm1090, %v1148, 0
        %vm1155 = vcmask 1043456
        %v1157 = vsel %vm1155, %v1151, 0
        %1159 = vmatprep.subr.bf16.mxu0 0
        %1160 = vmatpush1.bf16.msra.mxu0 %v1157
        %1161 = vmatprep.subr.bf16.mxu0 0
        %1162 = vmatpush1.bf16.msra.mxu0 0
        %1163 = vmatprep.subr.bf16.mxu0 0
        %1164 = vmatpush1.bf16.msra.mxu0 0
        %1165 = vmatprep.subr.bf16.mxu0 0
        %1166 = vmatpush1.bf16.msra.mxu0 0
        %1167 = vmatprep.subr.bf16.mxu0 0
        %1168 = vmatpush1.bf16.msra.mxu0 0
        %1169 = vmatprep.subr.bf16.mxu0 0
        %1170 = vmatpush1.bf16.msra.mxu0 0
        %1171 = vmatprep.subr.bf16.mxu0 0
        %1172 = vmatpush1.bf16.msra.mxu0 0
        %1173 = vmatprep.subr.bf16.mxu0 0
        %1174 = vmatpush1.bf16.msra.mxu0 0
        %1175 = vmatprep.subr.bf16.mxu0 0
        %1176 = vmatpush1.bf16.msra.mxu0 0
        %1177 = vmatprep.subr.bf16.mxu0 0
        %1178 = vmatpush1.bf16.msra.mxu0 0
        %1179 = vmatprep.subr.bf16.mxu0 0
        %1180 = vmatpush1.bf16.msra.mxu0 0
        %1181 = vmatprep.subr.bf16.mxu0 0
        %1182 = vmatpush1.bf16.msra.mxu0 0
        %1183 = vmatprep.subr.bf16.mxu0 0
        %1184 = vmatpush1.bf16.msra.mxu0 0
        %1185 = vmatprep.subr.bf16.mxu0 0
        %1186 = vmatpush1.bf16.msra.mxu0 0
        %1187 = vmatprep.subr.bf16.mxu0 0
        %1188 = vmatpush1.bf16.msra.mxu0 0
        %1189 = vmatprep.subr.bf16.mxu0 0
        %1190 = vmatpush1.bf16.msra.mxu0 0
        %1191 = vmatprep.mubr.bf16.mxu0 0
        %1192 = vmatmul.mubr.bf16.gmra.mrb[0].mxu0 %v1153
        %v1193 = vpop.f32.mrb[0].mxu0
        %v1194 = vadd.f32 0.0, %v1193
        %v1195 = vpop.f32.mrb[0].mxu0
        %v1196 = vpop.f32.mrb[0].mxu0
        %v1197 = vpop.f32.mrb[0].mxu0
        %1198 = vdwg.mxu0
        %v1199 = vld [vmem:[#allocation3] sm:$0xff]
        %v1200 = vpack.c.bf16 %v1194, %v1194
        %v1201 = vld [vmem:[%s760] sm:$0xf]
        %v1203 = vsel %vm1090, %v1200, 0
        %v1206 = vsel %vm1155, %v1201, 0
        %1208 = vmatprep.subr.bf16.mxu0 0
        %1209 = vmatpush1.bf16.msra.mxu0 %v1206
        %1210 = vmatprep.subr.bf16.mxu0 0
        %1211 = vmatpush1.bf16.msra.mxu0 0
        %1212 = vmatprep.subr.bf16.mxu0 0
        %1213 = vmatpush1.bf16.msra.mxu0 0
        %1214 = vmatprep.subr.bf16.mxu0 0
        %1215 = vmatpush1.bf16.msra.mxu0 0
        %1216 = vmatprep.subr.bf16.mxu0 0
        %1217 = vmatpush1.bf16.msra.mxu0 0
        %1218 = vmatprep.subr.bf16.mxu0 0
        %1219 = vmatpush1.bf16.msra.mxu0 0
        %1220 = vmatprep.subr.bf16.mxu0 0
        %1221 = vmatpush1.bf16.msra.mxu0 0
        %1222 = vmatprep.subr.bf16.mxu0 0
        %1223 = vmatpush1.bf16.msra.mxu0 0
        %1224 = vmatprep.subr.bf16.mxu0 0
        %1225 = vmatpush1.bf16.msra.mxu0 0
        %1226 = vmatprep.subr.bf16.mxu0 0
        %1227 = vmatpush1.bf16.msra.mxu0 0
        %1228 = vmatprep.subr.bf16.mxu0 0
        %1229 = vmatpush1.bf16.msra.mxu0 0
        %1230 = vmatprep.subr.bf16.mxu0 0
        %1231 = vmatpush1.bf16.msra.mxu0 0
        %1232 = vmatprep.subr.bf16.mxu0 0
        %1233 = vmatpush1.bf16.msra.mxu0 0
        %1234 = vmatprep.subr.bf16.mxu0 0
        %1235 = vmatpush1.bf16.msra.mxu0 0
        %1236 = vmatprep.subr.bf16.mxu0 0
        %1237 = vmatpush1.bf16.msra.mxu0 0
        %1238 = vmatprep.subr.bf16.mxu0 0
        %1239 = vmatpush1.bf16.msra.mxu0 0
        %1240 = vmatprep.mubr.bf16.mxu0 0
        %1241 = vmatmul.mubr.bf16.gmra.mrb[0].mxu0 %v1203
        %v1242 = vpop.f32.mrb[0].mxu0
        %v1243 = vadd.f32 0.0, %v1242
        %v1244 = vpop.f32.mrb[0].mxu0
        %v1245 = vpop.f32.mrb[0].mxu0
        %v1246 = vpop.f32.mrb[0].mxu0
        %1247 = vdwg.mxu0
        %v1248 = vadd.f32 %v1199, %v1243
        %1249 = vst.msk [vmem:[#allocation3] sm:$0xff] %vm914, %v1248
        %p1250 = scmp.eq.s32.totalorder %s56, 3
        // Predicated region
        $region129: #{transformer_forward.16} parent=71 // pred_check
          %p1251 = pneg %p1250
        $region130: #{transformer_forward.16} parent=71 // pred_check_branch
          %1253 = sbr.rel (%p1251) target = $region132
        $region131: #{transformer_forward.16} parent=71 // pred_region
          %v1254 = vld [vmem:[#allocation3] sm:$0xff]
          %v1255 = vld [vmem:[#allocation21] sm:$0x1]
          %v1257 = vlaneseq
          %v1258 = vshrl.u32 %v1257, 7
          %v1259 = vsub.s32 0, %v1258
          %v1260 = vrot.slane %v1255, %v1259
          %v1262 = vadd.f32 %v1254, %v1260
          %v1263 = vadd.f32 %v1262, %v864
          %v1264 = vsel %vm914, %v1263, 0.0
          %1265 = vadd.xlane.f32.xlu0 %v1264
          %v1266 = vpop.xlane.xlu0 %1265
          %v1267 = vrcp.pop 32.0
          %v1268 = vmul.f32 %v1266, %v1267
          %v1269 = vsub.f32 %v1263, %v1268
          %v1270 = vmul.f32 %v1269, %v1269
          %v1271 = vsel %vm914, %v1270, 0.0
          %1272 = vadd.xlane.f32.xlu0 %v1271
          %v1273 = vpop.xlane.xlu0 %1272
          %v1274 = vmul.f32 %v1273, %v1267
          %v1275 = vadd.f32 %v1274, 1e-05
          %v1276 = vrsqrt.pop %v1275
          %v1277 = vmul.f32 %v1269, %v1276
          %v1278 = vld [vmem:[#allocation22] sm:$0x1]
          %v1280 = vlaneseq
          %v1281 = vshrl.u32 %v1280, 7
          %v1282 = vsub.s32 0, %v1281
          %v1283 = vrot.slane %v1278, %v1282
          %v1285 = vmul.f32 %v1277, %v1283
          %v1286 = vld [vmem:[#allocation24] sm:$0x1]
          %v1288 = vlaneseq
          %v1289 = vshrl.u32 %v1288, 7
          %v1290 = vsub.s32 0, %v1289
          %v1291 = vrot.slane %v1286, %v1290
          %v1293 = vadd.f32 %v1285, %v1291
          %1294 = vst.msk [vmem:[%s855] sm:$0xff] %vm914, %v1293
        $region132: #{transformer_forward.16} parent=71 // pred_fallthru
          _
        %s1295 = sand.u32 %s394, 1
        %s1296 = scalar_lea.sflag [#allocation6], %s1295
        %s1297 = sand.u32 %s394, 1
        %s1298 = smul.addr %s1297, 8
        %s1299 = scalar_lea.vmem [#allocation25], %s1298
        %s1300 = sand.u32 %s422, 1
        %s1301 = scalar_lea.sflag [#allocation27], %s1300
        %s1302 = sand.u32 %s422, 1
        %s1303 = smul.addr %s1302, 4
        %s1304 = scalar_lea.vmem [#allocation26], %s1303
        // Predicated region
        $region133: #{transformer_forward.16} parent=71 // pred_check
          %p1305 = pneg %p404
        $region134: #{transformer_forward.16} parent=71 // pred_check_branch
          %1307 = sbr.rel (%p1305) target = $region136
        $region135: #{transformer_forward.16} parent=71 // pred_region
          %s1309 = ssub.s32 128, 128
          %1310 = vsyncadd %s1296, %s1309
          %s1311 = smul.addr %s55, 128
          %s1312 = scalar_lea.hbm %s13, %s1311
          %s1314 = sshll.u32 %s1299, 4
          %s1315 = int_to_ptr.vmem [resolvable:$true] %s1314
          %1317 = dma.vmem_to_hbm [thread:$0]  %s1315, 128, %s1312, %s1296
        $region136: #{transformer_forward.16} parent=71 // pred_fallthru
          _
        // Predicated region
        $region137: #{transformer_forward.16} parent=71 // pred_check
          %p1318 = pneg %p432
        $region138: #{transformer_forward.16} parent=71 // pred_check_branch
          %1320 = sbr.rel (%p1318) target = $region140
        $region139: #{transformer_forward.16} parent=71 // pred_region
          %s1322 = ssub.s32 64, 64
          %1323 = vsyncadd %s1301, %s1322
          %s1324 = smul.addr %s55, 4
          %s1325 = sadd.s32 %s56, %s1324
          %s1326 = smul.addr %s1325, 64
          %s1327 = scalar_lea.hbm %s14, %s1326
          %s1329 = sshll.u32 %s1304, 4
          %s1330 = int_to_ptr.vmem [resolvable:$true] %s1329
          %1332 = dma.vmem_to_hbm [thread:$0]  %s1330, 64, %s1327, %s1301
        $region140: #{transformer_forward.16} parent=71 // pred_fallthru
          _
      $region72: #{transformer_forward.16} parent=5 // pred_fallthru
        _
      %p1333 = scmp.le.s32.totalorder 2, %s46
      // Predicated region
      $region141: #{transformer_forward.16} parent=5 // pred_check
        %p1334 = pneg %p1333
      $region142: #{transformer_forward.16} parent=5 // pred_check_branch
        %1336 = sbr.rel (%p1334) target = $region144
      $region143: #{transformer_forward.16} parent=5 // pred_region
        %s1337 = ssub.s32 %s46, 2
        // Predicated region
        $region145: #{transformer_forward.16} parent=143 // pred_check
          %p1338 = pneg %p410
        $region146: #{transformer_forward.16} parent=143 // pred_check_branch
          %1340 = sbr.rel (%p1338) target = $region148
        $region147: #{transformer_forward.16} parent=143 // pred_region
          %s1341 = sand.u32 %s395, 1
          %s1342 = scalar_lea.sflag [#allocation6], %s1341
          %s1343 = sand.u32 %s395, 1
          %s1344 = smul.addr %s1343, 8
          %s1345 = scalar_lea.vmem [#allocation25], %s1344
          %1346 = dma.done %s1342, 128
        $region148: #{transformer_forward.16} parent=143 // pred_fallthru
          _
        // Predicated region
        $region149: #{transformer_forward.16} parent=143 // pred_check
          %p1347 = pneg %p438
        $region150: #{transformer_forward.16} parent=143 // pred_check_branch
          %1349 = sbr.rel (%p1347) target = $region152
        $region151: #{transformer_forward.16} parent=143 // pred_region
          %s1350 = sand.u32 %s423, 1
          %s1351 = scalar_lea.sflag [#allocation27], %s1350
          %s1352 = sand.u32 %s423, 1
          %s1353 = smul.addr %s1352, 4
          %s1354 = scalar_lea.vmem [#allocation26], %s1353
          %1355 = dma.done %s1351, 64
        $region152: #{transformer_forward.16} parent=143 // pred_fallthru
          _
      $region144: #{transformer_forward.16} parent=5 // pred_fallthru
        _
    $region6: #{transformer_forward.16} parent=1 // loop_footer
      %s50 = sadd.s32 1, %s46
    $region7: #{transformer_forward.16} parent=1 // loop_footer_branch
      %45 = sbr.rel target = $region3
    $region8: #{transformer_forward.16} parent=1 // loop_exit
      _
    %1356 = vsyncpa [#allocation5], 1
    %s1357 = scalar_lea.sflag [#allocation5], 1
    %1358 = vsyncpa %s1357, 1
    %1359 = vsyncpa [#allocation8], 1
    %s1360 = scalar_lea.sflag [#allocation8], 1
    %1361 = vsyncpa %s1360, 1
    %1362 = vsyncpa [#allocation11], 1
    %s1363 = scalar_lea.sflag [#allocation11], 1
    %1364 = vsyncpa %s1363, 1
    %1365 = vsyncpa [#allocation14], 1
    %s1366 = scalar_lea.sflag [#allocation14], 1
    %1367 = vsyncpa %s1366, 1
    %1368 = vsyncpa [#allocation17], 1
    %s1369 = scalar_lea.sflag [#allocation17], 1
    %1370 = vsyncpa %s1369, 1
    %1371 = vsyncpa [#allocation20], 1
    %s1372 = scalar_lea.sflag [#allocation20], 1
    %1373 = vsyncpa %s1372, 1
    %1374 = vsyncpa [#allocation23], 1
    %1375 = vsyncpa [#allocation6], 1
    %s1376 = scalar_lea.sflag [#allocation6], 1
    %1377 = vsyncpa %s1376, 1
    %1378 = vsyncpa [#allocation27], 1
    %s1379 = scalar_lea.sflag [#allocation27], 1
    %1380 = vsyncpa %s1379, 1

// kernel: transformer_forward.23
$region0: #{transformer_forward.23}
  #allocation0 [shape = 'u32[]', space=smem, size = 0x4, offset = 0x4, fixed_abs, tag = 'smem constant byte address 0x4 - core index']
  #allocation1 [shape = 'u32[144,128]{1,0:T(1,128)}', space=vmem, size = 0x12000, scoped, tag = 'internal scratch']
  %s0 = inlined_call_operand.hbm [shape: f32[16,32], index: 0, kind: input, shape index: {}]
  %s1 = inlined_call_operand.hbm [shape: bf16[32,128], index: 1, kind: input, shape index: {}]
  %s2 = inlined_call_operand.hbm [shape: f32[16,1], index: 2, kind: input, shape index: {}]
  %s3 = inlined_call_operand.hbm [shape: f32[16,1], index: 3, kind: input, shape index: {}]
  %s4 = inlined_call_operand.hbm [shape: f32[16,128], index: 4, kind: output, shape index: {}]
  %s5 = sld [smem:[#allocation0]]
  $region65: #{transformer_forward.23} parent=0
    _
  %s7 = ssub.s32 1, %s5
  %s8 = scalar_select 0, %s7, %s5
  $region1: #{transformer_forward.23} parent=0
    #allocation2 [shape = 'u8[8192]{0}', space=vmem, size = 0x2000, scoped, tag = 'input window, operand 0']
    #allocation3 [shape = 's32[2]{0}', space=sflag, size = 0x8, scoped, tag = 'scoped memory for transformer_forward.23']
    #allocation4 [shape = 's32[2]{0}', space=sflag, size = 0x8, scoped, tag = 'scoped memory for transformer_forward.23']
    #allocation5 [shape = 'u8[8192]{0}', space=vmem, size = 0x2000, scoped, tag = 'input window, operand 1, single buffered']
    #allocation6 [shape = 's32[1]{0}', space=sflag, size = 0x4, scoped, tag = 'scoped memory for transformer_forward.23']
    #allocation7 [shape = 'u8[8192]{0}', space=vmem, size = 0x2000, scoped, tag = 'input window, operand 2']
    #allocation8 [shape = 'u8[8192]{0}', space=vmem, size = 0x2000, scoped, tag = 'input window, operand 3']
    #allocation9 [shape = 'u8[8192]{0}', space=vmem, size = 0x2000, scoped, tag = 'output window, operand 0']
    %9 = vsyncpa [#allocation3], 0
    %s10 = scalar_lea.sflag [#allocation3], 1
    %11 = vsyncpa %s10, 0
    %12 = vsyncpa [#allocation6], 0
    %13 = vsyncpa [#allocation4], 0
    %s14 = scalar_lea.sflag [#allocation4], 1
    %15 = vsyncpa %s14, 0
    loop: start=0, step=1, limit=4
    $region2: #{transformer_forward.23} parent=1 // loop_pre_header
      _
    $region3: #{transformer_forward.23} parent=1 // loop_header
      %s17 = sphi 0, %s21
      %p18 = scmp.ge.s32.totalorder %s17, 4
      %s24 = sphi 0, %s36
      %s25 = sphi 0, %s32
      %s26 = sphi 0, %s24
      %s27 = sphi 0, %s25
      %s28 = sphi 0, %s26
      %s29 = sphi 0, %s27
      %s39 = sphi 0, %s41
      %s42 = sphi 0, %s39
      %s43 = sphi 0, %s42
      %s59 = sphi 0, %s43
      %s65 = sphi 0, %s67
      %s68 = sphi 0, %s65
      %s69 = sphi 0, %s68
      %s85 = sphi 0, %s69
      %s91 = sphi 0, %s93
      %s94 = sphi 0, %s91
      %s95 = sphi 0, %s94
      %s111 = sphi 0, %s95
      %s117 = sphi 0, %s119
      %s120 = sphi 0, %s117
      %s121 = sphi 0, %s120
      %s137 = sphi 0, %s121
      %s145 = sphi 0, %s147
      %s148 = sphi 0, %s145
      %s149 = sphi 0, %s148
      %s165 = sphi 0, %s149
    $region4: #{transformer_forward.23} parent=1 // loop_header_branch
      %20 = sbr.rel (%p18) target = $region8
    $region5: #{transformer_forward.23} parent=1 // loop_body
      %s22 = ssub.s32 %s17, 1
      %s23 = ssub.s32 %s17, 2
      %s30 = sadd.s32 1, %s25
      %p31 = scmp.ge.s32.totalorder %s30, 1
      %s32 = scalar_select %p31, 0, %s30
      %s33 = sadd.s32 1, %s24
      %s34 = scalar_select %p31, %s33, %s24
      %p35 = scmp.ge.s32.totalorder %s34, 2
      %s36 = scalar_select %p35, 0, %s34
      %s37 = ssub.s32 %s24, %s36
      %p38 = scmp.eq.s32.totalorder %s37, 0
      %s40 = sadd.s32 %s39, 1
      %s41 = scalar_select %p38, %s39, %s40
      %p44 = pneg %p38
      %p45 = scmp.eq.s32.totalorder %s17, 1
      %p46 = por %p44, %p45
      %p47 = scmp.ne.s32.totalorder %s39, %s42
      %p48 = scmp.eq.s32.totalorder %s17, 0
      %p49 = por %p47, %p48
      %p50 = scmp.ne.s32.totalorder %s39, %s42
      %p51 = scmp.eq.s32.totalorder %s22, 1
      %p52 = por %p50, %p51
      %p53 = scmp.ne.s32.totalorder %s42, %s43
      %p54 = scmp.eq.s32.totalorder %s22, 0
      %p55 = por %p53, %p54
      %p56 = scmp.ne.s32.totalorder %s42, %s43
      %p57 = scmp.eq.s32.totalorder %s23, 1
      %p58 = por %p56, %p57
      %p60 = scmp.ne.s32.totalorder %s43, %s59
      %p61 = scmp.eq.s32.totalorder %s23, 0
      %p62 = por %p60, %p61
      %s63 = ssub.s32 %s25, %s32
      %p64 = scmp.eq.s32.totalorder %s63, 0
      %s66 = sadd.s32 %s65, 1
      %s67 = scalar_select %p64, %s65, %s66
      %p70 = pneg %p64
      %p71 = scmp.eq.s32.totalorder %s17, 1
      %p72 = por %p70, %p71
      %p73 = scmp.ne.s32.totalorder %s65, %s68
      %p74 = scmp.eq.s32.totalorder %s17, 0
      %p75 = por %p73, %p74
      %p76 = scmp.ne.s32.totalorder %s65, %s68
      %p77 = scmp.eq.s32.totalorder %s22, 1
      %p78 = por %p76, %p77
      %p79 = scmp.ne.s32.totalorder %s68, %s69
      %p80 = scmp.eq.s32.totalorder %s22, 0
      %p81 = por %p79, %p80
      %p82 = scmp.ne.s32.totalorder %s68, %s69
      %p83 = scmp.eq.s32.totalorder %s23, 1
      %p84 = por %p82, %p83
      %p86 = scmp.ne.s32.totalorder %s69, %s85
      %p87 = scmp.eq.s32.totalorder %s23, 0
      %p88 = por %p86, %p87
      %s89 = ssub.s32 %s24, %s36
      %p90 = scmp.eq.s32.totalorder %s89, 0
      %s92 = sadd.s32 %s91, 1
      %s93 = scalar_select %p90, %s91, %s92
      %p96 = pneg %p90
      %p97 = scmp.eq.s32.totalorder %s17, 1
      %p98 = por %p96, %p97
      %p99 = scmp.ne.s32.totalorder %s91, %s94
      %p100 = scmp.eq.s32.totalorder %s17, 0
      %p101 = por %p99, %p100
      %p102 = scmp.ne.s32.totalorder %s91, %s94
      %p103 = scmp.eq.s32.totalorder %s22, 1
      %p104 = por %p102, %p103
      %p105 = scmp.ne.s32.totalorder %s94, %s95
      %p106 = scmp.eq.s32.totalorder %s22, 0
      %p107 = por %p105, %p106
      %p108 = scmp.ne.s32.totalorder %s94, %s95
      %p109 = scmp.eq.s32.totalorder %s23, 1
      %p110 = por %p108, %p109
      %p112 = scmp.ne.s32.totalorder %s95, %s111
      %p113 = scmp.eq.s32.totalorder %s23, 0
      %p114 = por %p112, %p113
      %s115 = ssub.s32 %s24, %s36
      %p116 = scmp.eq.s32.totalorder %s115, 0
      %s118 = sadd.s32 %s117, 1
      %s119 = scalar_select %p116, %s117, %s118
      %p122 = pneg %p116
      %p123 = scmp.eq.s32.totalorder %s17, 1
      %p124 = por %p122, %p123
      %p125 = scmp.ne.s32.totalorder %s117, %s120
      %p126 = scmp.eq.s32.totalorder %s17, 0
      %p127 = por %p125, %p126
      %p128 = scmp.ne.s32.totalorder %s117, %s120
      %p129 = scmp.eq.s32.totalorder %s22, 1
      %p130 = por %p128, %p129
      %p131 = scmp.ne.s32.totalorder %s120, %s121
      %p132 = scmp.eq.s32.totalorder %s22, 0
      %p133 = por %p131, %p132
      %p134 = scmp.ne.s32.totalorder %s120, %s121
      %p135 = scmp.eq.s32.totalorder %s23, 1
      %p136 = por %p134, %p135
      %p138 = scmp.ne.s32.totalorder %s121, %s137
      %p139 = scmp.eq.s32.totalorder %s23, 0
      %p140 = por %p138, %p139
      %s141 = ssub.s32 %s24, %s36
      %s142 = ssub.s32 %s25, %s32
      %s143 = sor.u32 %s141, %s142
      %p144 = scmp.eq.s32.totalorder %s143, 0
      %s146 = sadd.s32 %s145, 1
      %s147 = scalar_select %p144, %s145, %s146
      %p150 = pneg %p144
      %p151 = scmp.eq.s32.totalorder %s17, 1
      %p152 = por %p150, %p151
      %p153 = scmp.ne.s32.totalorder %s145, %s148
      %p154 = scmp.eq.s32.totalorder %s17, 0
      %p155 = por %p153, %p154
      %p156 = scmp.ne.s32.totalorder %s145, %s148
      %p157 = scmp.eq.s32.totalorder %s22, 1
      %p158 = por %p156, %p157
      %p159 = scmp.ne.s32.totalorder %s148, %s149
      %p160 = scmp.eq.s32.totalorder %s22, 0
      %p161 = por %p159, %p160
      %p162 = scmp.ne.s32.totalorder %s148, %s149
      %p163 = scmp.eq.s32.totalorder %s23, 1
      %p164 = por %p162, %p163
      %p166 = scmp.ne.s32.totalorder %s149, %s165
      %p167 = scmp.eq.s32.totalorder %s23, 0
      %p168 = por %p166, %p167
      %p169 = scmp.le.s32.totalorder 1, %s17
      %p170 = scmp.lt.s32.totalorder %s17, 3
      %p171 = pnand %p169, %p170
      %p172 = pneg %p171
      // Predicated region
      $region9: #{transformer_forward.23} parent=5 // pred_check
        _
      $region10: #{transformer_forward.23} parent=5 // pred_check_branch
        %174 = sbr.rel (%p171) target = $region12
      $region11: #{transformer_forward.23} parent=5 // pred_region
        %s175 = ssub.s32 %s17, 1
        // Predicated region
        $region13: #{transformer_forward.23} parent=11 // pred_check
          %p176 = pneg %p81
        $region14: #{transformer_forward.23} parent=11 // pred_check_branch
          %178 = sbr.rel (%p176) target = $region16
        $region15: #{transformer_forward.23} parent=11 // pred_region
          %s180 = ssub.s32 256, 256
          %181 = vsyncadd [#allocation6], %s180
          %s182 = smul.addr %s27, 64
          %s183 = scalar_lea.hbm %s1, %s182
          %s184 = sshll.u32 [#allocation5], 4
          %s185 = int_to_ptr.vmem [resolvable:$true] %s184
          %190 = dma.hbm_to_vmem [thread:$0]  %s183, 256, %s185, [#allocation6], 64, 64, 4
        $region16: #{transformer_forward.23} parent=11 // pred_fallthru
          _
      $region12: #{transformer_forward.23} parent=5 // pred_fallthru
        _
      %p191 = scmp.lt.s32.totalorder %s17, 2
      // Predicated region
      $region17: #{transformer_forward.23} parent=5 // pred_check
        %p192 = pneg %p191
      $region18: #{transformer_forward.23} parent=5 // pred_check_branch
        %194 = sbr.rel (%p192) target = $region20
      $region19: #{transformer_forward.23} parent=5 // pred_region
        // Predicated region
        $region21: #{transformer_forward.23} parent=19 // pred_check
          %p195 = pneg %p49
        $region22: #{transformer_forward.23} parent=19 // pred_check_branch
          %197 = sbr.rel (%p195) target = $region24
        $region23: #{transformer_forward.23} parent=19 // pred_region
          %s198 = sand.u32 %s17, 1
          %s199 = scalar_lea.sflag [#allocation3], %s198
          %s200 = sand.u32 %s39, 1
          %s201 = smul.addr %s200, 8
          %s202 = scalar_lea.vmem [#allocation2], %s201
          %s204 = ssub.s32 128, 128
          %205 = vsyncadd %s199, %s204
          %s206 = smul.addr %s24, 128
          %s207 = scalar_lea.hbm %s0, %s206
          %s209 = sshll.u32 %s202, 4
          %s210 = int_to_ptr.vmem [resolvable:$true] %s209
          %212 = dma.hbm_to_vmem [thread:$0]  %s207, 128, %s210, %s199
        $region24: #{transformer_forward.23} parent=19 // pred_fallthru
          _
        // Predicated region
        $region25: #{transformer_forward.23} parent=19 // pred_check
          %p213 = pneg %p101
        $region26: #{transformer_forward.23} parent=19 // pred_check_branch
          %215 = sbr.rel (%p213) target = $region28
        $region27: #{transformer_forward.23} parent=19 // pred_region
          %s216 = sand.u32 %s17, 1
          %s217 = scalar_lea.sflag [#allocation3], %s216
          %s218 = sand.u32 %s91, 1
          %s219 = smul.addr %s218, 8
          %s220 = scalar_lea.vmem [#allocation7], %s219
          %s222 = ssub.s32 128, 128
          %223 = vsyncadd %s217, %s222
          %s224 = smul.addr %s24, 128
          %s225 = scalar_lea.hbm %s2, %s224
          %s227 = sshll.u32 %s220, 4
          %s228 = int_to_ptr.vmem [resolvable:$true] %s227
          %230 = dma.hbm_to_vmem [thread:$0]  %s225, 128, %s228, %s217
        $region28: #{transformer_forward.23} parent=19 // pred_fallthru
          _
        // Predicated region
        $region29: #{transformer_forward.23} parent=19 // pred_check
          %p231 = pneg %p127
        $region30: #{transformer_forward.23} parent=19 // pred_check_branch
          %233 = sbr.rel (%p231) target = $region32
        $region31: #{transformer_forward.23} parent=19 // pred_region
          %s234 = sand.u32 %s17, 1
          %s235 = scalar_lea.sflag [#allocation3], %s234
          %s236 = sand.u32 %s117, 1
          %s237 = smul.addr %s236, 8
          %s238 = scalar_lea.vmem [#allocation8], %s237
          %s240 = ssub.s32 128, 128
          %241 = vsyncadd %s235, %s240
          %s242 = smul.addr %s24, 128
          %s243 = scalar_lea.hbm %s3, %s242
          %s245 = sshll.u32 %s238, 4
          %s246 = int_to_ptr.vmem [resolvable:$true] %s245
          %248 = dma.hbm_to_vmem [thread:$0]  %s243, 128, %s246, %s235
        $region32: #{transformer_forward.23} parent=19 // pred_fallthru
          _
      $region20: #{transformer_forward.23} parent=5 // pred_fallthru
        _
      %p249 = scmp.le.s32.totalorder 1, %s17
      %p250 = scmp.lt.s32.totalorder %s17, 3
      %p251 = pnand %p249, %p250
      %p252 = pneg %p251
      // Predicated region
      $region33: #{transformer_forward.23} parent=5 // pred_check
        _
      $region34: #{transformer_forward.23} parent=5 // pred_check_branch
        %254 = sbr.rel (%p251) target = $region36
      $region35: #{transformer_forward.23} parent=5 // pred_region
        %s255 = ssub.s32 %s17, 1
        %s256 = sand.u32 %s22, 1
        %s257 = scalar_lea.sflag [#allocation3], %s256
        %s258 = sand.u32 %s42, 1
        %s259 = smul.addr %s258, 8
        %s260 = scalar_lea.vmem [#allocation2], %s259
        // Predicated region
        $region37: #{transformer_forward.23} parent=35 // pred_check
          %p261 = pneg %p55
        $region38: #{transformer_forward.23} parent=35 // pred_check_branch
          %263 = sbr.rel (%p261) target = $region40
        $region39: #{transformer_forward.23} parent=35 // pred_region
          %264 = dma.done %s257, 128
        $region40: #{transformer_forward.23} parent=35 // pred_fallthru
          _
        // Predicated region
        $region41: #{transformer_forward.23} parent=35 // pred_check
          %p265 = pneg %p81
        $region42: #{transformer_forward.23} parent=35 // pred_check_branch
          %267 = sbr.rel (%p265) target = $region44
        $region43: #{transformer_forward.23} parent=35 // pred_region
          %268 = dma.done [#allocation6], 256
        $region44: #{transformer_forward.23} parent=35 // pred_fallthru
          _
        %s269 = sand.u32 %s22, 1
        %s270 = scalar_lea.sflag [#allocation3], %s269
        %s271 = sand.u32 %s94, 1
        %s272 = smul.addr %s271, 8
        %s273 = scalar_lea.vmem [#allocation7], %s272
        // Predicated region
        $region45: #{transformer_forward.23} parent=35 // pred_check
          %p274 = pneg %p107
        $region46: #{transformer_forward.23} parent=35 // pred_check_branch
          %276 = sbr.rel (%p274) target = $region48
        $region47: #{transformer_forward.23} parent=35 // pred_region
          %277 = dma.done %s270, 128
        $region48: #{transformer_forward.23} parent=35 // pred_fallthru
          _
        %s278 = sand.u32 %s22, 1
        %s279 = scalar_lea.sflag [#allocation3], %s278
        %s280 = sand.u32 %s120, 1
        %s281 = smul.addr %s280, 8
        %s282 = scalar_lea.vmem [#allocation8], %s281
        // Predicated region
        $region49: #{transformer_forward.23} parent=35 // pred_check
          %p283 = pneg %p133
        $region50: #{transformer_forward.23} parent=35 // pred_check_branch
          %285 = sbr.rel (%p283) target = $region52
        $region51: #{transformer_forward.23} parent=35 // pred_region
          %286 = dma.done %s279, 128
        $region52: #{transformer_forward.23} parent=35 // pred_fallthru
          _
        %s287 = sand.u32 %s22, 1
        %s288 = scalar_lea.sflag [#allocation3], %s287
        %s289 = sand.u32 %s42, 1
        %s290 = smul.addr %s289, 8
        %s291 = scalar_lea.vmem [#allocation2], %s290
        %p292 = pneg %p55
        %p293 = pneg %p52
        %p294 = pneg %p81
        %p295 = pneg %p78
        %s296 = sand.u32 %s22, 1
        %s297 = scalar_lea.sflag [#allocation3], %s296
        %s298 = sand.u32 %s94, 1
        %s299 = smul.addr %s298, 8
        %s300 = scalar_lea.vmem [#allocation7], %s299
        %p301 = pneg %p107
        %p302 = pneg %p104
        %s303 = sand.u32 %s22, 1
        %s304 = scalar_lea.sflag [#allocation3], %s303
        %s305 = sand.u32 %s120, 1
        %s306 = smul.addr %s305, 8
        %s307 = scalar_lea.vmem [#allocation8], %s306
        %p308 = pneg %p133
        %p309 = pneg %p130
        %p310 = pneg %p161
        %p311 = pneg %p158
        %s312 = sand.u32 %s148, 1
        %s313 = scalar_lea.sflag [#allocation4], %s312
        %s314 = sand.u32 %s148, 1
        %s315 = smul.addr %s314, 8
        %s316 = scalar_lea.vmem [#allocation9], %s315
        %v318 = vld [vmem:[%s260] sm:$0xff]
        %v319 = vpack.c.bf16 %v318, %v318
        %v320 = vld [vmem:[#allocation5] sm:$0xf]
        %v321 = vld [vmem:[#allocation5 + $0x4] sm:$0xf]
        %v322 = vld [vmem:[#allocation5 + $0x8] sm:$0xf]
        %v323 = vld [vmem:[#allocation5 + $0xc] sm:$0xf]
        %v328 = vunpack.c.l.b16 %v320
        %v329 = vunpack.c.l.b16 %v321
        %v330 = vunpack.c.l.b16 %v322
        %v331 = vunpack.c.l.b16 %v323
        %v332 = vpack.c.b16 %v329, %v328
        %v333 = vpack.c.b16 %v331, %v330
        %vm336 = vcmask 261120
        %v338 = vsel %vm336, %v319, 0
        %340 = vmatprep.subr.bf16.mxu0 0
        %341 = vmatpush1.bf16.msra.mxu0 %v332
        %342 = vmatprep.subr.bf16.mxu0 0
        %343 = vmatpush1.bf16.msra.mxu0 %v333
        %344 = vmatprep.subr.bf16.mxu0 0
        %345 = vmatpush1.bf16.msra.mxu0 0
        %346 = vmatprep.subr.bf16.mxu0 0
        %347 = vmatpush1.bf16.msra.mxu0 0
        %348 = vmatprep.subr.bf16.mxu0 0
        %349 = vmatpush1.bf16.msra.mxu0 0
        %350 = vmatprep.subr.bf16.mxu0 0
        %351 = vmatpush1.bf16.msra.mxu0 0
        %352 = vmatprep.subr.bf16.mxu0 0
        %353 = vmatpush1.bf16.msra.mxu0 0
        %354 = vmatprep.subr.bf16.mxu0 0
        %355 = vmatpush1.bf16.msra.mxu0 0
        %356 = vmatprep.subr.bf16.mxu0 0
        %357 = vmatpush1.bf16.msra.mxu0 0
        %358 = vmatprep.subr.bf16.mxu0 0
        %359 = vmatpush1.bf16.msra.mxu0 0
        %360 = vmatprep.subr.bf16.mxu0 0
        %361 = vmatpush1.bf16.msra.mxu0 0
        %362 = vmatprep.subr.bf16.mxu0 0
        %363 = vmatpush1.bf16.msra.mxu0 0
        %364 = vmatprep.subr.bf16.mxu0 0
        %365 = vmatpush1.bf16.msra.mxu0 0
        %366 = vmatprep.subr.bf16.mxu0 0
        %367 = vmatpush1.bf16.msra.mxu0 0
        %368 = vmatprep.subr.bf16.mxu0 0
        %369 = vmatpush1.bf16.msra.mxu0 0
        %370 = vmatprep.subr.bf16.mxu0 0
        %371 = vmatpush1.bf16.msra.mxu0 0
        %372 = vmatprep.mubr.bf16.mxu0 0
        %373 = vmatmul.mubr.bf16.gmra.mrb[0].mxu0 %v338
        %v374 = vpop.f32.mrb[0].mxu0
        %v375 = vadd.f32 0.0, %v374
        %v376 = vpop.f32.mrb[0].mxu0
        %v377 = vpop.f32.mrb[0].mxu0
        %v378 = vpop.f32.mrb[0].mxu0
        %379 = vdwg.mxu0
        %s380 = smul.u32 %s27, 128
        %v381 = vlaneseq
        %v382 = vand.u32 %v381, 127
        %v383 = vstv %s380
        %v384 = vadd.s32 %v383, %v382
        %vm385 = vcmp.lt.s32.totalorder %v384, 16
        %v386 = vsel %vm385, %v375, -1e+30
        %v387 = vld [vmem:[%s273] sm:$0xff]
        %389 = vset.pattern.permute.xlu0 0
        %390 = vperm.xlu0 %389, %v387
        %v391 = vpop.permute.xlu0 %390
        %v393 = vsub.f32 %v386, %v391
        %v394 = vmul.f32 %v393, 1.442695
        %v395 = vpow.pop %v394
        %v396 = vld [vmem:[%s282] sm:$0xff]
        %398 = vset.pattern.permute.xlu0 0
        %399 = vperm.xlu0 %398, %v396
        %v400 = vpop.permute.xlu0 %399
        %v402 = vrcp.pop %v400
        %v403 = vmul.f32 %v395, %v402
        %404 = vst [vmem:[%s316] sm:$0xff] %v403
        %s405 = sand.u32 %s148, 1
        %s406 = scalar_lea.sflag [#allocation4], %s405
        %s407 = sand.u32 %s148, 1
        %s408 = smul.addr %s407, 8
        %s409 = scalar_lea.vmem [#allocation9], %s408
        // Predicated region
        $region53: #{transformer_forward.23} parent=35 // pred_check
          %p410 = pneg %p158
        $region54: #{transformer_forward.23} parent=35 // pred_check_branch
          %412 = sbr.rel (%p410) target = $region56
        $region55: #{transformer_forward.23} parent=35 // pred_region
          %s414 = ssub.s32 128, 128
          %415 = vsyncadd %s406, %s414
          %s416 = sadd.s32 %s27, %s26
          %s417 = smul.addr %s416, 128
          %s418 = scalar_lea.hbm %s4, %s417
          %s420 = sshll.u32 %s409, 4
          %s421 = int_to_ptr.vmem [resolvable:$true] %s420
          %423 = dma.vmem_to_hbm [thread:$0]  %s421, 128, %s418, %s406
        $region56: #{transformer_forward.23} parent=35 // pred_fallthru
          _
      $region36: #{transformer_forward.23} parent=5 // pred_fallthru
        _
      %p424 = scmp.le.s32.totalorder 2, %s17
      // Predicated region
      $region57: #{transformer_forward.23} parent=5 // pred_check
        %p425 = pneg %p424
      $region58: #{transformer_forward.23} parent=5 // pred_check_branch
        %427 = sbr.rel (%p425) target = $region60
      $region59: #{transformer_forward.23} parent=5 // pred_region
        %s428 = ssub.s32 %s17, 2
        // Predicated region
        $region61: #{transformer_forward.23} parent=59 // pred_check
          %p429 = pneg %p164
        $region62: #{transformer_forward.23} parent=59 // pred_check_branch
          %431 = sbr.rel (%p429) target = $region64
        $region63: #{transformer_forward.23} parent=59 // pred_region
          %s432 = sand.u32 %s149, 1
          %s433 = scalar_lea.sflag [#allocation4], %s432
          %s434 = sand.u32 %s149, 1
          %s435 = smul.addr %s434, 8
          %s436 = scalar_lea.vmem [#allocation9], %s435
          %437 = dma.done %s433, 128
        $region64: #{transformer_forward.23} parent=59 // pred_fallthru
          _
      $region60: #{transformer_forward.23} parent=5 // pred_fallthru
        _
    $region6: #{transformer_forward.23} parent=1 // loop_footer
      %s21 = sadd.s32 1, %s17
    $region7: #{transformer_forward.23} parent=1 // loop_footer_branch
      %16 = sbr.rel target = $region3
    $region8: #{transformer_forward.23} parent=1 // loop_exit
      _
    %438 = vsyncpa [#allocation3], 1
    %s439 = scalar_lea.sflag [#allocation3], 1
    %440 = vsyncpa %s439, 1
    %441 = vsyncpa [#allocation6], 1
    %442 = vsyncpa [#allocation4], 1
    %s443 = scalar_lea.sflag [#allocation4], 1
    %444 = vsyncpa %s443, 1

</llo_original>
